<compile_context>
chip_gen: v6e
topology: v6e:2x2x1
jax: 0.10.0
libtpu: 0.0.40
codegen_flags: <defaults>
</compile_context>

<pallas_src>
import functools
import math

import jax
import jax.numpy as jnp
from jax.experimental import pallas as pl
from jax.experimental.pallas import tpu as pltpu

# Scoped-VMEM budget: above v5e's 16 MiB default, safely inside v7x's 64 MiB
# physical; worst-case double-buffered footprint of these kernels is ~15 MiB.
_VMEM_LIMIT = 32 * 1024 * 1024


# ----------------------------- Pallas kernels -----------------------------

def _linear_kernel(*refs, activation, has_residual, has_ln):
    """Tiled y = x @ w + b [+act] [+residual] [-> LayerNorm], bf16 MXU, f32 acc."""
    idx = 0
    x_ref = refs[idx]; idx += 1
    w_ref = refs[idx]; idx += 1
    b_ref = refs[idx]; idx += 1
    r_ref = None
    if has_residual:
        r_ref = refs[idx]; idx += 1
    g_ref = bt_ref = None
    if has_ln:
        g_ref = refs[idx]; idx += 1
        bt_ref = refs[idx]; idx += 1
    o_ref = refs[idx]; idx += 1
    acc_ref = refs[idx]

    k = pl.program_id(2)

    @pl.when(k == 0)
    def _():
        acc_ref[...] = jnp.zeros_like(acc_ref)

    # bf16 operands -> full MXU rate; f32 accumulation preserves accuracy.
    acc_ref[...] += jnp.dot(
        x_ref[...].astype(jnp.bfloat16),
        w_ref[...].astype(jnp.bfloat16),
        preferred_element_type=jnp.float32,
    )

    @pl.when(k == pl.num_programs(2) - 1)
    def _():
        y = acc_ref[...] + b_ref[...].astype(jnp.float32)
        if activation == "gelu":
            # original BERT gelu: x * 0.5 * (1 + erf(x / sqrt(2)))
            y = y * 0.5 * (1.0 + jax.lax.erf(y * (1.0 / math.sqrt(2.0))))
        elif activation == "tanh":
            y = jnp.tanh(y)
        if r_ref is not None:
            y = y + r_ref[...].astype(jnp.float32)
        if has_ln:
            # Valid only because tn == N (the full row is in this tile).
            mu = jnp.mean(y, axis=-1, keepdims=True)
            var = jnp.mean((y - mu) ** 2, axis=-1, keepdims=True)
            y = (y - mu) * jax.lax.rsqrt(var + 1e-12)
            y = y * g_ref[...].astype(jnp.float32) + bt_ref[...].astype(jnp.float32)
        o_ref[...] = y.astype(o_ref.dtype)


def _pick_tile(dim, cand, align):
    """Exact divisor of `dim` that is <= cand and a multiple of `align`,
    else the full dim (block == array).  Never produces partial blocks and
    never lets a non-divisible large dim become a whole-dimension block unless
    no aligned divisor exists."""
    if dim <= cand:
        return dim
    if dim % cand == 0:
        return cand
    for d in range(cand, align - 1, -align):
        if dim % d == 0:
            return d
    return dim


def linear(x, w, b, activation=None, residual=None, ln=None,
           tm=512, tn=512, tk=512):
    """PyTorch nn.Linear (w stored [in, out]) with fused bias/act/residual/LN.

    512-aligned tiles amortize per-grid-step overhead and are 256-aligned for
    the v6e/v7x 2x256 MXU (and 128-aligned for v5e).  When `ln` is given the
    whole output row must live in one tile, so tn is forced to N.
    """
    M, K = x.shape
    N = w.shape[1]
    if ln is not None:
        tn = N                      # LayerNorm needs the full row per tile
    tm = _pick_tile(M, tm, 8)
    tn = _pick_tile(N, tn, 128)
    tk = _pick_tile(K, tk, 128)
    grid = (pl.cdiv(M, tm), pl.cdiv(N, tn), pl.cdiv(K, tk))

    in_specs = [
        pl.BlockSpec((tm, tk), lambda i, j, k: (i, k)),
        pl.BlockSpec((tk, tn), lambda i, j, k: (k, j)),
        pl.BlockSpec((1, tn), lambda i, j, k: (0, j)),
    ]
    args = [x, w, b.reshape(1, N)]
    if residual is not None:
        in_specs.append(pl.BlockSpec((tm, tn), lambda i, j, k: (i, j)))
        args.append(residual)
    if ln is not None:
        gamma, beta = ln
        in_specs.append(pl.BlockSpec((1, tn), lambda i, j, k: (0, j)))
        in_specs.append(pl.BlockSpec((1, tn), lambda i, j, k: (0, j)))
        args.append(gamma.reshape(1, N))
        args.append(beta.reshape(1, N))

    return pl.pallas_call(
        functools.partial(_linear_kernel, activation=activation,
                          has_residual=residual is not None,
                          has_ln=ln is not None),
        grid=grid,
        in_specs=in_specs,
        out_specs=pl.BlockSpec((tm, tn), lambda i, j, k: (i, j)),
        out_shape=jax.ShapeDtypeStruct((M, N), x.dtype),
        scratch_shapes=[pltpu.VMEM((tm, tn), jnp.float32)],
        compiler_params=pltpu.CompilerParams(
            dimension_semantics=("parallel", "parallel", "arbitrary"),
            vmem_limit_bytes=_VMEM_LIMIT),
    )(*args)


def _attention_kernel(q_ref, k_ref, v_ref, o_ref, *, scale):
    """One (batch, head) pair per grid step; no mask (it is identically 0)."""
    q = q_ref[0, 0].astype(jnp.bfloat16)                 # [S, hd]
    k = k_ref[0, 0].astype(jnp.bfloat16)                 # [S, hd]
    v = v_ref[0, 0].astype(jnp.bfloat16)                 # [S, hd]
    # Contract hd directly (no explicit k.T / XLU relayout).
    s = jax.lax.dot_general(q, k, (((1,), (1,)), ((), ())),
                            preferred_element_type=jnp.float32) * scale
    s = s - jnp.max(s, axis=-1, keepdims=True)
    p = jnp.exp(s)
    denom = jnp.sum(p, axis=-1, keepdims=True)
    p = p * pl.reciprocal(denom, approx=True)            # EUP, frees the VALU
    o = jnp.dot(p.astype(jnp.bfloat16), v,               # bf16 PV matmul
                preferred_element_type=jnp.float32)
    o_ref[0, 0] = o.astype(o_ref.dtype)


def attention(q, k, v, scale):
    """q, k, v: [B, nh, S, hd] -> [B, nh, S, hd], grid over (B, nh)."""
    B, nh, S, hd = q.shape
    spec = pl.BlockSpec((1, 1, S, hd), lambda b, h: (b, h, 0, 0))
    # TODO(synk): for very long S, stream kv blocks flash-style inside the body.
    return pl.pallas_call(
        functools.partial(_attention_kernel, scale=scale),
        grid=(B, nh),
        in_specs=[spec, spec, spec],
        out_specs=spec,
        out_shape=jax.ShapeDtypeStruct((B, nh, S, hd), q.dtype),
        compiler_params=pltpu.CompilerParams(
            dimension_semantics=("parallel", "parallel"),
            vmem_limit_bytes=_VMEM_LIMIT),
    )(q, k, v)


# ----------------------------- BERT building blocks -----------------------------

def bert_layer(hidden, p, num_heads):
    """BertLayer: fused-QKV attention + fused (add+LN), gelu MLP + fused (add+LN).

    The extended attention mask is all zeros in the last-stage path
    (attention_mask=None -> ones -> (1-1)*-1e4 = 0), so it is dropped.
    TODO(synk): dropout layers are identity in eval mode; omitted.
    """
    B, S, H = hidden.shape
    hd = H // num_heads
    scale = 1.0 / math.sqrt(hd)
    x = hidden.reshape(B * S, H)

    # Single fused QKV projection: one MXU matmul, lane-dense N=3H output.
    qkv = linear(x, p["qkv_w"], p["qkv_b"])                       # [B*S, 3H]
    # TODO(synk): these two XLA transposes (head split / head re-pack) could be
    # folded into BlockSpec index_maps once sub-(8,128) head blocks are safe.
    qkv = qkv.reshape(B, S, 3, num_heads, hd).transpose(2, 0, 3, 1, 4)
    q, k, v = qkv[0], qkv[1], qkv[2]                              # [B, nh, S, hd]

    ctx = attention(q, k, v, scale)                               # [B, nh, S, hd]
    ctx = ctx.transpose(0, 2, 1, 3).reshape(B * S, H)

    # attention output proj + residual add + LayerNorm in ONE epilogue
    attn_out = linear(ctx, p["ao_w"], p["ao_b"], residual=x,
                      ln=(p["ln1_g"], p["ln1_b"]))

    inter = linear(attn_out, p["i_w"], p["i_b"], activation="gelu")
    # FFN output proj + residual add + LayerNorm in ONE epilogue
    out = linear(inter, p["o_w"], p["o_b"], residual=attn_out,
                 ln=(p["ln2_g"], p["ln2_b"]))
    return out.reshape(B, S, H)


# ----------------------------- Parameter init -----------------------------

def _init_linear(key, fan_in, fan_out, w_dtype=jnp.bfloat16):
    kw, kb = jax.random.split(key)
    w = (jax.random.normal(kw, (fan_in, fan_out), jnp.float32) * 0.02).astype(w_dtype)
    b = jax.random.normal(kb, (fan_out,), jnp.float32) * 0.02
    return w, b


def _init_bert_layer(key, H, I):
    keys = jax.random.split(key, 6)
    q_w, q_b = _init_linear(keys[0], H, H)
    k_w, k_b = _init_linear(keys[1], H, H)
    v_w, v_b = _init_linear(keys[2], H, H)
    p = {
        "qkv_w": jnp.concatenate([q_w, k_w, v_w], axis=1),   # [H, 3H] bf16
        "qkv_b": jnp.concatenate([q_b, k_b, v_b], axis=0),   # [3H]   f32
    }
    p["ao_w"], p["ao_b"] = _init_linear(keys[3], H, H)
    p["ln1_g"] = jnp.ones((H,), jnp.float32)
    p["ln1_b"] = jnp.zeros((H,), jnp.float32)
    p["i_w"], p["i_b"] = _init_linear(keys[4], H, I)
    p["o_w"], p["o_b"] = _init_linear(keys[5], I, H)
    p["ln2_g"] = jnp.ones((H,), jnp.float32)
    p["ln2_b"] = jnp.zeros((H,), jnp.float32)
    return p


def init_params(key, cfg):
    H = cfg["hidden_size"]
    I = cfg["intermediate_size"]
    Hs = H // cfg["side_reduction_factor"]
    Is = I // cfg["side_reduction_factor"]
    L = cfg["num_pp_hidden_layers"]
    keys = jax.random.split(key, 7)

    # PyTorch builds one layer and copy.deepcopy()'s it -> identical params per
    # layer; reusing the same arrays also avoids re-materializing weights.
    main_layer = _init_bert_layer(keys[0], H, I)
    side_layer = _init_bert_layer(keys[1], Hs, Is)
    ds_w, ds_b = _init_linear(keys[2], H, Hs)

    params = {
        "layer": [main_layer for _ in range(L)],
        "side_layer": [side_layer for _ in range(L)],
        "downsample": [{"w": ds_w, "b": ds_b} for _ in range(L)],
    }
    params["up_w"], params["up_b"] = _init_linear(keys[3], Hs, H)   # side_final_upsample
    params["pool_w"], params["pool_b"] = _init_linear(keys[4], H, H,
                                                      w_dtype=jnp.float32)  # BertPooler
    params["fc_w"], params["fc_b"] = _init_linear(keys[5], H, cfg["num_classes"],
                                                  w_dtype=jnp.float32)
    return params


# ----------------------------- StageModel forward (last stage) -----------------------------

def stage_model_forward(params, x, side, cfg):
    B, S = cfg["batch_size"], cfg["pad_size"]
    H = cfg["hidden_size"]
    Hs = H // cfg["side_reduction_factor"]
    nh = cfg["num_attention_heads"]

    # attention_mask=None -> ones_like(input_ids) -> extended mask == 0:
    # dropped entirely (no HBM materialization, no per-step DMA, no VALU add).
    hidden = x
    side_h = side
    for i in range(cfg["num_pp_hidden_layers"]):
        hidden = bert_layer(hidden, params["layer"][i], nh)
        # downsample + residual add fused into one kernel epilogue
        side_h = linear(
            hidden.reshape(B * S, H),
            params["downsample"][i]["w"],
            params["downsample"][i]["b"],
            residual=side_h.reshape(B * S, Hs),
        ).reshape(B, S, Hs)
        side_h = bert_layer(side_h, params["side_layer"][i], nh)

    # is_last_stage branch: upsample + `hidden +` fused into one kernel
    sequence_output = linear(
        side_h.reshape(B * S, Hs), params["up_w"], params["up_b"],
        residual=hidden.reshape(B * S, H),
    ).reshape(B, S, H)

    # Pooler + fc: [B, H] sized matmuls — plain jnp (a pallas_call launch would
    # cost more than the compute).
    pooled = jnp.tanh(
        jnp.dot(sequence_output[:, 0, :], params["pool_w"],
                preferred_element_type=jnp.float32) + params["pool_b"])
    out = jnp.dot(pooled, params["fc_w"],
                  preferred_element_type=jnp.float32) + params["fc_b"]
    return out


# ----------------------------- main -----------------------------

if __name__ == "__main__":
    cfg = dict(
        hidden_size=32,
        intermediate_size=64,
        num_attention_heads=4,
        num_pp_hidden_layers=2,
        side_reduction_factor=2,
        num_classes=3,
        batch_size=2,
        pad_size=8,
        is_first_stage=False,
        is_last_stage=True,
    )

    key = jax.random.PRNGKey(0)
    kp, kx, ks = jax.random.split(key, 3)
    params = init_params(kp, cfg)

    B, S, H = cfg["batch_size"], cfg["pad_size"], cfg["hidden_size"]
    Hs = H // cfg["side_reduction_factor"]
    x = jax.random.normal(kx, (B, S, H), jnp.float32)        # hidden_state from prev stage
    side = jax.random.normal(ks, (B, S, Hs), jnp.float32)    # side hidden_state from prev stage

    fwd = jax.jit(functools.partial(stage_model_forward, cfg=cfg))
    out = fwd(params, x, side)
    jax.block_until_ready(out)
    assert out.shape == (B, cfg["num_classes"]), out.shape
    print("KERNEL_OK")
</pallas_src>

<mosaic_0001>
module attributes {stable_mosaic.version = 11 : i64} {
  func.func @_linear_kernel(%arg0: i32, %arg1: i32, %arg2: i32, %arg3: memref<16x32xf32, #tpu.memory_space<vmem>>, %arg4: memref<32x96xbf16, #tpu.memory_space<vmem>>, %arg5: memref<1x96xf32, #tpu.memory_space<vmem>>, %arg6: memref<16x96xf32, #tpu.memory_space<vmem>>, %arg7: memref<16x96xf32, #tpu.memory_space<vmem>>) attributes {dimension_semantics = [#tpu.dimension_semantics<parallel>, #tpu.dimension_semantics<parallel>, #tpu.dimension_semantics<arbitrary>], iteration_bounds = array<i64: 1, 1, 1>, scalar_prefetch = 0 : i64, scratch_operands = 1 : i64, tpu.core_type = #tpu.core_type<tc>, window_params = [{transform_indices = @transform_0, window_bounds = array<i64: 16, 32>}, {transform_indices = @transform_1, window_bounds = array<i64: 32, 96>}, {transform_indices = @transform_2, window_bounds = array<i64: 1, 96>}, {transform_indices = @transform_3, window_bounds = array<i64: 16, 96>}]} {
    %c0_i32 = arith.constant 0 : i32
    %0 = arith.cmpi eq, %arg2, %c0_i32 : i32
    %1 = arith.extui %0 : i1 to i32
    %c0_i32_0 = arith.constant 0 : i32
    %2 = arith.cmpi ne, %1, %c0_i32_0 : i32
    scf.if %2 {
      %cst_10 = arith.constant 0.000000e+00 : f32
      %13 = vector.broadcast %cst_10 : f32 to vector<16x96xf32>
      %c0_11 = arith.constant 0 : index
      %c0_12 = arith.constant 0 : index
      %14 = vector.load %arg7[%c0_11, %c0_12] : memref<16x96xf32, #tpu.memory_space<vmem>>, vector<16x96xf32>
      tpu.vector_store %arg7[%c0_11, %c0_12], %13 {strides = array<i32>} : memref<16x96xf32, #tpu.memory_space<vmem>>, vector<16x96xf32>,
    } else {
    }
    %c0 = arith.constant 0 : index
    %c0_1 = arith.constant 0 : index
    %3 = vector.load %arg7[%c0, %c0_1] : memref<16x96xf32, #tpu.memory_space<vmem>>, vector<16x96xf32>
    %c0_2 = arith.constant 0 : index
    %c0_3 = arith.constant 0 : index
    %4 = vector.load %arg3[%c0_2, %c0_3] : memref<16x32xf32, #tpu.memory_space<vmem>>, vector<16x32xf32>
    %5 = arith.truncf %4 : vector<16x32xf32> to vector<16x32xbf16>
    %c0_4 = arith.constant 0 : index
    %c0_5 = arith.constant 0 : index
    %6 = vector.load %arg4[%c0_4, %c0_5] : memref<32x96xbf16, #tpu.memory_space<vmem>>, vector<32x96xbf16>
    %cst = arith.constant dense<0.000000e+00> : vector<16x96xf32>
    %7 = tpu.matmul %5, %6, %cst {dimension_numbers = #tpu.dot_dimension_numbers<[1], [0], [0], [1], [0, 0, 1, 1], [], []>} : vector<16x32xbf16>, vector<32x96xbf16>, vector<16x96xf32> -> vector<16x96xf32>
    %8 = arith.addf %3, %7 : vector<16x96xf32>
    %c0_6 = arith.constant 0 : index
    %c0_7 = arith.constant 0 : index
    %9 = vector.load %arg7[%c0_6, %c0_7] : memref<16x96xf32, #tpu.memory_space<vmem>>, vector<16x96xf32>
    tpu.vector_store %arg7[%c0_6, %c0_7], %8 {strides = array<i32>} : memref<16x96xf32, #tpu.memory_space<vmem>>, vector<16x96xf32>,
    %c0_i32_8 = arith.constant 0 : i32
    %10 = arith.cmpi eq, %arg2, %c0_i32_8 : i32
    %11 = arith.extui %10 : i1 to i32
    %c0_i32_9 = arith.constant 0 : i32
    %12 = arith.cmpi ne, %11, %c0_i32_9 : i32
    scf.if %12 {
      %c0_10 = arith.constant 0 : index
      %c0_11 = arith.constant 0 : index
      %13 = vector.load %arg7[%c0_10, %c0_11] : memref<16x96xf32, #tpu.memory_space<vmem>>, vector<16x96xf32>
      %c0_12 = arith.constant 0 : index
      %c0_13 = arith.constant 0 : index
      %14 = vector.load %arg5[%c0_12, %c0_13] : memref<1x96xf32, #tpu.memory_space<vmem>>, vector<1x96xf32>
      %15 = vector.broadcast %14 : vector<1x96xf32> to vector<16x96xf32>
      %16 = arith.addf %13, %15 : vector<16x96xf32>
      %c0_14 = arith.constant 0 : index
      %c0_15 = arith.constant 0 : index
      %17 = vector.load %arg6[%c0_14, %c0_15] : memref<16x96xf32, #tpu.memory_space<vmem>>, vector<16x96xf32>
      tpu.vector_store %arg6[%c0_14, %c0_15], %16 {strides = array<i32>} : memref<16x96xf32, #tpu.memory_space<vmem>>, vector<16x96xf32>,
    } else {
    }
    return
  }
  func.func @transform_0(%arg0: i32, %arg1: i32, %arg2: i32) -> (i32, i32) {
    %c0_i32 = arith.constant 0 : i32
    return %arg0, %arg2 : i32, i32
  }
  func.func @transform_1(%arg0: i32, %arg1: i32, %arg2: i32) -> (i32, i32) {
    %c0_i32 = arith.constant 0 : i32
    return %arg2, %arg1 : i32, i32
  }
  func.func @transform_2(%arg0: i32, %arg1: i32, %arg2: i32) -> (i32, i32) {
    %c0_i32 = arith.constant 0 : i32
    %c0_i32_0 = arith.constant 0 : i32
    return %c0_i32, %arg1 : i32, i32
  }
  func.func @transform_3(%arg0: i32, %arg1: i32, %arg2: i32) -> (i32, i32) {
    %c0_i32 = arith.constant 0 : i32
    return %arg0, %arg1 : i32, i32
  }
}

module attributes {stable_mosaic.version = 11 : i64} {
  func.func @_attention_kernel(%arg0: i32, %arg1: i32, %arg2: memref<1x1x8x8xf32, #tpu.memory_space<vmem>>, %arg3: memref<1x1x8x8xf32, #tpu.memory_space<vmem>>, %arg4: memref<1x1x8x8xf32, #tpu.memory_space<vmem>>, %arg5: memref<1x1x8x8xf32, #tpu.memory_space<vmem>>) attributes {dimension_semantics = [#tpu.dimension_semantics<parallel>, #tpu.dimension_semantics<parallel>], iteration_bounds = array<i64: 2, 4>, scalar_prefetch = 0 : i64, scratch_operands = 0 : i64, tpu.core_type = #tpu.core_type<tc>, window_params = [{transform_indices = @transform_0, window_bounds = array<i64: 1, 1, 8, 8>}, {transform_indices = @transform_1, window_bounds = array<i64: 1, 1, 8, 8>}, {transform_indices = @transform_2, window_bounds = array<i64: 1, 1, 8, 8>}, {transform_indices = @transform_3, window_bounds = array<i64: 1, 1, 8, 8>}]} {
    %c0 = arith.constant 0 : index
    %c0_0 = arith.constant 0 : index
    %c0_1 = arith.constant 0 : index
    %c0_2 = arith.constant 0 : index
    %0 = vector.load %arg2[%c0, %c0_0, %c0_1, %c0_2] : memref<1x1x8x8xf32, #tpu.memory_space<vmem>>, vector<1x1x8x8xf32>
    %1 = vector.shape_cast %0 : vector<1x1x8x8xf32> to vector<8x8xf32>
    %2 = arith.truncf %1 : vector<8x8xf32> to vector<8x8xbf16>
    %c0_3 = arith.constant 0 : index
    %c0_4 = arith.constant 0 : index
    %c0_5 = arith.constant 0 : index
    %c0_6 = arith.constant 0 : index
    %3 = vector.load %arg3[%c0_3, %c0_4, %c0_5, %c0_6] : memref<1x1x8x8xf32, #tpu.memory_space<vmem>>, vector<1x1x8x8xf32>
    %4 = vector.shape_cast %3 : vector<1x1x8x8xf32> to vector<8x8xf32>
    %5 = arith.truncf %4 : vector<8x8xf32> to vector<8x8xbf16>
    %c0_7 = arith.constant 0 : index
    %c0_8 = arith.constant 0 : index
    %c0_9 = arith.constant 0 : index
    %c0_10 = arith.constant 0 : index
    %6 = vector.load %arg4[%c0_7, %c0_8, %c0_9, %c0_10] : memref<1x1x8x8xf32, #tpu.memory_space<vmem>>, vector<1x1x8x8xf32>
    %7 = vector.shape_cast %6 : vector<1x1x8x8xf32> to vector<8x8xf32>
    %8 = arith.truncf %7 : vector<8x8xf32> to vector<8x8xbf16>
    %cst = arith.constant dense<0.000000e+00> : vector<8x8xf32>
    %9 = tpu.matmul %2, %5, %cst {dimension_numbers = #tpu.dot_dimension_numbers<[1], [1], [0], [0], [0, 0, 1, 0], [], []>} : vector<8x8xbf16>, vector<8x8xbf16>, vector<8x8xf32> -> vector<8x8xf32>
    %cst_11 = arith.constant 0.353553385 : f32
    %10 = vector.broadcast %cst_11 : f32 to vector<8x8xf32>
    %11 = arith.mulf %9, %10 : vector<8x8xf32>
    %cst_12 = arith.constant dense<0xFF800000> : vector<8xf32>
    %12 = vector.multi_reduction <maximumf>, %11, %cst_12 [1] : vector<8x8xf32> to vector<8xf32>
    %13 = vector.shape_cast %12 : vector<8xf32> to vector<8x1xf32>
    %14 = vector.broadcast %13 : vector<8x1xf32> to vector<8x8xf32>
    %15 = arith.subf %11, %14 : vector<8x8xf32>
    %16 = math.exp %15 : vector<8x8xf32>
    %cst_13 = arith.constant dense<0.000000e+00> : vector<8xf32>
    %17 = vector.multi_reduction <add>, %16, %cst_13 [1] : vector<8x8xf32> to vector<8xf32>
    %18 = vector.shape_cast %17 : vector<8xf32> to vector<8x1xf32>
    %19 = tpu.reciprocal %18 {approx = true} : vector<8x1xf32> -> vector<8x1xf32>
    %20 = vector.broadcast %19 : vector<8x1xf32> to vector<8x8xf32>
    %21 = arith.mulf %16, %20 : vector<8x8xf32>
    %22 = arith.truncf %21 : vector<8x8xf32> to vector<8x8xbf16>
    %cst_14 = arith.constant dense<0.000000e+00> : vector<8x8xf32>
    %23 = tpu.matmul %22, %8, %cst_14 {dimension_numbers = #tpu.dot_dimension_numbers<[1], [0], [0], [1], [0, 0, 1, 1], [], []>} : vector<8x8xbf16>, vector<8x8xbf16>, vector<8x8xf32> -> vector<8x8xf32>
    %c0_15 = arith.constant 0 : index
    %c0_16 = arith.constant 0 : index
    %c0_17 = arith.constant 0 : index
    %c0_18 = arith.constant 0 : index
    %24 = vector.load %arg5[%c0_15, %c0_16, %c0_17, %c0_18] : memref<1x1x8x8xf32, #tpu.memory_space<vmem>>, vector<1x1x8x8xf32>
    %25 = vector.shape_cast %24 : vector<1x1x8x8xf32> to vector<8x8xf32>
    %26 = vector.shape_cast %23 : vector<8x8xf32> to vector<1x1x8x8xf32>
    tpu.vector_store %arg5[%c0_15, %c0_16, %c0_17, %c0_18], %26 {strides = array<i32>} : memref<1x1x8x8xf32, #tpu.memory_space<vmem>>, vector<1x1x8x8xf32>,
    return
  }
  func.func @transform_0(%arg0: i32, %arg1: i32) -> (i32, i32, i32, i32) {
    %c0_i32 = arith.constant 0 : i32
    %c0_i32_0 = arith.constant 0 : i32
    %c0_i32_1 = arith.constant 0 : i32
    return %arg0, %arg1, %c0_i32, %c0_i32_0 : i32, i32, i32, i32
  }
  func.func @transform_1(%arg0: i32, %arg1: i32) -> (i32, i32, i32, i32) {
    %c0_i32 = arith.constant 0 : i32
    %c0_i32_0 = arith.constant 0 : i32
    %c0_i32_1 = arith.constant 0 : i32
    return %arg0, %arg1, %c0_i32, %c0_i32_0 : i32, i32, i32, i32
  }
  func.func @transform_2(%arg0: i32, %arg1: i32) -> (i32, i32, i32, i32) {
    %c0_i32 = arith.constant 0 : i32
    %c0_i32_0 = arith.constant 0 : i32
    %c0_i32_1 = arith.constant 0 : i32
    return %arg0, %arg1, %c0_i32, %c0_i32_0 : i32, i32, i32, i32
  }
  func.func @transform_3(%arg0: i32, %arg1: i32) -> (i32, i32, i32, i32) {
    %c0_i32 = arith.constant 0 : i32
    %c0_i32_0 = arith.constant 0 : i32
    %c0_i32_1 = arith.constant 0 : i32
    return %arg0, %arg1, %c0_i32, %c0_i32_0 : i32, i32, i32, i32
  }
}

module attributes {stable_mosaic.version = 11 : i64} {
  func.func @_linear_kernel(%arg0: i32, %arg1: i32, %arg2: i32, %arg3: memref<16x32xf32, #tpu.memory_space<vmem>>, %arg4: memref<32x32xbf16, #tpu.memory_space<vmem>>, %arg5: memref<1x32xf32, #tpu.memory_space<vmem>>, %arg6: memref<16x32xf32, #tpu.memory_space<vmem>>, %arg7: memref<1x32xf32, #tpu.memory_space<vmem>>, %arg8: memref<1x32xf32, #tpu.memory_space<vmem>>, %arg9: memref<16x32xf32, #tpu.memory_space<vmem>>, %arg10: memref<16x32xf32, #tpu.memory_space<vmem>>) attributes {dimension_semantics = [#tpu.dimension_semantics<parallel>, #tpu.dimension_semantics<parallel>, #tpu.dimension_semantics<arbitrary>], iteration_bounds = array<i64: 1, 1, 1>, scalar_prefetch = 0 : i64, scratch_operands = 1 : i64, tpu.core_type = #tpu.core_type<tc>, window_params = [{transform_indices = @transform_0, window_bounds = array<i64: 16, 32>}, {transform_indices = @transform_1, window_bounds = array<i64: 32, 32>}, {transform_indices = @transform_2, window_bounds = array<i64: 1, 32>}, {transform_indices = @transform_3, window_bounds = array<i64: 16, 32>}, {transform_indices = @transform_4, window_bounds = array<i64: 1, 32>}, {transform_indices = @transform_5, window_bounds = array<i64: 1, 32>}, {transform_indices = @transform_6, window_bounds = array<i64: 16, 32>}]} {
    %c0_i32 = arith.constant 0 : i32
    %0 = arith.cmpi eq, %arg2, %c0_i32 : i32
    %1 = arith.extui %0 : i1 to i32
    %c0_i32_0 = arith.constant 0 : i32
    %2 = arith.cmpi ne, %1, %c0_i32_0 : i32
    scf.if %2 {
      %cst_10 = arith.constant 0.000000e+00 : f32
      %13 = vector.broadcast %cst_10 : f32 to vector<16x32xf32>
      %c0_11 = arith.constant 0 : index
      %c0_12 = arith.constant 0 : index
      %14 = vector.load %arg10[%c0_11, %c0_12] : memref<16x32xf32, #tpu.memory_space<vmem>>, vector<16x32xf32>
      tpu.vector_store %arg10[%c0_11, %c0_12], %13 {strides = array<i32>} : memref<16x32xf32, #tpu.memory_space<vmem>>, vector<16x32xf32>,
    } else {
    }
    %c0 = arith.constant 0 : index
    %c0_1 = arith.constant 0 : index
    %3 = vector.load %arg10[%c0, %c0_1] : memref<16x32xf32, #tpu.memory_space<vmem>>, vector<16x32xf32>
    %c0_2 = arith.constant 0 : index
    %c0_3 = arith.constant 0 : index
    %4 = vector.load %arg3[%c0_2, %c0_3] : memref<16x32xf32, #tpu.memory_space<vmem>>, vector<16x32xf32>
    %5 = arith.truncf %4 : vector<16x32xf32> to vector<16x32xbf16>
    %c0_4 = arith.constant 0 : index
    %c0_5 = arith.constant 0 : index
    %6 = vector.load %arg4[%c0_4, %c0_5] : memref<32x32xbf16, #tpu.memory_space<vmem>>, vector<32x32xbf16>
    %cst = arith.constant dense<0.000000e+00> : vector<16x32xf32>
    %7 = tpu.matmul %5, %6, %cst {dimension_numbers = #tpu.dot_dimension_numbers<[1], [0], [0], [1], [0, 0, 1, 1], [], []>} : vector<16x32xbf16>, vector<32x32xbf16>, vector<16x32xf32> -> vector<16x32xf32>
    %8 = arith.addf %3, %7 : vector<16x32xf32>
    %c0_6 = arith.constant 0 : index
    %c0_7 = arith.constant 0 : index
    %9 = vector.load %arg10[%c0_6, %c0_7] : memref<16x32xf32, #tpu.memory_space<vmem>>, vector<16x32xf32>
    tpu.vector_store %arg10[%c0_6, %c0_7], %8 {strides = array<i32>} : memref<16x32xf32, #tpu.memory_space<vmem>>, vector<16x32xf32>,
    %c0_i32_8 = arith.constant 0 : i32
    %10 = arith.cmpi eq, %arg2, %c0_i32_8 : i32
    %11 = arith.extui %10 : i1 to i32
    %c0_i32_9 = arith.constant 0 : i32
    %12 = arith.cmpi ne, %11, %c0_i32_9 : i32
    scf.if %12 {
      %c0_10 = arith.constant 0 : index
      %c0_11 = arith.constant 0 : index
      %13 = vector.load %arg10[%c0_10, %c0_11] : memref<16x32xf32, #tpu.memory_space<vmem>>, vector<16x32xf32>
      %c0_12 = arith.constant 0 : index
      %c0_13 = arith.constant 0 : index
      %14 = vector.load %arg5[%c0_12, %c0_13] : memref<1x32xf32, #tpu.memory_space<vmem>>, vector<1x32xf32>
      %15 = vector.broadcast %14 : vector<1x32xf32> to vector<16x32xf32>
      %16 = arith.addf %13, %15 : vector<16x32xf32>
      %c0_14 = arith.constant 0 : index
      %c0_15 = arith.constant 0 : index
      %17 = vector.load %arg6[%c0_14, %c0_15] : memref<16x32xf32, #tpu.memory_space<vmem>>, vector<16x32xf32>
      %18 = arith.addf %16, %17 : vector<16x32xf32>
      %cst_16 = arith.constant dense<0.000000e+00> : vector<16xf32>
      %19 = vector.multi_reduction <add>, %18, %cst_16 [1] : vector<16x32xf32> to vector<16xf32>
      %20 = vector.shape_cast %19 : vector<16xf32> to vector<16x1xf32>
      %cst_17 = arith.constant 3.200000e+01 : f32
      %21 = vector.broadcast %cst_17 : f32 to vector<16x1xf32>
      %22 = arith.divf %20, %21 : vector<16x1xf32>
      %23 = vector.broadcast %22 : vector<16x1xf32> to vector<16x32xf32>
      %24 = arith.subf %18, %23 : vector<16x32xf32>
      %25 = arith.mulf %24, %24 : vector<16x32xf32>
      %cst_18 = arith.constant dense<0.000000e+00> : vector<16xf32>
      %26 = vector.multi_reduction <add>, %25, %cst_18 [1] : vector<16x32xf32> to vector<16xf32>
      %27 = vector.shape_cast %26 : vector<16xf32> to vector<16x1xf32>
      %cst_19 = arith.constant 3.200000e+01 : f32
      %28 = vector.broadcast %cst_19 : f32 to vector<16x1xf32>
      %29 = arith.divf %27, %28 : vector<16x1xf32>
      %30 = vector.broadcast %22 : vector<16x1xf32> to vector<16x32xf32>
      %31 = arith.subf %18, %30 : vector<16x32xf32>
      %cst_20 = arith.constant 9.99999996E-13 : f32
      %32 = vector.broadcast %cst_20 : f32 to vector<16x1xf32>
      %33 = arith.addf %29, %32 : vector<16x1xf32>
      %34 = math.rsqrt %33 : vector<16x1xf32>
      %35 = vector.broadcast %34 : vector<16x1xf32> to vector<16x32xf32>
      %36 = arith.mulf %31, %35 : vector<16x32xf32>
      %c0_21 = arith.constant 0 : index
      %c0_22 = arith.constant 0 : index
      %37 = vector.load %arg7[%c0_21, %c0_22] : memref<1x32xf32, #tpu.memory_space<vmem>>, vector<1x32xf32>
      %38 = vector.broadcast %37 : vector<1x32xf32> to vector<16x32xf32>
      %39 = arith.mulf %36, %38 : vector<16x32xf32>
      %c0_23 = arith.constant 0 : index
      %c0_24 = arith.constant 0 : index
      %40 = vector.load %arg8[%c0_23, %c0_24] : memref<1x32xf32, #tpu.memory_space<vmem>>, vector<1x32xf32>
      %41 = vector.broadcast %40 : vector<1x32xf32> to vector<16x32xf32>
      %42 = arith.addf %39, %41 : vector<16x32xf32>
      %c0_25 = arith.constant 0 : index
      %c0_26 = arith.constant 0 : index
      %43 = vector.load %arg9[%c0_25, %c0_26] : memref<16x32xf32, #tpu.memory_space<vmem>>, vector<16x32xf32>
      tpu.vector_store %arg9[%c0_25, %c0_26], %42 {strides = array<i32>} : memref<16x32xf32, #tpu.memory_space<vmem>>, vector<16x32xf32>,
    } else {
    }
    return
  }
  func.func @transform_0(%arg0: i32, %arg1: i32, %arg2: i32) -> (i32, i32) {
    %c0_i32 = arith.constant 0 : i32
    return %arg0, %arg2 : i32, i32
  }
  func.func @transform_1(%arg0: i32, %arg1: i32, %arg2: i32) -> (i32, i32) {
    %c0_i32 = arith.constant 0 : i32
    return %arg2, %arg1 : i32, i32
  }
  func.func @transform_2(%arg0: i32, %arg1: i32, %arg2: i32) -> (i32, i32) {
    %c0_i32 = arith.constant 0 : i32
    %c0_i32_0 = arith.constant 0 : i32
    return %c0_i32, %arg1 : i32, i32
  }
  func.func @transform_3(%arg0: i32, %arg1: i32, %arg2: i32) -> (i32, i32) {
    %c0_i32 = arith.constant 0 : i32
    return %arg0, %arg1 : i32, i32
  }
  func.func @transform_4(%arg0: i32, %arg1: i32, %arg2: i32) -> (i32, i32) {
    %c0_i32 = arith.constant 0 : i32
    %c0_i32_0 = arith.constant 0 : i32
    return %c0_i32, %arg1 : i32, i32
  }
  func.func @transform_5(%arg0: i32, %arg1: i32, %arg2: i32) -> (i32, i32) {
    %c0_i32 = arith.constant 0 : i32
    %c0_i32_0 = arith.constant 0 : i32
    return %c0_i32, %arg1 : i32, i32
  }
  func.func @transform_6(%arg0: i32, %arg1: i32, %arg2: i32) -> (i32, i32) {
    %c0_i32 = arith.constant 0 : i32
    return %arg0, %arg1 : i32, i32
  }
}

module attributes {stable_mosaic.version = 11 : i64} {
  func.func @_linear_kernel(%arg0: i32, %arg1: i32, %arg2: i32, %arg3: memref<16x32xf32, #tpu.memory_space<vmem>>, %arg4: memref<32x64xbf16, #tpu.memory_space<vmem>>, %arg5: memref<1x64xf32, #tpu.memory_space<vmem>>, %arg6: memref<16x64xf32, #tpu.memory_space<vmem>>, %arg7: memref<16x64xf32, #tpu.memory_space<vmem>>) attributes {dimension_semantics = [#tpu.dimension_semantics<parallel>, #tpu.dimension_semantics<parallel>, #tpu.dimension_semantics<arbitrary>], iteration_bounds = array<i64: 1, 1, 1>, scalar_prefetch = 0 : i64, scratch_operands = 1 : i64, tpu.core_type = #tpu.core_type<tc>, window_params = [{transform_indices = @transform_0, window_bounds = array<i64: 16, 32>}, {transform_indices = @transform_1, window_bounds = array<i64: 32, 64>}, {transform_indices = @transform_2, window_bounds = array<i64: 1, 64>}, {transform_indices = @transform_3, window_bounds = array<i64: 16, 64>}]} {
    %c0_i32 = arith.constant 0 : i32
    %0 = arith.cmpi eq, %arg2, %c0_i32 : i32
    %1 = arith.extui %0 : i1 to i32
    %c0_i32_0 = arith.constant 0 : i32
    %2 = arith.cmpi ne, %1, %c0_i32_0 : i32
    scf.if %2 {
      %cst_10 = arith.constant 0.000000e+00 : f32
      %13 = vector.broadcast %cst_10 : f32 to vector<16x64xf32>
      %c0_11 = arith.constant 0 : index
      %c0_12 = arith.constant 0 : index
      %14 = vector.load %arg7[%c0_11, %c0_12] : memref<16x64xf32, #tpu.memory_space<vmem>>, vector<16x64xf32>
      tpu.vector_store %arg7[%c0_11, %c0_12], %13 {strides = array<i32>} : memref<16x64xf32, #tpu.memory_space<vmem>>, vector<16x64xf32>,
    } else {
    }
    %c0 = arith.constant 0 : index
    %c0_1 = arith.constant 0 : index
    %3 = vector.load %arg7[%c0, %c0_1] : memref<16x64xf32, #tpu.memory_space<vmem>>, vector<16x64xf32>
    %c0_2 = arith.constant 0 : index
    %c0_3 = arith.constant 0 : index
    %4 = vector.load %arg3[%c0_2, %c0_3] : memref<16x32xf32, #tpu.memory_space<vmem>>, vector<16x32xf32>
    %5 = arith.truncf %4 : vector<16x32xf32> to vector<16x32xbf16>
    %c0_4 = arith.constant 0 : index
    %c0_5 = arith.constant 0 : index
    %6 = vector.load %arg4[%c0_4, %c0_5] : memref<32x64xbf16, #tpu.memory_space<vmem>>, vector<32x64xbf16>
    %cst = arith.constant dense<0.000000e+00> : vector<16x64xf32>
    %7 = tpu.matmul %5, %6, %cst {dimension_numbers = #tpu.dot_dimension_numbers<[1], [0], [0], [1], [0, 0, 1, 1], [], []>} : vector<16x32xbf16>, vector<32x64xbf16>, vector<16x64xf32> -> vector<16x64xf32>
    %8 = arith.addf %3, %7 : vector<16x64xf32>
    %c0_6 = arith.constant 0 : index
    %c0_7 = arith.constant 0 : index
    %9 = vector.load %arg7[%c0_6, %c0_7] : memref<16x64xf32, #tpu.memory_space<vmem>>, vector<16x64xf32>
    tpu.vector_store %arg7[%c0_6, %c0_7], %8 {strides = array<i32>} : memref<16x64xf32, #tpu.memory_space<vmem>>, vector<16x64xf32>,
    %c0_i32_8 = arith.constant 0 : i32
    %10 = arith.cmpi eq, %arg2, %c0_i32_8 : i32
    %11 = arith.extui %10 : i1 to i32
    %c0_i32_9 = arith.constant 0 : i32
    %12 = arith.cmpi ne, %11, %c0_i32_9 : i32
    scf.if %12 {
      %c0_10 = arith.constant 0 : index
      %c0_11 = arith.constant 0 : index
      %13 = vector.load %arg7[%c0_10, %c0_11] : memref<16x64xf32, #tpu.memory_space<vmem>>, vector<16x64xf32>
      %c0_12 = arith.constant 0 : index
      %c0_13 = arith.constant 0 : index
      %14 = vector.load %arg5[%c0_12, %c0_13] : memref<1x64xf32, #tpu.memory_space<vmem>>, vector<1x64xf32>
      %15 = vector.broadcast %14 : vector<1x64xf32> to vector<16x64xf32>
      %16 = arith.addf %13, %15 : vector<16x64xf32>
      %cst_14 = arith.constant 5.000000e-01 : f32
      %17 = vector.broadcast %cst_14 : f32 to vector<16x64xf32>
      %18 = arith.mulf %16, %17 : vector<16x64xf32>
      %cst_15 = arith.constant 0.707106769 : f32
      %19 = vector.broadcast %cst_15 : f32 to vector<16x64xf32>
      %20 = arith.mulf %16, %19 : vector<16x64xf32>
      %21 = math.erf %20 : vector<16x64xf32>
      %cst_16 = arith.constant 1.000000e+00 : f32
      %22 = vector.broadcast %cst_16 : f32 to vector<16x64xf32>
      %23 = arith.addf %22, %21 : vector<16x64xf32>
      %24 = arith.mulf %18, %23 : vector<16x64xf32>
      %c0_17 = arith.constant 0 : index
      %c0_18 = arith.constant 0 : index
      %25 = vector.load %arg6[%c0_17, %c0_18] : memref<16x64xf32, #tpu.memory_space<vmem>>, vector<16x64xf32>
      tpu.vector_store %arg6[%c0_17, %c0_18], %24 {strides = array<i32>} : memref<16x64xf32, #tpu.memory_space<vmem>>, vector<16x64xf32>,
    } else {
    }
    return
  }
  func.func @transform_0(%arg0: i32, %arg1: i32, %arg2: i32) -> (i32, i32) {
    %c0_i32 = arith.constant 0 : i32
    return %arg0, %arg2 : i32, i32
  }
  func.func @transform_1(%arg0: i32, %arg1: i32, %arg2: i32) -> (i32, i32) {
    %c0_i32 = arith.constant 0 : i32
    return %arg2, %arg1 : i32, i32
  }
  func.func @transform_2(%arg0: i32, %arg1: i32, %arg2: i32) -> (i32, i32) {
    %c0_i32 = arith.constant 0 : i32
    %c0_i32_0 = arith.constant 0 : i32
    return %c0_i32, %arg1 : i32, i32
  }
  func.func @transform_3(%arg0: i32, %arg1: i32, %arg2: i32) -> (i32, i32) {
    %c0_i32 = arith.constant 0 : i32
    return %arg0, %arg1 : i32, i32
  }
}

module attributes {stable_mosaic.version = 11 : i64} {
  func.func @_linear_kernel(%arg0: i32, %arg1: i32, %arg2: i32, %arg3: memref<16x64xf32, #tpu.memory_space<vmem>>, %arg4: memref<64x32xbf16, #tpu.memory_space<vmem>>, %arg5: memref<1x32xf32, #tpu.memory_space<vmem>>, %arg6: memref<16x32xf32, #tpu.memory_space<vmem>>, %arg7: memref<1x32xf32, #tpu.memory_space<vmem>>, %arg8: memref<1x32xf32, #tpu.memory_space<vmem>>, %arg9: memref<16x32xf32, #tpu.memory_space<vmem>>, %arg10: memref<16x32xf32, #tpu.memory_space<vmem>>) attributes {dimension_semantics = [#tpu.dimension_semantics<parallel>, #tpu.dimension_semantics<parallel>, #tpu.dimension_semantics<arbitrary>], iteration_bounds = array<i64: 1, 1, 1>, scalar_prefetch = 0 : i64, scratch_operands = 1 : i64, tpu.core_type = #tpu.core_type<tc>, window_params = [{transform_indices = @transform_0, window_bounds = array<i64: 16, 64>}, {transform_indices = @transform_1, window_bounds = array<i64: 64, 32>}, {transform_indices = @transform_2, window_bounds = array<i64: 1, 32>}, {transform_indices = @transform_3, window_bounds = array<i64: 16, 32>}, {transform_indices = @transform_4, window_bounds = array<i64: 1, 32>}, {transform_indices = @transform_5, window_bounds = array<i64: 1, 32>}, {transform_indices = @transform_6, window_bounds = array<i64: 16, 32>}]} {
    %c0_i32 = arith.constant 0 : i32
    %0 = arith.cmpi eq, %arg2, %c0_i32 : i32
    %1 = arith.extui %0 : i1 to i32
    %c0_i32_0 = arith.constant 0 : i32
    %2 = arith.cmpi ne, %1, %c0_i32_0 : i32
    scf.if %2 {
      %cst_10 = arith.constant 0.000000e+00 : f32
      %13 = vector.broadcast %cst_10 : f32 to vector<16x32xf32>
      %c0_11 = arith.constant 0 : index
      %c0_12 = arith.constant 0 : index
      %14 = vector.load %arg10[%c0_11, %c0_12] : memref<16x32xf32, #tpu.memory_space<vmem>>, vector<16x32xf32>
      tpu.vector_store %arg10[%c0_11, %c0_12], %13 {strides = array<i32>} : memref<16x32xf32, #tpu.memory_space<vmem>>, vector<16x32xf32>,
    } else {
    }
    %c0 = arith.constant 0 : index
    %c0_1 = arith.constant 0 : index
    %3 = vector.load %arg10[%c0, %c0_1] : memref<16x32xf32, #tpu.memory_space<vmem>>, vector<16x32xf32>
    %c0_2 = arith.constant 0 : index
    %c0_3 = arith.constant 0 : index
    %4 = vector.load %arg3[%c0_2, %c0_3] : memref<16x64xf32, #tpu.memory_space<vmem>>, vector<16x64xf32>
    %5 = arith.truncf %4 : vector<16x64xf32> to vector<16x64xbf16>
    %c0_4 = arith.constant 0 : index
    %c0_5 = arith.constant 0 : index
    %6 = vector.load %arg4[%c0_4, %c0_5] : memref<64x32xbf16, #tpu.memory_space<vmem>>, vector<64x32xbf16>
    %cst = arith.constant dense<0.000000e+00> : vector<16x32xf32>
    %7 = tpu.matmul %5, %6, %cst {dimension_numbers = #tpu.dot_dimension_numbers<[1], [0], [0], [1], [0, 0, 1, 1], [], []>} : vector<16x64xbf16>, vector<64x32xbf16>, vector<16x32xf32> -> vector<16x32xf32>
    %8 = arith.addf %3, %7 : vector<16x32xf32>
    %c0_6 = arith.constant 0 : index
    %c0_7 = arith.constant 0 : index
    %9 = vector.load %arg10[%c0_6, %c0_7] : memref<16x32xf32, #tpu.memory_space<vmem>>, vector<16x32xf32>
    tpu.vector_store %arg10[%c0_6, %c0_7], %8 {strides = array<i32>} : memref<16x32xf32, #tpu.memory_space<vmem>>, vector<16x32xf32>,
    %c0_i32_8 = arith.constant 0 : i32
    %10 = arith.cmpi eq, %arg2, %c0_i32_8 : i32
    %11 = arith.extui %10 : i1 to i32
    %c0_i32_9 = arith.constant 0 : i32
    %12 = arith.cmpi ne, %11, %c0_i32_9 : i32
    scf.if %12 {
      %c0_10 = arith.constant 0 : index
      %c0_11 = arith.constant 0 : index
      %13 = vector.load %arg10[%c0_10, %c0_11] : memref<16x32xf32, #tpu.memory_space<vmem>>, vector<16x32xf32>
      %c0_12 = arith.constant 0 : index
      %c0_13 = arith.constant 0 : index
      %14 = vector.load %arg5[%c0_12, %c0_13] : memref<1x32xf32, #tpu.memory_space<vmem>>, vector<1x32xf32>
      %15 = vector.broadcast %14 : vector<1x32xf32> to vector<16x32xf32>
      %16 = arith.addf %13, %15 : vector<16x32xf32>
      %c0_14 = arith.constant 0 : index
      %c0_15 = arith.constant 0 : index
      %17 = vector.load %arg6[%c0_14, %c0_15] : memref<16x32xf32, #tpu.memory_space<vmem>>, vector<16x32xf32>
      %18 = arith.addf %16, %17 : vector<16x32xf32>
      %cst_16 = arith.constant dense<0.000000e+00> : vector<16xf32>
      %19 = vector.multi_reduction <add>, %18, %cst_16 [1] : vector<16x32xf32> to vector<16xf32>
      %20 = vector.shape_cast %19 : vector<16xf32> to vector<16x1xf32>
      %cst_17 = arith.constant 3.200000e+01 : f32
      %21 = vector.broadcast %cst_17 : f32 to vector<16x1xf32>
      %22 = arith.divf %20, %21 : vector<16x1xf32>
      %23 = vector.broadcast %22 : vector<16x1xf32> to vector<16x32xf32>
      %24 = arith.subf %18, %23 : vector<16x32xf32>
      %25 = arith.mulf %24, %24 : vector<16x32xf32>
      %cst_18 = arith.constant dense<0.000000e+00> : vector<16xf32>
      %26 = vector.multi_reduction <add>, %25, %cst_18 [1] : vector<16x32xf32> to vector<16xf32>
      %27 = vector.shape_cast %26 : vector<16xf32> to vector<16x1xf32>
      %cst_19 = arith.constant 3.200000e+01 : f32
      %28 = vector.broadcast %cst_19 : f32 to vector<16x1xf32>
      %29 = arith.divf %27, %28 : vector<16x1xf32>
      %30 = vector.broadcast %22 : vector<16x1xf32> to vector<16x32xf32>
      %31 = arith.subf %18, %30 : vector<16x32xf32>
      %cst_20 = arith.constant 9.99999996E-13 : f32
      %32 = vector.broadcast %cst_20 : f32 to vector<16x1xf32>
      %33 = arith.addf %29, %32 : vector<16x1xf32>
      %34 = math.rsqrt %33 : vector<16x1xf32>
      %35 = vector.broadcast %34 : vector<16x1xf32> to vector<16x32xf32>
      %36 = arith.mulf %31, %35 : vector<16x32xf32>
      %c0_21 = arith.constant 0 : index
      %c0_22 = arith.constant 0 : index
      %37 = vector.load %arg7[%c0_21, %c0_22] : memref<1x32xf32, #tpu.memory_space<vmem>>, vector<1x32xf32>
      %38 = vector.broadcast %37 : vector<1x32xf32> to vector<16x32xf32>
      %39 = arith.mulf %36, %38 : vector<16x32xf32>
      %c0_23 = arith.constant 0 : index
      %c0_24 = arith.constant 0 : index
      %40 = vector.load %arg8[%c0_23, %c0_24] : memref<1x32xf32, #tpu.memory_space<vmem>>, vector<1x32xf32>
      %41 = vector.broadcast %40 : vector<1x32xf32> to vector<16x32xf32>
      %42 = arith.addf %39, %41 : vector<16x32xf32>
      %c0_25 = arith.constant 0 : index
      %c0_26 = arith.constant 0 : index
      %43 = vector.load %arg9[%c0_25, %c0_26] : memref<16x32xf32, #tpu.memory_space<vmem>>, vector<16x32xf32>
      tpu.vector_store %arg9[%c0_25, %c0_26], %42 {strides = array<i32>} : memref<16x32xf32, #tpu.memory_space<vmem>>, vector<16x32xf32>,
    } else {
    }
    return
  }
  func.func @transform_0(%arg0: i32, %arg1: i32, %arg2: i32) -> (i32, i32) {
    %c0_i32 = arith.constant 0 : i32
    return %arg0, %arg2 : i32, i32
  }
  func.func @transform_1(%arg0: i32, %arg1: i32, %arg2: i32) -> (i32, i32) {
    %c0_i32 = arith.constant 0 : i32
    return %arg2, %arg1 : i32, i32
  }
  func.func @transform_2(%arg0: i32, %arg1: i32, %arg2: i32) -> (i32, i32) {
    %c0_i32 = arith.constant 0 : i32
    %c0_i32_0 = arith.constant 0 : i32
    return %c0_i32, %arg1 : i32, i32
  }
  func.func @transform_3(%arg0: i32, %arg1: i32, %arg2: i32) -> (i32, i32) {
    %c0_i32 = arith.constant 0 : i32
    return %arg0, %arg1 : i32, i32
  }
  func.func @transform_4(%arg0: i32, %arg1: i32, %arg2: i32) -> (i32, i32) {
    %c0_i32 = arith.constant 0 : i32
    %c0_i32_0 = arith.constant 0 : i32
    return %c0_i32, %arg1 : i32, i32
  }
  func.func @transform_5(%arg0: i32, %arg1: i32, %arg2: i32) -> (i32, i32) {
    %c0_i32 = arith.constant 0 : i32
    %c0_i32_0 = arith.constant 0 : i32
    return %c0_i32, %arg1 : i32, i32
  }
  func.func @transform_6(%arg0: i32, %arg1: i32, %arg2: i32) -> (i32, i32) {
    %c0_i32 = arith.constant 0 : i32
    return %arg0, %arg1 : i32, i32
  }
}

module attributes {stable_mosaic.version = 11 : i64} {
  func.func @_linear_kernel(%arg0: i32, %arg1: i32, %arg2: i32, %arg3: memref<16x32xf32, #tpu.memory_space<vmem>>, %arg4: memref<32x16xbf16, #tpu.memory_space<vmem>>, %arg5: memref<1x16xf32, #tpu.memory_space<vmem>>, %arg6: memref<16x16xf32, #tpu.memory_space<vmem>>, %arg7: memref<16x16xf32, #tpu.memory_space<vmem>>, %arg8: memref<16x16xf32, #tpu.memory_space<vmem>>) attributes {dimension_semantics = [#tpu.dimension_semantics<parallel>, #tpu.dimension_semantics<parallel>, #tpu.dimension_semantics<arbitrary>], iteration_bounds = array<i64: 1, 1, 1>, scalar_prefetch = 0 : i64, scratch_operands = 1 : i64, tpu.core_type = #tpu.core_type<tc>, window_params = [{transform_indices = @transform_0, window_bounds = array<i64: 16, 32>}, {transform_indices = @transform_1, window_bounds = array<i64: 32, 16>}, {transform_indices = @transform_2, window_bounds = array<i64: 1, 16>}, {transform_indices = @transform_3, window_bounds = array<i64: 16, 16>}, {transform_indices = @transform_4, window_bounds = array<i64: 16, 16>}]} {
    %c0_i32 = arith.constant 0 : i32
    %0 = arith.cmpi eq, %arg2, %c0_i32 : i32
    %1 = arith.extui %0 : i1 to i32
    %c0_i32_0 = arith.constant 0 : i32
    %2 = arith.cmpi ne, %1, %c0_i32_0 : i32
    scf.if %2 {
      %cst_10 = arith.constant 0.000000e+00 : f32
      %13 = vector.broadcast %cst_10 : f32 to vector<16x16xf32>
      %c0_11 = arith.constant 0 : index
      %c0_12 = arith.constant 0 : index
      %14 = vector.load %arg8[%c0_11, %c0_12] : memref<16x16xf32, #tpu.memory_space<vmem>>, vector<16x16xf32>
      tpu.vector_store %arg8[%c0_11, %c0_12], %13 {strides = array<i32>} : memref<16x16xf32, #tpu.memory_space<vmem>>, vector<16x16xf32>,
    } else {
    }
    %c0 = arith.constant 0 : index
    %c0_1 = arith.constant 0 : index
    %3 = vector.load %arg8[%c0, %c0_1] : memref<16x16xf32, #tpu.memory_space<vmem>>, vector<16x16xf32>
    %c0_2 = arith.constant 0 : index
    %c0_3 = arith.constant 0 : index
    %4 = vector.load %arg3[%c0_2, %c0_3] : memref<16x32xf32, #tpu.memory_space<vmem>>, vector<16x32xf32>
    %5 = arith.truncf %4 : vector<16x32xf32> to vector<16x32xbf16>
    %c0_4 = arith.constant 0 : index
    %c0_5 = arith.constant 0 : index
    %6 = vector.load %arg4[%c0_4, %c0_5] : memref<32x16xbf16, #tpu.memory_space<vmem>>, vector<32x16xbf16>
    %cst = arith.constant dense<0.000000e+00> : vector<16x16xf32>
    %7 = tpu.matmul %5, %6, %cst {dimension_numbers = #tpu.dot_dimension_numbers<[1], [0], [0], [1], [0, 0, 1, 1], [], []>} : vector<16x32xbf16>, vector<32x16xbf16>, vector<16x16xf32> -> vector<16x16xf32>
    %8 = arith.addf %3, %7 : vector<16x16xf32>
    %c0_6 = arith.constant 0 : index
    %c0_7 = arith.constant 0 : index
    %9 = vector.load %arg8[%c0_6, %c0_7] : memref<16x16xf32, #tpu.memory_space<vmem>>, vector<16x16xf32>
    tpu.vector_store %arg8[%c0_6, %c0_7], %8 {strides = array<i32>} : memref<16x16xf32, #tpu.memory_space<vmem>>, vector<16x16xf32>,
    %c0_i32_8 = arith.constant 0 : i32
    %10 = arith.cmpi eq, %arg2, %c0_i32_8 : i32
    %11 = arith.extui %10 : i1 to i32
    %c0_i32_9 = arith.constant 0 : i32
    %12 = arith.cmpi ne, %11, %c0_i32_9 : i32
    scf.if %12 {
      %c0_10 = arith.constant 0 : index
      %c0_11 = arith.constant 0 : index
      %13 = vector.load %arg8[%c0_10, %c0_11] : memref<16x16xf32, #tpu.memory_space<vmem>>, vector<16x16xf32>
      %c0_12 = arith.constant 0 : index
      %c0_13 = arith.constant 0 : index
      %14 = vector.load %arg5[%c0_12, %c0_13] : memref<1x16xf32, #tpu.memory_space<vmem>>, vector<1x16xf32>
      %15 = vector.broadcast %14 : vector<1x16xf32> to vector<16x16xf32>
      %16 = arith.addf %13, %15 : vector<16x16xf32>
      %c0_14 = arith.constant 0 : index
      %c0_15 = arith.constant 0 : index
      %17 = vector.load %arg6[%c0_14, %c0_15] : memref<16x16xf32, #tpu.memory_space<vmem>>, vector<16x16xf32>
      %18 = arith.addf %16, %17 : vector<16x16xf32>
      %c0_16 = arith.constant 0 : index
      %c0_17 = arith.constant 0 : index
      %19 = vector.load %arg7[%c0_16, %c0_17] : memref<16x16xf32, #tpu.memory_space<vmem>>, vector<16x16xf32>
      tpu.vector_store %arg7[%c0_16, %c0_17], %18 {strides = array<i32>} : memref<16x16xf32, #tpu.memory_space<vmem>>, vector<16x16xf32>,
    } else {
    }
    return
  }
  func.func @transform_0(%arg0: i32, %arg1: i32, %arg2: i32) -> (i32, i32) {
    %c0_i32 = arith.constant 0 : i32
    return %arg0, %arg2 : i32, i32
  }
  func.func @transform_1(%arg0: i32, %arg1: i32, %arg2: i32) -> (i32, i32) {
    %c0_i32 = arith.constant 0 : i32
    return %arg2, %arg1 : i32, i32
  }
  func.func @transform_2(%arg0: i32, %arg1: i32, %arg2: i32) -> (i32, i32) {
    %c0_i32 = arith.constant 0 : i32
    %c0_i32_0 = arith.constant 0 : i32
    return %c0_i32, %arg1 : i32, i32
  }
  func.func @transform_3(%arg0: i32, %arg1: i32, %arg2: i32) -> (i32, i32) {
    %c0_i32 = arith.constant 0 : i32
    return %arg0, %arg1 : i32, i32
  }
  func.func @transform_4(%arg0: i32, %arg1: i32, %arg2: i32) -> (i32, i32) {
    %c0_i32 = arith.constant 0 : i32
    return %arg0, %arg1 : i32, i32
  }
}

module attributes {stable_mosaic.version = 11 : i64} {
  func.func @_linear_kernel(%arg0: i32, %arg1: i32, %arg2: i32, %arg3: memref<16x16xf32, #tpu.memory_space<vmem>>, %arg4: memref<16x48xbf16, #tpu.memory_space<vmem>>, %arg5: memref<1x48xf32, #tpu.memory_space<vmem>>, %arg6: memref<16x48xf32, #tpu.memory_space<vmem>>, %arg7: memref<16x48xf32, #tpu.memory_space<vmem>>) attributes {dimension_semantics = [#tpu.dimension_semantics<parallel>, #tpu.dimension_semantics<parallel>, #tpu.dimension_semantics<arbitrary>], iteration_bounds = array<i64: 1, 1, 1>, scalar_prefetch = 0 : i64, scratch_operands = 1 : i64, tpu.core_type = #tpu.core_type<tc>, window_params = [{transform_indices = @transform_0, window_bounds = array<i64: 16, 16>}, {transform_indices = @transform_1, window_bounds = array<i64: 16, 48>}, {transform_indices = @transform_2, window_bounds = array<i64: 1, 48>}, {transform_indices = @transform_3, window_bounds = array<i64: 16, 48>}]} {
    %c0_i32 = arith.constant 0 : i32
    %0 = arith.cmpi eq, %arg2, %c0_i32 : i32
    %1 = arith.extui %0 : i1 to i32
    %c0_i32_0 = arith.constant 0 : i32
    %2 = arith.cmpi ne, %1, %c0_i32_0 : i32
    scf.if %2 {
      %cst_10 = arith.constant 0.000000e+00 : f32
      %13 = vector.broadcast %cst_10 : f32 to vector<16x48xf32>
      %c0_11 = arith.constant 0 : index
      %c0_12 = arith.constant 0 : index
      %14 = vector.load %arg7[%c0_11, %c0_12] : memref<16x48xf32, #tpu.memory_space<vmem>>, vector<16x48xf32>
      tpu.vector_store %arg7[%c0_11, %c0_12], %13 {strides = array<i32>} : memref<16x48xf32, #tpu.memory_space<vmem>>, vector<16x48xf32>,
    } else {
    }
    %c0 = arith.constant 0 : index
    %c0_1 = arith.constant 0 : index
    %3 = vector.load %arg7[%c0, %c0_1] : memref<16x48xf32, #tpu.memory_space<vmem>>, vector<16x48xf32>
    %c0_2 = arith.constant 0 : index
    %c0_3 = arith.constant 0 : index
    %4 = vector.load %arg3[%c0_2, %c0_3] : memref<16x16xf32, #tpu.memory_space<vmem>>, vector<16x16xf32>
    %5 = arith.truncf %4 : vector<16x16xf32> to vector<16x16xbf16>
    %c0_4 = arith.constant 0 : index
    %c0_5 = arith.constant 0 : index
    %6 = vector.load %arg4[%c0_4, %c0_5] : memref<16x48xbf16, #tpu.memory_space<vmem>>, vector<16x48xbf16>
    %cst = arith.constant dense<0.000000e+00> : vector<16x48xf32>
    %7 = tpu.matmul %5, %6, %cst {dimension_numbers = #tpu.dot_dimension_numbers<[1], [0], [0], [1], [0, 0, 1, 1], [], []>} : vector<16x16xbf16>, vector<16x48xbf16>, vector<16x48xf32> -> vector<16x48xf32>
    %8 = arith.addf %3, %7 : vector<16x48xf32>
    %c0_6 = arith.constant 0 : index
    %c0_7 = arith.constant 0 : index
    %9 = vector.load %arg7[%c0_6, %c0_7] : memref<16x48xf32, #tpu.memory_space<vmem>>, vector<16x48xf32>
    tpu.vector_store %arg7[%c0_6, %c0_7], %8 {strides = array<i32>} : memref<16x48xf32, #tpu.memory_space<vmem>>, vector<16x48xf32>,
    %c0_i32_8 = arith.constant 0 : i32
    %10 = arith.cmpi eq, %arg2, %c0_i32_8 : i32
    %11 = arith.extui %10 : i1 to i32
    %c0_i32_9 = arith.constant 0 : i32
    %12 = arith.cmpi ne, %11, %c0_i32_9 : i32
    scf.if %12 {
      %c0_10 = arith.constant 0 : index
      %c0_11 = arith.constant 0 : index
      %13 = vector.load %arg7[%c0_10, %c0_11] : memref<16x48xf32, #tpu.memory_space<vmem>>, vector<16x48xf32>
      %c0_12 = arith.constant 0 : index
      %c0_13 = arith.constant 0 : index
      %14 = vector.load %arg5[%c0_12, %c0_13] : memref<1x48xf32, #tpu.memory_space<vmem>>, vector<1x48xf32>
      %15 = vector.broadcast %14 : vector<1x48xf32> to vector<16x48xf32>
      %16 = arith.addf %13, %15 : vector<16x48xf32>
      %c0_14 = arith.constant 0 : index
      %c0_15 = arith.constant 0 : index
      %17 = vector.load %arg6[%c0_14, %c0_15] : memref<16x48xf32, #tpu.memory_space<vmem>>, vector<16x48xf32>
      tpu.vector_store %arg6[%c0_14, %c0_15], %16 {strides = array<i32>} : memref<16x48xf32, #tpu.memory_space<vmem>>, vector<16x48xf32>,
    } else {
    }
    return
  }
  func.func @transform_0(%arg0: i32, %arg1: i32, %arg2: i32) -> (i32, i32) {
    %c0_i32 = arith.constant 0 : i32
    return %arg0, %arg2 : i32, i32
  }
  func.func @transform_1(%arg0: i32, %arg1: i32, %arg2: i32) -> (i32, i32) {
    %c0_i32 = arith.constant 0 : i32
    return %arg2, %arg1 : i32, i32
  }
  func.func @transform_2(%arg0: i32, %arg1: i32, %arg2: i32) -> (i32, i32) {
    %c0_i32 = arith.constant 0 : i32
    %c0_i32_0 = arith.constant 0 : i32
    return %c0_i32, %arg1 : i32, i32
  }
  func.func @transform_3(%arg0: i32, %arg1: i32, %arg2: i32) -> (i32, i32) {
    %c0_i32 = arith.constant 0 : i32
    return %arg0, %arg1 : i32, i32
  }
}

module attributes {stable_mosaic.version = 11 : i64} {
  func.func @_attention_kernel(%arg0: i32, %arg1: i32, %arg2: memref<1x1x8x4xf32, #tpu.memory_space<vmem>>, %arg3: memref<1x1x8x4xf32, #tpu.memory_space<vmem>>, %arg4: memref<1x1x8x4xf32, #tpu.memory_space<vmem>>, %arg5: memref<1x1x8x4xf32, #tpu.memory_space<vmem>>) attributes {dimension_semantics = [#tpu.dimension_semantics<parallel>, #tpu.dimension_semantics<parallel>], iteration_bounds = array<i64: 2, 4>, scalar_prefetch = 0 : i64, scratch_operands = 0 : i64, tpu.core_type = #tpu.core_type<tc>, window_params = [{transform_indices = @transform_0, window_bounds = array<i64: 1, 1, 8, 4>}, {transform_indices = @transform_1, window_bounds = array<i64: 1, 1, 8, 4>}, {transform_indices = @transform_2, window_bounds = array<i64: 1, 1, 8, 4>}, {transform_indices = @transform_3, window_bounds = array<i64: 1, 1, 8, 4>}]} {
    %c0 = arith.constant 0 : index
    %c0_0 = arith.constant 0 : index
    %c0_1 = arith.constant 0 : index
    %c0_2 = arith.constant 0 : index
    %0 = vector.load %arg2[%c0, %c0_0, %c0_1, %c0_2] : memref<1x1x8x4xf32, #tpu.memory_space<vmem>>, vector<1x1x8x4xf32>
    %1 = vector.shape_cast %0 : vector<1x1x8x4xf32> to vector<8x4xf32>
    %2 = arith.truncf %1 : vector<8x4xf32> to vector<8x4xbf16>
    %c0_3 = arith.constant 0 : index
    %c0_4 = arith.constant 0 : index
    %c0_5 = arith.constant 0 : index
    %c0_6 = arith.constant 0 : index
    %3 = vector.load %arg3[%c0_3, %c0_4, %c0_5, %c0_6] : memref<1x1x8x4xf32, #tpu.memory_space<vmem>>, vector<1x1x8x4xf32>
    %4 = vector.shape_cast %3 : vector<1x1x8x4xf32> to vector<8x4xf32>
    %5 = arith.truncf %4 : vector<8x4xf32> to vector<8x4xbf16>
    %c0_7 = arith.constant 0 : index
    %c0_8 = arith.constant 0 : index
    %c0_9 = arith.constant 0 : index
    %c0_10 = arith.constant 0 : index
    %6 = vector.load %arg4[%c0_7, %c0_8, %c0_9, %c0_10] : memref<1x1x8x4xf32, #tpu.memory_space<vmem>>, vector<1x1x8x4xf32>
    %7 = vector.shape_cast %6 : vector<1x1x8x4xf32> to vector<8x4xf32>
    %8 = arith.truncf %7 : vector<8x4xf32> to vector<8x4xbf16>
    %cst = arith.constant dense<0.000000e+00> : vector<8x8xf32>
    %9 = tpu.matmul %2, %5, %cst {dimension_numbers = #tpu.dot_dimension_numbers<[1], [1], [0], [0], [0, 0, 1, 0], [], []>} : vector<8x4xbf16>, vector<8x4xbf16>, vector<8x8xf32> -> vector<8x8xf32>
    %cst_11 = arith.constant 5.000000e-01 : f32
    %10 = vector.broadcast %cst_11 : f32 to vector<8x8xf32>
    %11 = arith.mulf %9, %10 : vector<8x8xf32>
    %cst_12 = arith.constant dense<0xFF800000> : vector<8xf32>
    %12 = vector.multi_reduction <maximumf>, %11, %cst_12 [1] : vector<8x8xf32> to vector<8xf32>
    %13 = vector.shape_cast %12 : vector<8xf32> to vector<8x1xf32>
    %14 = vector.broadcast %13 : vector<8x1xf32> to vector<8x8xf32>
    %15 = arith.subf %11, %14 : vector<8x8xf32>
    %16 = math.exp %15 : vector<8x8xf32>
    %cst_13 = arith.constant dense<0.000000e+00> : vector<8xf32>
    %17 = vector.multi_reduction <add>, %16, %cst_13 [1] : vector<8x8xf32> to vector<8xf32>
    %18 = vector.shape_cast %17 : vector<8xf32> to vector<8x1xf32>
    %19 = tpu.reciprocal %18 {approx = true} : vector<8x1xf32> -> vector<8x1xf32>
    %20 = vector.broadcast %19 : vector<8x1xf32> to vector<8x8xf32>
    %21 = arith.mulf %16, %20 : vector<8x8xf32>
    %22 = arith.truncf %21 : vector<8x8xf32> to vector<8x8xbf16>
    %cst_14 = arith.constant dense<0.000000e+00> : vector<8x4xf32>
    %23 = tpu.matmul %22, %8, %cst_14 {dimension_numbers = #tpu.dot_dimension_numbers<[1], [0], [0], [1], [0, 0, 1, 1], [], []>} : vector<8x8xbf16>, vector<8x4xbf16>, vector<8x4xf32> -> vector<8x4xf32>
    %c0_15 = arith.constant 0 : index
    %c0_16 = arith.constant 0 : index
    %c0_17 = arith.constant 0 : index
    %c0_18 = arith.constant 0 : index
    %24 = vector.load %arg5[%c0_15, %c0_16, %c0_17, %c0_18] : memref<1x1x8x4xf32, #tpu.memory_space<vmem>>, vector<1x1x8x4xf32>
    %25 = vector.shape_cast %24 : vector<1x1x8x4xf32> to vector<8x4xf32>
    %26 = vector.shape_cast %23 : vector<8x4xf32> to vector<1x1x8x4xf32>
    tpu.vector_store %arg5[%c0_15, %c0_16, %c0_17, %c0_18], %26 {strides = array<i32>} : memref<1x1x8x4xf32, #tpu.memory_space<vmem>>, vector<1x1x8x4xf32>,
    return
  }
  func.func @transform_0(%arg0: i32, %arg1: i32) -> (i32, i32, i32, i32) {
    %c0_i32 = arith.constant 0 : i32
    %c0_i32_0 = arith.constant 0 : i32
    %c0_i32_1 = arith.constant 0 : i32
    return %arg0, %arg1, %c0_i32, %c0_i32_0 : i32, i32, i32, i32
  }
  func.func @transform_1(%arg0: i32, %arg1: i32) -> (i32, i32, i32, i32) {
    %c0_i32 = arith.constant 0 : i32
    %c0_i32_0 = arith.constant 0 : i32
    %c0_i32_1 = arith.constant 0 : i32
    return %arg0, %arg1, %c0_i32, %c0_i32_0 : i32, i32, i32, i32
  }
  func.func @transform_2(%arg0: i32, %arg1: i32) -> (i32, i32, i32, i32) {
    %c0_i32 = arith.constant 0 : i32
    %c0_i32_0 = arith.constant 0 : i32
    %c0_i32_1 = arith.constant 0 : i32
    return %arg0, %arg1, %c0_i32, %c0_i32_0 : i32, i32, i32, i32
  }
  func.func @transform_3(%arg0: i32, %arg1: i32) -> (i32, i32, i32, i32) {
    %c0_i32 = arith.constant 0 : i32
    %c0_i32_0 = arith.constant 0 : i32
    %c0_i32_1 = arith.constant 0 : i32
    return %arg0, %arg1, %c0_i32, %c0_i32_0 : i32, i32, i32, i32
  }
}

module attributes {stable_mosaic.version = 11 : i64} {
  func.func @_linear_kernel(%arg0: i32, %arg1: i32, %arg2: i32, %arg3: memref<16x16xf32, #tpu.memory_space<vmem>>, %arg4: memref<16x16xbf16, #tpu.memory_space<vmem>>, %arg5: memref<1x16xf32, #tpu.memory_space<vmem>>, %arg6: memref<16x16xf32, #tpu.memory_space<vmem>>, %arg7: memref<1x16xf32, #tpu.memory_space<vmem>>, %arg8: memref<1x16xf32, #tpu.memory_space<vmem>>, %arg9: memref<16x16xf32, #tpu.memory_space<vmem>>, %arg10: memref<16x16xf32, #tpu.memory_space<vmem>>) attributes {dimension_semantics = [#tpu.dimension_semantics<parallel>, #tpu.dimension_semantics<parallel>, #tpu.dimension_semantics<arbitrary>], iteration_bounds = array<i64: 1, 1, 1>, scalar_prefetch = 0 : i64, scratch_operands = 1 : i64, tpu.core_type = #tpu.core_type<tc>, window_params = [{transform_indices = @transform_0, window_bounds = array<i64: 16, 16>}, {transform_indices = @transform_1, window_bounds = array<i64: 16, 16>}, {transform_indices = @transform_2, window_bounds = array<i64: 1, 16>}, {transform_indices = @transform_3, window_bounds = array<i64: 16, 16>}, {transform_indices = @transform_4, window_bounds = array<i64: 1, 16>}, {transform_indices = @transform_5, window_bounds = array<i64: 1, 16>}, {transform_indices = @transform_6, window_bounds = array<i64: 16, 16>}]} {
    %c0_i32 = arith.constant 0 : i32
    %0 = arith.cmpi eq, %arg2, %c0_i32 : i32
    %1 = arith.extui %0 : i1 to i32
    %c0_i32_0 = arith.constant 0 : i32
    %2 = arith.cmpi ne, %1, %c0_i32_0 : i32
    scf.if %2 {
      %cst_10 = arith.constant 0.000000e+00 : f32
      %13 = vector.broadcast %cst_10 : f32 to vector<16x16xf32>
      %c0_11 = arith.constant 0 : index
      %c0_12 = arith.constant 0 : index
      %14 = vector.load %arg10[%c0_11, %c0_12] : memref<16x16xf32, #tpu.memory_space<vmem>>, vector<16x16xf32>
      tpu.vector_store %arg10[%c0_11, %c0_12], %13 {strides = array<i32>} : memref<16x16xf32, #tpu.memory_space<vmem>>, vector<16x16xf32>,
    } else {
    }
    %c0 = arith.constant 0 : index
    %c0_1 = arith.constant 0 : index
    %3 = vector.load %arg10[%c0, %c0_1] : memref<16x16xf32, #tpu.memory_space<vmem>>, vector<16x16xf32>
    %c0_2 = arith.constant 0 : index
    %c0_3 = arith.constant 0 : index
    %4 = vector.load %arg3[%c0_2, %c0_3] : memref<16x16xf32, #tpu.memory_space<vmem>>, vector<16x16xf32>
    %5 = arith.truncf %4 : vector<16x16xf32> to vector<16x16xbf16>
    %c0_4 = arith.constant 0 : index
    %c0_5 = arith.constant 0 : index
    %6 = vector.load %arg4[%c0_4, %c0_5] : memref<16x16xbf16, #tpu.memory_space<vmem>>, vector<16x16xbf16>
    %cst = arith.constant dense<0.000000e+00> : vector<16x16xf32>
    %7 = tpu.matmul %5, %6, %cst {dimension_numbers = #tpu.dot_dimension_numbers<[1], [0], [0], [1], [0, 0, 1, 1], [], []>} : vector<16x16xbf16>, vector<16x16xbf16>, vector<16x16xf32> -> vector<16x16xf32>
    %8 = arith.addf %3, %7 : vector<16x16xf32>
    %c0_6 = arith.constant 0 : index
    %c0_7 = arith.constant 0 : index
    %9 = vector.load %arg10[%c0_6, %c0_7] : memref<16x16xf32, #tpu.memory_space<vmem>>, vector<16x16xf32>
    tpu.vector_store %arg10[%c0_6, %c0_7], %8 {strides = array<i32>} : memref<16x16xf32, #tpu.memory_space<vmem>>, vector<16x16xf32>,
    %c0_i32_8 = arith.constant 0 : i32
    %10 = arith.cmpi eq, %arg2, %c0_i32_8 : i32
    %11 = arith.extui %10 : i1 to i32
    %c0_i32_9 = arith.constant 0 : i32
    %12 = arith.cmpi ne, %11, %c0_i32_9 : i32
    scf.if %12 {
      %c0_10 = arith.constant 0 : index
      %c0_11 = arith.constant 0 : index
      %13 = vector.load %arg10[%c0_10, %c0_11] : memref<16x16xf32, #tpu.memory_space<vmem>>, vector<16x16xf32>
      %c0_12 = arith.constant 0 : index
      %c0_13 = arith.constant 0 : index
      %14 = vector.load %arg5[%c0_12, %c0_13] : memref<1x16xf32, #tpu.memory_space<vmem>>, vector<1x16xf32>
      %15 = vector.broadcast %14 : vector<1x16xf32> to vector<16x16xf32>
      %16 = arith.addf %13, %15 : vector<16x16xf32>
      %c0_14 = arith.constant 0 : index
      %c0_15 = arith.constant 0 : index
      %17 = vector.load %arg6[%c0_14, %c0_15] : memref<16x16xf32, #tpu.memory_space<vmem>>, vector<16x16xf32>
      %18 = arith.addf %16, %17 : vector<16x16xf32>
      %cst_16 = arith.constant dense<0.000000e+00> : vector<16xf32>
      %19 = vector.multi_reduction <add>, %18, %cst_16 [1] : vector<16x16xf32> to vector<16xf32>
      %20 = vector.shape_cast %19 : vector<16xf32> to vector<16x1xf32>
      %cst_17 = arith.constant 1.600000e+01 : f32
      %21 = vector.broadcast %cst_17 : f32 to vector<16x1xf32>
      %22 = arith.divf %20, %21 : vector<16x1xf32>
      %23 = vector.broadcast %22 : vector<16x1xf32> to vector<16x16xf32>
      %24 = arith.subf %18, %23 : vector<16x16xf32>
      %25 = arith.mulf %24, %24 : vector<16x16xf32>
      %cst_18 = arith.constant dense<0.000000e+00> : vector<16xf32>
      %26 = vector.multi_reduction <add>, %25, %cst_18 [1] : vector<16x16xf32> to vector<16xf32>
      %27 = vector.shape_cast %26 : vector<16xf32> to vector<16x1xf32>
      %cst_19 = arith.constant 1.600000e+01 : f32
      %28 = vector.broadcast %cst_19 : f32 to vector<16x1xf32>
      %29 = arith.divf %27, %28 : vector<16x1xf32>
      %30 = vector.broadcast %22 : vector<16x1xf32> to vector<16x16xf32>
      %31 = arith.subf %18, %30 : vector<16x16xf32>
      %cst_20 = arith.constant 9.99999996E-13 : f32
      %32 = vector.broadcast %cst_20 : f32 to vector<16x1xf32>
      %33 = arith.addf %29, %32 : vector<16x1xf32>
      %34 = math.rsqrt %33 : vector<16x1xf32>
      %35 = vector.broadcast %34 : vector<16x1xf32> to vector<16x16xf32>
      %36 = arith.mulf %31, %35 : vector<16x16xf32>
      %c0_21 = arith.constant 0 : index
      %c0_22 = arith.constant 0 : index
      %37 = vector.load %arg7[%c0_21, %c0_22] : memref<1x16xf32, #tpu.memory_space<vmem>>, vector<1x16xf32>
      %38 = vector.broadcast %37 : vector<1x16xf32> to vector<16x16xf32>
      %39 = arith.mulf %36, %38 : vector<16x16xf32>
      %c0_23 = arith.constant 0 : index
      %c0_24 = arith.constant 0 : index
      %40 = vector.load %arg8[%c0_23, %c0_24] : memref<1x16xf32, #tpu.memory_space<vmem>>, vector<1x16xf32>
      %41 = vector.broadcast %40 : vector<1x16xf32> to vector<16x16xf32>
      %42 = arith.addf %39, %41 : vector<16x16xf32>
      %c0_25 = arith.constant 0 : index
      %c0_26 = arith.constant 0 : index
      %43 = vector.load %arg9[%c0_25, %c0_26] : memref<16x16xf32, #tpu.memory_space<vmem>>, vector<16x16xf32>
      tpu.vector_store %arg9[%c0_25, %c0_26], %42 {strides = array<i32>} : memref<16x16xf32, #tpu.memory_space<vmem>>, vector<16x16xf32>,
    } else {
    }
    return
  }
  func.func @transform_0(%arg0: i32, %arg1: i32, %arg2: i32) -> (i32, i32) {
    %c0_i32 = arith.constant 0 : i32
    return %arg0, %arg2 : i32, i32
  }
  func.func @transform_1(%arg0: i32, %arg1: i32, %arg2: i32) -> (i32, i32) {
    %c0_i32 = arith.constant 0 : i32
    return %arg2, %arg1 : i32, i32
  }
  func.func @transform_2(%arg0: i32, %arg1: i32, %arg2: i32) -> (i32, i32) {
    %c0_i32 = arith.constant 0 : i32
    %c0_i32_0 = arith.constant 0 : i32
    return %c0_i32, %arg1 : i32, i32
  }
  func.func @transform_3(%arg0: i32, %arg1: i32, %arg2: i32) -> (i32, i32) {
    %c0_i32 = arith.constant 0 : i32
    return %arg0, %arg1 : i32, i32
  }
  func.func @transform_4(%arg0: i32, %arg1: i32, %arg2: i32) -> (i32, i32) {
    %c0_i32 = arith.constant 0 : i32
    %c0_i32_0 = arith.constant 0 : i32
    return %c0_i32, %arg1 : i32, i32
  }
  func.func @transform_5(%arg0: i32, %arg1: i32, %arg2: i32) -> (i32, i32) {
    %c0_i32 = arith.constant 0 : i32
    %c0_i32_0 = arith.constant 0 : i32
    return %c0_i32, %arg1 : i32, i32
  }
  func.func @transform_6(%arg0: i32, %arg1: i32, %arg2: i32) -> (i32, i32) {
    %c0_i32 = arith.constant 0 : i32
    return %arg0, %arg1 : i32, i32
  }
}

module attributes {stable_mosaic.version = 11 : i64} {
  func.func @_linear_kernel(%arg0: i32, %arg1: i32, %arg2: i32, %arg3: memref<16x16xf32, #tpu.memory_space<vmem>>, %arg4: memref<16x32xbf16, #tpu.memory_space<vmem>>, %arg5: memref<1x32xf32, #tpu.memory_space<vmem>>, %arg6: memref<16x32xf32, #tpu.memory_space<vmem>>, %arg7: memref<16x32xf32, #tpu.memory_space<vmem>>) attributes {dimension_semantics = [#tpu.dimension_semantics<parallel>, #tpu.dimension_semantics<parallel>, #tpu.dimension_semantics<arbitrary>], iteration_bounds = array<i64: 1, 1, 1>, scalar_prefetch = 0 : i64, scratch_operands = 1 : i64, tpu.core_type = #tpu.core_type<tc>, window_params = [{transform_indices = @transform_0, window_bounds = array<i64: 16, 16>}, {transform_indices = @transform_1, window_bounds = array<i64: 16, 32>}, {transform_indices = @transform_2, window_bounds = array<i64: 1, 32>}, {transform_indices = @transform_3, window_bounds = array<i64: 16, 32>}]} {
    %c0_i32 = arith.constant 0 : i32
    %0 = arith.cmpi eq, %arg2, %c0_i32 : i32
    %1 = arith.extui %0 : i1 to i32
    %c0_i32_0 = arith.constant 0 : i32
    %2 = arith.cmpi ne, %1, %c0_i32_0 : i32
    scf.if %2 {
      %cst_10 = arith.constant 0.000000e+00 : f32
      %13 = vector.broadcast %cst_10 : f32 to vector<16x32xf32>
      %c0_11 = arith.constant 0 : index
      %c0_12 = arith.constant 0 : index
      %14 = vector.load %arg7[%c0_11, %c0_12] : memref<16x32xf32, #tpu.memory_space<vmem>>, vector<16x32xf32>
      tpu.vector_store %arg7[%c0_11, %c0_12], %13 {strides = array<i32>} : memref<16x32xf32, #tpu.memory_space<vmem>>, vector<16x32xf32>,
    } else {
    }
    %c0 = arith.constant 0 : index
    %c0_1 = arith.constant 0 : index
    %3 = vector.load %arg7[%c0, %c0_1] : memref<16x32xf32, #tpu.memory_space<vmem>>, vector<16x32xf32>
    %c0_2 = arith.constant 0 : index
    %c0_3 = arith.constant 0 : index
    %4 = vector.load %arg3[%c0_2, %c0_3] : memref<16x16xf32, #tpu.memory_space<vmem>>, vector<16x16xf32>
    %5 = arith.truncf %4 : vector<16x16xf32> to vector<16x16xbf16>
    %c0_4 = arith.constant 0 : index
    %c0_5 = arith.constant 0 : index
    %6 = vector.load %arg4[%c0_4, %c0_5] : memref<16x32xbf16, #tpu.memory_space<vmem>>, vector<16x32xbf16>
    %cst = arith.constant dense<0.000000e+00> : vector<16x32xf32>
    %7 = tpu.matmul %5, %6, %cst {dimension_numbers = #tpu.dot_dimension_numbers<[1], [0], [0], [1], [0, 0, 1, 1], [], []>} : vector<16x16xbf16>, vector<16x32xbf16>, vector<16x32xf32> -> vector<16x32xf32>
    %8 = arith.addf %3, %7 : vector<16x32xf32>
    %c0_6 = arith.constant 0 : index
    %c0_7 = arith.constant 0 : index
    %9 = vector.load %arg7[%c0_6, %c0_7] : memref<16x32xf32, #tpu.memory_space<vmem>>, vector<16x32xf32>
    tpu.vector_store %arg7[%c0_6, %c0_7], %8 {strides = array<i32>} : memref<16x32xf32, #tpu.memory_space<vmem>>, vector<16x32xf32>,
    %c0_i32_8 = arith.constant 0 : i32
    %10 = arith.cmpi eq, %arg2, %c0_i32_8 : i32
    %11 = arith.extui %10 : i1 to i32
    %c0_i32_9 = arith.constant 0 : i32
    %12 = arith.cmpi ne, %11, %c0_i32_9 : i32
    scf.if %12 {
      %c0_10 = arith.constant 0 : index
      %c0_11 = arith.constant 0 : index
      %13 = vector.load %arg7[%c0_10, %c0_11] : memref<16x32xf32, #tpu.memory_space<vmem>>, vector<16x32xf32>
      %c0_12 = arith.constant 0 : index
      %c0_13 = arith.constant 0 : index
      %14 = vector.load %arg5[%c0_12, %c0_13] : memref<1x32xf32, #tpu.memory_space<vmem>>, vector<1x32xf32>
      %15 = vector.broadcast %14 : vector<1x32xf32> to vector<16x32xf32>
      %16 = arith.addf %13, %15 : vector<16x32xf32>
      %cst_14 = arith.constant 5.000000e-01 : f32
      %17 = vector.broadcast %cst_14 : f32 to vector<16x32xf32>
      %18 = arith.mulf %16, %17 : vector<16x32xf32>
      %cst_15 = arith.constant 0.707106769 : f32
      %19 = vector.broadcast %cst_15 : f32 to vector<16x32xf32>
      %20 = arith.mulf %16, %19 : vector<16x32xf32>
      %21 = math.erf %20 : vector<16x32xf32>
      %cst_16 = arith.constant 1.000000e+00 : f32
      %22 = vector.broadcast %cst_16 : f32 to vector<16x32xf32>
      %23 = arith.addf %22, %21 : vector<16x32xf32>
      %24 = arith.mulf %18, %23 : vector<16x32xf32>
      %c0_17 = arith.constant 0 : index
      %c0_18 = arith.constant 0 : index
      %25 = vector.load %arg6[%c0_17, %c0_18] : memref<16x32xf32, #tpu.memory_space<vmem>>, vector<16x32xf32>
      tpu.vector_store %arg6[%c0_17, %c0_18], %24 {strides = array<i32>} : memref<16x32xf32, #tpu.memory_space<vmem>>, vector<16x32xf32>,
    } else {
    }
    return
  }
  func.func @transform_0(%arg0: i32, %arg1: i32, %arg2: i32) -> (i32, i32) {
    %c0_i32 = arith.constant 0 : i32
    return %arg0, %arg2 : i32, i32
  }
  func.func @transform_1(%arg0: i32, %arg1: i32, %arg2: i32) -> (i32, i32) {
    %c0_i32 = arith.constant 0 : i32
    return %arg2, %arg1 : i32, i32
  }
  func.func @transform_2(%arg0: i32, %arg1: i32, %arg2: i32) -> (i32, i32) {
    %c0_i32 = arith.constant 0 : i32
    %c0_i32_0 = arith.constant 0 : i32
    return %c0_i32, %arg1 : i32, i32
  }
  func.func @transform_3(%arg0: i32, %arg1: i32, %arg2: i32) -> (i32, i32) {
    %c0_i32 = arith.constant 0 : i32
    return %arg0, %arg1 : i32, i32
  }
}

module attributes {stable_mosaic.version = 11 : i64} {
  func.func @_linear_kernel(%arg0: i32, %arg1: i32, %arg2: i32, %arg3: memref<16x32xf32, #tpu.memory_space<vmem>>, %arg4: memref<32x16xbf16, #tpu.memory_space<vmem>>, %arg5: memref<1x16xf32, #tpu.memory_space<vmem>>, %arg6: memref<16x16xf32, #tpu.memory_space<vmem>>, %arg7: memref<1x16xf32, #tpu.memory_space<vmem>>, %arg8: memref<1x16xf32, #tpu.memory_space<vmem>>, %arg9: memref<16x16xf32, #tpu.memory_space<vmem>>, %arg10: memref<16x16xf32, #tpu.memory_space<vmem>>) attributes {dimension_semantics = [#tpu.dimension_semantics<parallel>, #tpu.dimension_semantics<parallel>, #tpu.dimension_semantics<arbitrary>], iteration_bounds = array<i64: 1, 1, 1>, scalar_prefetch = 0 : i64, scratch_operands = 1 : i64, tpu.core_type = #tpu.core_type<tc>, window_params = [{transform_indices = @transform_0, window_bounds = array<i64: 16, 32>}, {transform_indices = @transform_1, window_bounds = array<i64: 32, 16>}, {transform_indices = @transform_2, window_bounds = array<i64: 1, 16>}, {transform_indices = @transform_3, window_bounds = array<i64: 16, 16>}, {transform_indices = @transform_4, window_bounds = array<i64: 1, 16>}, {transform_indices = @transform_5, window_bounds = array<i64: 1, 16>}, {transform_indices = @transform_6, window_bounds = array<i64: 16, 16>}]} {
    %c0_i32 = arith.constant 0 : i32
    %0 = arith.cmpi eq, %arg2, %c0_i32 : i32
    %1 = arith.extui %0 : i1 to i32
    %c0_i32_0 = arith.constant 0 : i32
    %2 = arith.cmpi ne, %1, %c0_i32_0 : i32
    scf.if %2 {
      %cst_10 = arith.constant 0.000000e+00 : f32
      %13 = vector.broadcast %cst_10 : f32 to vector<16x16xf32>
      %c0_11 = arith.constant 0 : index
      %c0_12 = arith.constant 0 : index
      %14 = vector.load %arg10[%c0_11, %c0_12] : memref<16x16xf32, #tpu.memory_space<vmem>>, vector<16x16xf32>
      tpu.vector_store %arg10[%c0_11, %c0_12], %13 {strides = array<i32>} : memref<16x16xf32, #tpu.memory_space<vmem>>, vector<16x16xf32>,
    } else {
    }
    %c0 = arith.constant 0 : index
    %c0_1 = arith.constant 0 : index
    %3 = vector.load %arg10[%c0, %c0_1] : memref<16x16xf32, #tpu.memory_space<vmem>>, vector<16x16xf32>
    %c0_2 = arith.constant 0 : index
    %c0_3 = arith.constant 0 : index
    %4 = vector.load %arg3[%c0_2, %c0_3] : memref<16x32xf32, #tpu.memory_space<vmem>>, vector<16x32xf32>
    %5 = arith.truncf %4 : vector<16x32xf32> to vector<16x32xbf16>
    %c0_4 = arith.constant 0 : index
    %c0_5 = arith.constant 0 : index
    %6 = vector.load %arg4[%c0_4, %c0_5] : memref<32x16xbf16, #tpu.memory_space<vmem>>, vector<32x16xbf16>
    %cst = arith.constant dense<0.000000e+00> : vector<16x16xf32>
    %7 = tpu.matmul %5, %6, %cst {dimension_numbers = #tpu.dot_dimension_numbers<[1], [0], [0], [1], [0, 0, 1, 1], [], []>} : vector<16x32xbf16>, vector<32x16xbf16>, vector<16x16xf32> -> vector<16x16xf32>
    %8 = arith.addf %3, %7 : vector<16x16xf32>
    %c0_6 = arith.constant 0 : index
    %c0_7 = arith.constant 0 : index
    %9 = vector.load %arg10[%c0_6, %c0_7] : memref<16x16xf32, #tpu.memory_space<vmem>>, vector<16x16xf32>
    tpu.vector_store %arg10[%c0_6, %c0_7], %8 {strides = array<i32>} : memref<16x16xf32, #tpu.memory_space<vmem>>, vector<16x16xf32>,
    %c0_i32_8 = arith.constant 0 : i32
    %10 = arith.cmpi eq, %arg2, %c0_i32_8 : i32
    %11 = arith.extui %10 : i1 to i32
    %c0_i32_9 = arith.constant 0 : i32
    %12 = arith.cmpi ne, %11, %c0_i32_9 : i32
    scf.if %12 {
      %c0_10 = arith.constant 0 : index
      %c0_11 = arith.constant 0 : index
      %13 = vector.load %arg10[%c0_10, %c0_11] : memref<16x16xf32, #tpu.memory_space<vmem>>, vector<16x16xf32>
      %c0_12 = arith.constant 0 : index
      %c0_13 = arith.constant 0 : index
      %14 = vector.load %arg5[%c0_12, %c0_13] : memref<1x16xf32, #tpu.memory_space<vmem>>, vector<1x16xf32>
      %15 = vector.broadcast %14 : vector<1x16xf32> to vector<16x16xf32>
      %16 = arith.addf %13, %15 : vector<16x16xf32>
      %c0_14 = arith.constant 0 : index
      %c0_15 = arith.constant 0 : index
      %17 = vector.load %arg6[%c0_14, %c0_15] : memref<16x16xf32, #tpu.memory_space<vmem>>, vector<16x16xf32>
      %18 = arith.addf %16, %17 : vector<16x16xf32>
      %cst_16 = arith.constant dense<0.000000e+00> : vector<16xf32>
      %19 = vector.multi_reduction <add>, %18, %cst_16 [1] : vector<16x16xf32> to vector<16xf32>
      %20 = vector.shape_cast %19 : vector<16xf32> to vector<16x1xf32>
      %cst_17 = arith.constant 1.600000e+01 : f32
      %21 = vector.broadcast %cst_17 : f32 to vector<16x1xf32>
      %22 = arith.divf %20, %21 : vector<16x1xf32>
      %23 = vector.broadcast %22 : vector<16x1xf32> to vector<16x16xf32>
      %24 = arith.subf %18, %23 : vector<16x16xf32>
      %25 = arith.mulf %24, %24 : vector<16x16xf32>
      %cst_18 = arith.constant dense<0.000000e+00> : vector<16xf32>
      %26 = vector.multi_reduction <add>, %25, %cst_18 [1] : vector<16x16xf32> to vector<16xf32>
      %27 = vector.shape_cast %26 : vector<16xf32> to vector<16x1xf32>
      %cst_19 = arith.constant 1.600000e+01 : f32
      %28 = vector.broadcast %cst_19 : f32 to vector<16x1xf32>
      %29 = arith.divf %27, %28 : vector<16x1xf32>
      %30 = vector.broadcast %22 : vector<16x1xf32> to vector<16x16xf32>
      %31 = arith.subf %18, %30 : vector<16x16xf32>
      %cst_20 = arith.constant 9.99999996E-13 : f32
      %32 = vector.broadcast %cst_20 : f32 to vector<16x1xf32>
      %33 = arith.addf %29, %32 : vector<16x1xf32>
      %34 = math.rsqrt %33 : vector<16x1xf32>
      %35 = vector.broadcast %34 : vector<16x1xf32> to vector<16x16xf32>
      %36 = arith.mulf %31, %35 : vector<16x16xf32>
      %c0_21 = arith.constant 0 : index
      %c0_22 = arith.constant 0 : index
      %37 = vector.load %arg7[%c0_21, %c0_22] : memref<1x16xf32, #tpu.memory_space<vmem>>, vector<1x16xf32>
      %38 = vector.broadcast %37 : vector<1x16xf32> to vector<16x16xf32>
      %39 = arith.mulf %36, %38 : vector<16x16xf32>
      %c0_23 = arith.constant 0 : index
      %c0_24 = arith.constant 0 : index
      %40 = vector.load %arg8[%c0_23, %c0_24] : memref<1x16xf32, #tpu.memory_space<vmem>>, vector<1x16xf32>
      %41 = vector.broadcast %40 : vector<1x16xf32> to vector<16x16xf32>
      %42 = arith.addf %39, %41 : vector<16x16xf32>
      %c0_25 = arith.constant 0 : index
      %c0_26 = arith.constant 0 : index
      %43 = vector.load %arg9[%c0_25, %c0_26] : memref<16x16xf32, #tpu.memory_space<vmem>>, vector<16x16xf32>
      tpu.vector_store %arg9[%c0_25, %c0_26], %42 {strides = array<i32>} : memref<16x16xf32, #tpu.memory_space<vmem>>, vector<16x16xf32>,
    } else {
    }
    return
  }
  func.func @transform_0(%arg0: i32, %arg1: i32, %arg2: i32) -> (i32, i32) {
    %c0_i32 = arith.constant 0 : i32
    return %arg0, %arg2 : i32, i32
  }
  func.func @transform_1(%arg0: i32, %arg1: i32, %arg2: i32) -> (i32, i32) {
    %c0_i32 = arith.constant 0 : i32
    return %arg2, %arg1 : i32, i32
  }
  func.func @transform_2(%arg0: i32, %arg1: i32, %arg2: i32) -> (i32, i32) {
    %c0_i32 = arith.constant 0 : i32
    %c0_i32_0 = arith.constant 0 : i32
    return %c0_i32, %arg1 : i32, i32
  }
  func.func @transform_3(%arg0: i32, %arg1: i32, %arg2: i32) -> (i32, i32) {
    %c0_i32 = arith.constant 0 : i32
    return %arg0, %arg1 : i32, i32
  }
  func.func @transform_4(%arg0: i32, %arg1: i32, %arg2: i32) -> (i32, i32) {
    %c0_i32 = arith.constant 0 : i32
    %c0_i32_0 = arith.constant 0 : i32
    return %c0_i32, %arg1 : i32, i32
  }
  func.func @transform_5(%arg0: i32, %arg1: i32, %arg2: i32) -> (i32, i32) {
    %c0_i32 = arith.constant 0 : i32
    %c0_i32_0 = arith.constant 0 : i32
    return %c0_i32, %arg1 : i32, i32
  }
  func.func @transform_6(%arg0: i32, %arg1: i32, %arg2: i32) -> (i32, i32) {
    %c0_i32 = arith.constant 0 : i32
    return %arg0, %arg1 : i32, i32
  }
}

module attributes {stable_mosaic.version = 11 : i64} {
  func.func @_linear_kernel(%arg0: i32, %arg1: i32, %arg2: i32, %arg3: memref<16x16xf32, #tpu.memory_space<vmem>>, %arg4: memref<16x32xbf16, #tpu.memory_space<vmem>>, %arg5: memref<1x32xf32, #tpu.memory_space<vmem>>, %arg6: memref<16x32xf32, #tpu.memory_space<vmem>>, %arg7: memref<16x32xf32, #tpu.memory_space<vmem>>, %arg8: memref<16x32xf32, #tpu.memory_space<vmem>>) attributes {dimension_semantics = [#tpu.dimension_semantics<parallel>, #tpu.dimension_semantics<parallel>, #tpu.dimension_semantics<arbitrary>], iteration_bounds = array<i64: 1, 1, 1>, scalar_prefetch = 0 : i64, scratch_operands = 1 : i64, tpu.core_type = #tpu.core_type<tc>, window_params = [{transform_indices = @transform_0, window_bounds = array<i64: 16, 16>}, {transform_indices = @transform_1, window_bounds = array<i64: 16, 32>}, {transform_indices = @transform_2, window_bounds = array<i64: 1, 32>}, {transform_indices = @transform_3, window_bounds = array<i64: 16, 32>}, {transform_indices = @transform_4, window_bounds = array<i64: 16, 32>}]} {
    %c0_i32 = arith.constant 0 : i32
    %0 = arith.cmpi eq, %arg2, %c0_i32 : i32
    %1 = arith.extui %0 : i1 to i32
    %c0_i32_0 = arith.constant 0 : i32
    %2 = arith.cmpi ne, %1, %c0_i32_0 : i32
    scf.if %2 {
      %cst_10 = arith.constant 0.000000e+00 : f32
      %13 = vector.broadcast %cst_10 : f32 to vector<16x32xf32>
      %c0_11 = arith.constant 0 : index
      %c0_12 = arith.constant 0 : index
      %14 = vector.load %arg8[%c0_11, %c0_12] : memref<16x32xf32, #tpu.memory_space<vmem>>, vector<16x32xf32>
      tpu.vector_store %arg8[%c0_11, %c0_12], %13 {strides = array<i32>} : memref<16x32xf32, #tpu.memory_space<vmem>>, vector<16x32xf32>,
    } else {
    }
    %c0 = arith.constant 0 : index
    %c0_1 = arith.constant 0 : index
    %3 = vector.load %arg8[%c0, %c0_1] : memref<16x32xf32, #tpu.memory_space<vmem>>, vector<16x32xf32>
    %c0_2 = arith.constant 0 : index
    %c0_3 = arith.constant 0 : index
    %4 = vector.load %arg3[%c0_2, %c0_3] : memref<16x16xf32, #tpu.memory_space<vmem>>, vector<16x16xf32>
    %5 = arith.truncf %4 : vector<16x16xf32> to vector<16x16xbf16>
    %c0_4 = arith.constant 0 : index
    %c0_5 = arith.constant 0 : index
    %6 = vector.load %arg4[%c0_4, %c0_5] : memref<16x32xbf16, #tpu.memory_space<vmem>>, vector<16x32xbf16>
    %cst = arith.constant dense<0.000000e+00> : vector<16x32xf32>
    %7 = tpu.matmul %5, %6, %cst {dimension_numbers = #tpu.dot_dimension_numbers<[1], [0], [0], [1], [0, 0, 1, 1], [], []>} : vector<16x16xbf16>, vector<16x32xbf16>, vector<16x32xf32> -> vector<16x32xf32>
    %8 = arith.addf %3, %7 : vector<16x32xf32>
    %c0_6 = arith.constant 0 : index
    %c0_7 = arith.constant 0 : index
    %9 = vector.load %arg8[%c0_6, %c0_7] : memref<16x32xf32, #tpu.memory_space<vmem>>, vector<16x32xf32>
    tpu.vector_store %arg8[%c0_6, %c0_7], %8 {strides = array<i32>} : memref<16x32xf32, #tpu.memory_space<vmem>>, vector<16x32xf32>,
    %c0_i32_8 = arith.constant 0 : i32
    %10 = arith.cmpi eq, %arg2, %c0_i32_8 : i32
    %11 = arith.extui %10 : i1 to i32
    %c0_i32_9 = arith.constant 0 : i32
    %12 = arith.cmpi ne, %11, %c0_i32_9 : i32
    scf.if %12 {
      %c0_10 = arith.constant 0 : index
      %c0_11 = arith.constant 0 : index
      %13 = vector.load %arg8[%c0_10, %c0_11] : memref<16x32xf32, #tpu.memory_space<vmem>>, vector<16x32xf32>
      %c0_12 = arith.constant 0 : index
      %c0_13 = arith.constant 0 : index
      %14 = vector.load %arg5[%c0_12, %c0_13] : memref<1x32xf32, #tpu.memory_space<vmem>>, vector<1x32xf32>
      %15 = vector.broadcast %14 : vector<1x32xf32> to vector<16x32xf32>
      %16 = arith.addf %13, %15 : vector<16x32xf32>
      %c0_14 = arith.constant 0 : index
      %c0_15 = arith.constant 0 : index
      %17 = vector.load %arg6[%c0_14, %c0_15] : memref<16x32xf32, #tpu.memory_space<vmem>>, vector<16x32xf32>
      %18 = arith.addf %16, %17 : vector<16x32xf32>
      %c0_16 = arith.constant 0 : index
      %c0_17 = arith.constant 0 : index
      %19 = vector.load %arg7[%c0_16, %c0_17] : memref<16x32xf32, #tpu.memory_space<vmem>>, vector<16x32xf32>
      tpu.vector_store %arg7[%c0_16, %c0_17], %18 {strides = array<i32>} : memref<16x32xf32, #tpu.memory_space<vmem>>, vector<16x32xf32>,
    } else {
    }
    return
  }
  func.func @transform_0(%arg0: i32, %arg1: i32, %arg2: i32) -> (i32, i32) {
    %c0_i32 = arith.constant 0 : i32
    return %arg0, %arg2 : i32, i32
  }
  func.func @transform_1(%arg0: i32, %arg1: i32, %arg2: i32) -> (i32, i32) {
    %c0_i32 = arith.constant 0 : i32
    return %arg2, %arg1 : i32, i32
  }
  func.func @transform_2(%arg0: i32, %arg1: i32, %arg2: i32) -> (i32, i32) {
    %c0_i32 = arith.constant 0 : i32
    %c0_i32_0 = arith.constant 0 : i32
    return %c0_i32, %arg1 : i32, i32
  }
  func.func @transform_3(%arg0: i32, %arg1: i32, %arg2: i32) -> (i32, i32) {
    %c0_i32 = arith.constant 0 : i32
    return %arg0, %arg1 : i32, i32
  }
  func.func @transform_4(%arg0: i32, %arg1: i32, %arg2: i32) -> (i32, i32) {
    %c0_i32 = arith.constant 0 : i32
    return %arg0, %arg1 : i32, i32
  }
}

</mosaic_0001>

<llo_original>
// kernel: stage_model_forward.23
$region0: #{stage_model_forward.23}
  #allocation0 [shape = 'u32[]', space=smem, size = 0x4, offset = 0x4, fixed_abs, tag = 'smem constant byte address 0x4 - core index']
  #allocation1 [shape = 'u32[144,128]{1,0:T(1,128)}', space=vmem, size = 0x12000, scoped, tag = 'internal scratch']
  #allocation2 [shape = 'f32[16,96]{1,0:T(8,128)}', space=vmem, size = 0x2000, scoped, tag = 'scratch operand']
  %s0 = inlined_call_operand.vmem [shape: f32[16,32], index: 0, kind: input, shape index: {}]
  %s1 = inlined_call_operand.vmem [shape: bf16[32,96], index: 1, kind: input, shape index: {}]
  %s2 = inlined_call_operand.vmem [shape: f32[1,96], index: 2, kind: input, shape index: {}]
  %s3 = inlined_call_operand.vmem [shape: f32[16,96], index: 3, kind: output, shape index: {}]
  %s4 = sld [smem:[#allocation0]]
  $region30: #{stage_model_forward.23} parent=0
    _
  %s6 = ssub.s32 1, %s4
  %s7 = scalar_select 0, %s6, %s4
  // Predicated region
  $region2: #{stage_model_forward.23} parent=0 // pred_check
    _
  $region3: #{stage_model_forward.23} parent=0 // pred_check_branch
    %9 = sbr.rel (0) target = $region5
  $region4: #{stage_model_forward.23} parent=0 // pred_region
    _
  $region5: #{stage_model_forward.23} parent=0 // pred_fallthru
    _
  // Predicated region
  $region6: #{stage_model_forward.23} parent=0 // pred_check
    _
  $region7: #{stage_model_forward.23} parent=0 // pred_check_branch
    %11 = sbr.rel (0) target = $region9
  $region8: #{stage_model_forward.23} parent=0 // pred_region
    _
  $region9: #{stage_model_forward.23} parent=0 // pred_fallthru
    _
  // Predicated region
  $region10: #{stage_model_forward.23} parent=0 // pred_check
    _
  $region11: #{stage_model_forward.23} parent=0 // pred_check_branch
    %13 = sbr.rel (0) target = $region13
  $region12: #{stage_model_forward.23} parent=0 // pred_region
    _
  $region13: #{stage_model_forward.23} parent=0 // pred_fallthru
    _
  %p15 = scmp.eq.s32.totalorder 0, 0
  // Predicated region
  $region14: #{stage_model_forward.23} parent=0 // pred_check
    %p16 = pneg %p15
  $region15: #{stage_model_forward.23} parent=0 // pred_check_branch
    %18 = sbr.rel (%p16) target = $region17
  $region16: #{stage_model_forward.23} parent=0 // pred_region
    %vm19 = vcmask 785408
    %20 = vst.msk [vmem:[#allocation2] sm:$0xff] %vm19, 0.0
    %21 = vst.msk [vmem:[#allocation2 + $0x8] sm:$0xff] %vm19, 0.0
  $region17: #{stage_model_forward.23} parent=0 // pred_fallthru
    _
  %v22 = vld [vmem:[#allocation2] sm:$0xff]
  %v23 = vld [vmem:[#allocation2 + $0x8] sm:$0xff]
  %v24 = vld [vmem:[%s0] sm:$0xff]
  %v25 = vld [vmem:[%s0 + $0x8] sm:$0xff]
  %v26 = vpack.c.bf16 %v25, %v24
  %v27 = vld [vmem:[%s1] sm:$0xf]
  %v28 = vld [vmem:[%s1 + $0x4] sm:$0xf]
  %v29 = vld [vmem:[%s1 + $0x8] sm:$0xf]
  %v30 = vld [vmem:[%s1 + $0xc] sm:$0xf]
  %v35 = vunpack.c.l.b16 %v27
  %v36 = vunpack.c.l.b16 %v28
  %v37 = vunpack.c.l.b16 %v29
  %v38 = vunpack.c.l.b16 %v30
  %v39 = vpack.c.b16 %v36, %v35
  %v40 = vpack.c.b16 %v38, %v37
  %vm43 = vcmask 261120
  %v45 = vsel %vm43, %v26, 0
  %47 = vmatprep.subr.bf16.mxu0 0
  %48 = vmatpush1.bf16.msra.mxu0 0
  %49 = vmatprep.subr.bf16.mxu0 0
  %50 = vmatpush1.bf16.msra.mxu0 0
  %51 = vmatprep.subr.bf16.mxu0 0
  %52 = vmatpush1.bf16.msra.mxu0 0
  %53 = vmatprep.subr.bf16.mxu0 0
  %54 = vmatpush1.bf16.msra.mxu0 0
  %55 = vmatprep.subr.bf16.mxu0 0
  %56 = vmatpush1.bf16.msra.mxu0 0
  %57 = vmatprep.subr.bf16.mxu0 0
  %58 = vmatpush1.bf16.msra.mxu0 0
  %59 = vmatprep.subr.bf16.mxu0 0
  %60 = vmatpush1.bf16.msra.mxu0 %v40
  %61 = vmatprep.subr.bf16.mxu0 0
  %62 = vmatpush1.bf16.msra.mxu0 %v39
  %63 = vmatprep.subr.bf16.mxu0 0
  %64 = vmatpush2.bf16.msra.mxu0 0
  %65 = vmatprep.subr.bf16.mxu0 0
  %66 = vmatpush2.bf16.msra.mxu0 0
  %67 = vmatprep.subr.bf16.mxu0 0
  %68 = vmatpush2.bf16.msra.mxu0 0
  %69 = vmatprep.subr.bf16.mxu0 0
  %70 = vmatpush2.bf16.msra.mxu0 0
  %71 = vmatprep.subr.bf16.mxu0 0
  %72 = vmatpush2.bf16.msra.mxu0 0
  %73 = vmatprep.subr.bf16.mxu0 0
  %74 = vmatpush2.bf16.msra.mxu0 0
  %75 = vmatprep.subr.bf16.mxu0 0
  %76 = vmatpush2.bf16.msra.mxu0 0
  %77 = vmatprep.subr.bf16.mxu0 0
  %78 = vmatpush2.bf16.msra.mxu0 0
  %79 = vmatprep.mubr.bf16.mxu0 0
  %80 = vmatmul.mubr.bf16.gmra.mxu0 %v45
  %v81 = vpop.f32.mrf.mxu0
  %v82 = vadd.f32 0.0, %v81
  %v83 = vpop.f32.mrf.mxu0
  %v84 = vpop.f32.mrf.mxu0
  %v85 = vadd.f32 0.0, %v84
  %v86 = vpop.f32.mrf.mxu0
  %87 = vdwg.mxu0
  %v88 = vadd.f32 %v22, %v82
  %v89 = vadd.f32 %v23, %v85
  %vm90 = vcmask 785408
  %91 = vst.msk [vmem:[#allocation2] sm:$0xff] %vm90, %v88
  %92 = vst.msk [vmem:[#allocation2 + $0x8] sm:$0xff] %vm90, %v89
  // Predicated region
  $region18: #{stage_model_forward.23} parent=0 // pred_check
    %p93 = pneg %p15
  $region19: #{stage_model_forward.23} parent=0 // pred_check_branch
    %95 = sbr.rel (%p93) target = $region21
  $region20: #{stage_model_forward.23} parent=0 // pred_region
    %v96 = vld [vmem:[#allocation2] sm:$0xff]
    %v97 = vld [vmem:[#allocation2 + $0x8] sm:$0xff]
    %v98 = vld [vmem:[%s2] sm:$0x1]
    %v100 = vlaneseq
    %v101 = vshrl.u32 %v100, 7
    %v102 = vsub.s32 0, %v101
    %v103 = vrot.slane %v98, %v102
    %v105 = vadd.f32 %v96, %v103
    %v106 = vadd.f32 %v97, %v103
    %107 = vst.msk [vmem:[%s3] sm:$0xff] %vm90, %v105
    %108 = vst.msk [vmem:[%s3 + $0x8] sm:$0xff] %vm90, %v106
  $region21: #{stage_model_forward.23} parent=0 // pred_fallthru
    _
  // Predicated region
  $region22: #{stage_model_forward.23} parent=0 // pred_check
    _
  $region23: #{stage_model_forward.23} parent=0 // pred_check_branch
    %110 = sbr.rel (0) target = $region25
  $region24: #{stage_model_forward.23} parent=0 // pred_region
    _
  $region25: #{stage_model_forward.23} parent=0 // pred_fallthru
    _
  // Predicated region
  $region26: #{stage_model_forward.23} parent=0 // pred_check
    _
  $region27: #{stage_model_forward.23} parent=0 // pred_check_branch
    %112 = sbr.rel (0) target = $region29
  $region28: #{stage_model_forward.23} parent=0 // pred_region
    _
  $region29: #{stage_model_forward.23} parent=0 // pred_fallthru
    _

// kernel: stage_model_forward.24
$region0: #{stage_model_forward.24}
  #allocation0 [shape = 'u32[]', space=smem, size = 0x4, offset = 0x4, fixed_abs, tag = 'smem constant byte address 0x4 - core index']
  #allocation1 [shape = 'u32[144,128]{1,0:T(1,128)}', space=vmem, size = 0x12000, scoped, tag = 'internal scratch']
  %s0 = inlined_call_operand.vmem [shape: f32[2,4,8,8], index: 0, kind: input, shape index: {}]
  %s1 = inlined_call_operand.vmem [shape: f32[2,4,8,8], index: 1, kind: input, shape index: {}]
  %s2 = inlined_call_operand.vmem [shape: f32[2,4,8,8], index: 2, kind: input, shape index: {}]
  %s3 = inlined_call_operand.vmem [shape: f32[2,4,8,8], index: 3, kind: output, shape index: {}]
  %s4 = sld [smem:[#allocation0]]
  $region45: #{stage_model_forward.24} parent=0
    _
  %s6 = ssub.s32 1, %s4
  %s7 = scalar_select 0, %s6, %s4
  loop: start=0, step=1, limit=10
  $region2: #{stage_model_forward.24} parent=0 // loop_pre_header
    _
  $region3: #{stage_model_forward.24} parent=0 // loop_header
    %s9 = sphi 0, %s13
    %p10 = scmp.ge.s32.totalorder %s9, 10
    %s16 = sphi 0, %s28
    %s17 = sphi 0, %s24
    %s18 = sphi 0, %s16
    %s19 = sphi 0, %s17
    %s20 = sphi 0, %s18
    %s21 = sphi 0, %s19
    %s33 = sphi 0, %s35
    %s36 = sphi 0, %s33
    %s37 = sphi 0, %s36
    %s53 = sphi 0, %s37
    %s61 = sphi 0, %s63
    %s64 = sphi 0, %s61
    %s65 = sphi 0, %s64
    %s81 = sphi 0, %s65
    %s89 = sphi 0, %s91
    %s92 = sphi 0, %s89
    %s93 = sphi 0, %s92
    %s109 = sphi 0, %s93
    %s117 = sphi 0, %s119
    %s120 = sphi 0, %s117
    %s121 = sphi 0, %s120
    %s137 = sphi 0, %s121
  $region4: #{stage_model_forward.24} parent=0 // loop_header_branch
    %12 = sbr.rel (%p10) target = $region8
  $region5: #{stage_model_forward.24} parent=0 // loop_body
    %s14 = ssub.s32 %s9, 1
    %s15 = ssub.s32 %s9, 2
    %s22 = sadd.s32 1, %s17
    %p23 = scmp.ge.s32.totalorder %s22, 4
    %s24 = scalar_select %p23, 0, %s22
    %s25 = sadd.s32 1, %s16
    %s26 = scalar_select %p23, %s25, %s16
    %p27 = scmp.ge.s32.totalorder %s26, 2
    %s28 = scalar_select %p27, 0, %s26
    %s29 = ssub.s32 %s16, %s28
    %s30 = ssub.s32 %s17, %s24
    %s31 = sor.u32 %s29, %s30
    %p32 = scmp.eq.s32.totalorder %s31, 0
    %s34 = sadd.s32 %s33, 1
    %s35 = scalar_select %p32, %s33, %s34
    %p38 = pneg %p32
    %p39 = scmp.eq.s32.totalorder %s9, 7
    %p40 = por %p38, %p39
    %p41 = scmp.ne.s32.totalorder %s33, %s36
    %p42 = scmp.eq.s32.totalorder %s9, 0
    %p43 = por %p41, %p42
    %p44 = scmp.ne.s32.totalorder %s33, %s36
    %p45 = scmp.eq.s32.totalorder %s14, 7
    %p46 = por %p44, %p45
    %p47 = scmp.ne.s32.totalorder %s36, %s37
    %p48 = scmp.eq.s32.totalorder %s14, 0
    %p49 = por %p47, %p48
    %p50 = scmp.ne.s32.totalorder %s36, %s37
    %p51 = scmp.eq.s32.totalorder %s15, 7
    %p52 = por %p50, %p51
    %p54 = scmp.ne.s32.totalorder %s37, %s53
    %p55 = scmp.eq.s32.totalorder %s15, 0
    %p56 = por %p54, %p55
    %s57 = ssub.s32 %s16, %s28
    %s58 = ssub.s32 %s17, %s24
    %s59 = sor.u32 %s57, %s58
    %p60 = scmp.eq.s32.totalorder %s59, 0
    %s62 = sadd.s32 %s61, 1
    %s63 = scalar_select %p60, %s61, %s62
    %p66 = pneg %p60
    %p67 = scmp.eq.s32.totalorder %s9, 7
    %p68 = por %p66, %p67
    %p69 = scmp.ne.s32.totalorder %s61, %s64
    %p70 = scmp.eq.s32.totalorder %s9, 0
    %p71 = por %p69, %p70
    %p72 = scmp.ne.s32.totalorder %s61, %s64
    %p73 = scmp.eq.s32.totalorder %s14, 7
    %p74 = por %p72, %p73
    %p75 = scmp.ne.s32.totalorder %s64, %s65
    %p76 = scmp.eq.s32.totalorder %s14, 0
    %p77 = por %p75, %p76
    %p78 = scmp.ne.s32.totalorder %s64, %s65
    %p79 = scmp.eq.s32.totalorder %s15, 7
    %p80 = por %p78, %p79
    %p82 = scmp.ne.s32.totalorder %s65, %s81
    %p83 = scmp.eq.s32.totalorder %s15, 0
    %p84 = por %p82, %p83
    %s85 = ssub.s32 %s16, %s28
    %s86 = ssub.s32 %s17, %s24
    %s87 = sor.u32 %s85, %s86
    %p88 = scmp.eq.s32.totalorder %s87, 0
    %s90 = sadd.s32 %s89, 1
    %s91 = scalar_select %p88, %s89, %s90
    %p94 = pneg %p88
    %p95 = scmp.eq.s32.totalorder %s9, 7
    %p96 = por %p94, %p95
    %p97 = scmp.ne.s32.totalorder %s89, %s92
    %p98 = scmp.eq.s32.totalorder %s9, 0
    %p99 = por %p97, %p98
    %p100 = scmp.ne.s32.totalorder %s89, %s92
    %p101 = scmp.eq.s32.totalorder %s14, 7
    %p102 = por %p100, %p101
    %p103 = scmp.ne.s32.totalorder %s92, %s93
    %p104 = scmp.eq.s32.totalorder %s14, 0
    %p105 = por %p103, %p104
    %p106 = scmp.ne.s32.totalorder %s92, %s93
    %p107 = scmp.eq.s32.totalorder %s15, 7
    %p108 = por %p106, %p107
    %p110 = scmp.ne.s32.totalorder %s93, %s109
    %p111 = scmp.eq.s32.totalorder %s15, 0
    %p112 = por %p110, %p111
    %s113 = ssub.s32 %s16, %s28
    %s114 = ssub.s32 %s17, %s24
    %s115 = sor.u32 %s113, %s114
    %p116 = scmp.eq.s32.totalorder %s115, 0
    %s118 = sadd.s32 %s117, 1
    %s119 = scalar_select %p116, %s117, %s118
    %p122 = pneg %p116
    %p123 = scmp.eq.s32.totalorder %s9, 7
    %p124 = por %p122, %p123
    %p125 = scmp.ne.s32.totalorder %s117, %s120
    %p126 = scmp.eq.s32.totalorder %s9, 0
    %p127 = por %p125, %p126
    %p128 = scmp.ne.s32.totalorder %s117, %s120
    %p129 = scmp.eq.s32.totalorder %s14, 7
    %p130 = por %p128, %p129
    %p131 = scmp.ne.s32.totalorder %s120, %s121
    %p132 = scmp.eq.s32.totalorder %s14, 0
    %p133 = por %p131, %p132
    %p134 = scmp.ne.s32.totalorder %s120, %s121
    %p135 = scmp.eq.s32.totalorder %s15, 7
    %p136 = por %p134, %p135
    %p138 = scmp.ne.s32.totalorder %s121, %s137
    %p139 = scmp.eq.s32.totalorder %s15, 0
    %p140 = por %p138, %p139
    %p141 = scmp.le.s32.totalorder 1, %s9
    %p142 = scmp.lt.s32.totalorder %s9, 9
    %p143 = pnand %p141, %p142
    %p144 = pneg %p143
    // Predicated region
    $region9: #{stage_model_forward.24} parent=5 // pred_check
      _
    $region10: #{stage_model_forward.24} parent=5 // pred_check_branch
      %146 = sbr.rel (%p143) target = $region12
    $region11: #{stage_model_forward.24} parent=5 // pred_region
      %s147 = ssub.s32 %s9, 1
    $region12: #{stage_model_forward.24} parent=5 // pred_fallthru
      _
    %p148 = scmp.lt.s32.totalorder %s9, 8
    // Predicated region
    $region13: #{stage_model_forward.24} parent=5 // pred_check
      %p149 = pneg %p148
    $region14: #{stage_model_forward.24} parent=5 // pred_check_branch
      %151 = sbr.rel (%p149) target = $region16
    $region15: #{stage_model_forward.24} parent=5 // pred_region
      // Predicated region
      $region17: #{stage_model_forward.24} parent=15 // pred_check
        %p152 = pneg %p43
      $region18: #{stage_model_forward.24} parent=15 // pred_check_branch
        %154 = sbr.rel (%p152) target = $region20
      $region19: #{stage_model_forward.24} parent=15 // pred_region
        %p155 = scmp.lt.s32.totalorder %s16, 1
        %s156 = scalar_select %p155, %s16, 1
        %p157 = scmp.lt.s32.totalorder %s17, 3
        %s158 = scalar_select %p157, %s17, 3
        %s159 = smul.addr %s156, 4
        %s160 = sadd.s32 %s158, %s159
        %s161 = smul.addr %s160, 8
        %s162 = scalar_lea.vmem %s0, %s161
      $region20: #{stage_model_forward.24} parent=15 // pred_fallthru
        _
      // Predicated region
      $region21: #{stage_model_forward.24} parent=15 // pred_check
        %p163 = pneg %p71
      $region22: #{stage_model_forward.24} parent=15 // pred_check_branch
        %165 = sbr.rel (%p163) target = $region24
      $region23: #{stage_model_forward.24} parent=15 // pred_region
        %p166 = scmp.lt.s32.totalorder %s16, 1
        %s167 = scalar_select %p166, %s16, 1
        %p168 = scmp.lt.s32.totalorder %s17, 3
        %s169 = scalar_select %p168, %s17, 3
        %s170 = smul.addr %s167, 4
        %s171 = sadd.s32 %s169, %s170
        %s172 = smul.addr %s171, 8
        %s173 = scalar_lea.vmem %s1, %s172
      $region24: #{stage_model_forward.24} parent=15 // pred_fallthru
        _
      // Predicated region
      $region25: #{stage_model_forward.24} parent=15 // pred_check
        %p174 = pneg %p99
      $region26: #{stage_model_forward.24} parent=15 // pred_check_branch
        %176 = sbr.rel (%p174) target = $region28
      $region27: #{stage_model_forward.24} parent=15 // pred_region
        %p177 = scmp.lt.s32.totalorder %s16, 1
        %s178 = scalar_select %p177, %s16, 1
        %p179 = scmp.lt.s32.totalorder %s17, 3
        %s180 = scalar_select %p179, %s17, 3
        %s181 = smul.addr %s178, 4
        %s182 = sadd.s32 %s180, %s181
        %s183 = smul.addr %s182, 8
        %s184 = scalar_lea.vmem %s2, %s183
      $region28: #{stage_model_forward.24} parent=15 // pred_fallthru
        _
    $region16: #{stage_model_forward.24} parent=5 // pred_fallthru
      _
    %p185 = scmp.le.s32.totalorder 1, %s9
    %p186 = scmp.lt.s32.totalorder %s9, 9
    %p187 = pnand %p185, %p186
    %p188 = pneg %p187
    // Predicated region
    $region29: #{stage_model_forward.24} parent=5 // pred_check
      _
    $region30: #{stage_model_forward.24} parent=5 // pred_check_branch
      %190 = sbr.rel (%p187) target = $region32
    $region31: #{stage_model_forward.24} parent=5 // pred_region
      %s191 = ssub.s32 %s9, 1
      %p192 = scmp.lt.s32.totalorder %s18, 1
      %s193 = scalar_select %p192, %s18, 1
      %p194 = scmp.lt.s32.totalorder %s19, 3
      %s195 = scalar_select %p194, %s19, 3
      %s196 = smul.addr %s193, 4
      %s197 = sadd.s32 %s195, %s196
      %s198 = smul.addr %s197, 8
      %s199 = scalar_lea.vmem %s0, %s198
      %p200 = pneg %p49
      %p201 = pneg %p46
      %p202 = scmp.lt.s32.totalorder %s18, 1
      %s203 = scalar_select %p202, %s18, 1
      %p204 = scmp.lt.s32.totalorder %s19, 3
      %s205 = scalar_select %p204, %s19, 3
      %s206 = smul.addr %s203, 4
      %s207 = sadd.s32 %s205, %s206
      %s208 = smul.addr %s207, 8
      %s209 = scalar_lea.vmem %s1, %s208
      %p210 = pneg %p77
      %p211 = pneg %p74
      %p212 = scmp.lt.s32.totalorder %s18, 1
      %s213 = scalar_select %p212, %s18, 1
      %p214 = scmp.lt.s32.totalorder %s19, 3
      %s215 = scalar_select %p214, %s19, 3
      %s216 = smul.addr %s213, 4
      %s217 = sadd.s32 %s215, %s216
      %s218 = smul.addr %s217, 8
      %s219 = scalar_lea.vmem %s2, %s218
      %p220 = pneg %p105
      %p221 = pneg %p102
      %p222 = pneg %p133
      %p223 = pneg %p130
      %p224 = scmp.lt.s32.totalorder %s18, 1
      %s225 = scalar_select %p224, %s18, 1
      %p226 = scmp.lt.s32.totalorder %s19, 3
      %s227 = scalar_select %p226, %s19, 3
      %s228 = smul.addr %s225, 4
      %s229 = sadd.s32 %s227, %s228
      %s230 = smul.addr %s229, 8
      %s231 = scalar_lea.vmem %s3, %s230
      %p232 = scmp.lt.s32.totalorder %s18, 1
      %s233 = scalar_select %p232, %s18, 1
      %p234 = scmp.lt.s32.totalorder %s19, 3
      %s235 = scalar_select %p234, %s19, 3
      %s236 = smul.addr %s233, 4
      %s237 = sadd.s32 %s235, %s236
      %s238 = smul.addr %s237, 8
      %s239 = scalar_lea.vmem %s0, %s238
      %p240 = scmp.lt.s32.totalorder %s18, 1
      %s241 = scalar_select %p240, %s18, 1
      %p242 = scmp.lt.s32.totalorder %s19, 3
      %s243 = scalar_select %p242, %s19, 3
      %s244 = smul.addr %s241, 4
      %s245 = sadd.s32 %s243, %s244
      %s246 = smul.addr %s245, 8
      %s247 = scalar_lea.vmem %s1, %s246
      %p248 = scmp.lt.s32.totalorder %s18, 1
      %s249 = scalar_select %p248, %s18, 1
      %p250 = scmp.lt.s32.totalorder %s19, 3
      %s251 = scalar_select %p250, %s19, 3
      %s252 = smul.addr %s249, 4
      %s253 = sadd.s32 %s251, %s252
      %s254 = smul.addr %s253, 8
      %s255 = scalar_lea.vmem %s2, %s254
      %p256 = scmp.lt.s32.totalorder %s18, 1
      %s257 = scalar_select %p256, %s18, 1
      %p258 = scmp.lt.s32.totalorder %s19, 3
      %s259 = scalar_select %p258, %s19, 3
      %s260 = smul.addr %s257, 4
      %s261 = sadd.s32 %s259, %s260
      %s262 = smul.addr %s261, 8
      %s263 = scalar_lea.vmem %s3, %s262
      %v265 = vld [vmem:[%s239] sm:$0xff]
      %v266 = vpack.c.bf16 %v265, %v265
      %v267 = vld [vmem:[%s247] sm:$0xff]
      %v268 = vpack.c.bf16 %v267, %v267
      %v269 = vld [vmem:[%s255] sm:$0xff]
      %v270 = vpack.c.bf16 %v269, %v269
      %vm271 = vcmask 64512
      %v273 = vsel %vm271, %v266, 0
      %v276 = vsel %vm271, %v268, 0
      %278 = vmatprep.subr.bf16.mxu0 0
      %279 = vmatpush1.bf16.xpose.msra.mxu0 0
      %280 = vmatprep.subr.bf16.mxu0 0
      %281 = vmatpush1.bf16.xpose.msra.mxu0 0
      %282 = vmatprep.subr.bf16.mxu0 0
      %283 = vmatpush1.bf16.xpose.msra.mxu0 0
      %284 = vmatprep.subr.bf16.mxu0 0
      %285 = vmatpush1.bf16.xpose.msra.mxu0 0
      %286 = vmatprep.subr.bf16.mxu0 0
      %287 = vmatpush1.bf16.xpose.msra.mxu0 0
      %288 = vmatprep.subr.bf16.mxu0 0
      %289 = vmatpush1.bf16.xpose.msra.mxu0 0
      %290 = vmatprep.subr.bf16.mxu0 0
      %291 = vmatpush1.bf16.xpose.msra.mxu0 0
      %292 = vmatprep.subr.bf16.mxu0 0
      %293 = vmatpush1.bf16.xpose.msra.mxu0 %v276
      %294 = vmatprep.subr.bf16.mxu0 0
      %295 = vmatpush2.bf16.xpose.msra.mxu0 0
      %296 = vmatprep.subr.bf16.mxu0 0
      %297 = vmatpush2.bf16.xpose.msra.mxu0 0
      %298 = vmatprep.subr.bf16.mxu0 0
      %299 = vmatpush2.bf16.xpose.msra.mxu0 0
      %300 = vmatprep.subr.bf16.mxu0 0
      %301 = vmatpush2.bf16.xpose.msra.mxu0 0
      %302 = vmatprep.subr.bf16.mxu0 0
      %303 = vmatpush2.bf16.xpose.msra.mxu0 0
      %304 = vmatprep.subr.bf16.mxu0 0
      %305 = vmatpush2.bf16.xpose.msra.mxu0 0
      %306 = vmatprep.subr.bf16.mxu0 0
      %307 = vmatpush2.bf16.xpose.msra.mxu0 0
      %308 = vmatprep.subr.bf16.mxu0 0
      %309 = vmatpush2.bf16.xpose.msra.mxu0 0
      %310 = vmatprep.mubr.bf16.mxu0 0
      %311 = vmatmul.mubr.bf16.gmra.mxu0 %v273
      %v312 = vpop.f32.mrf.mxu0
      %v313 = vadd.f32 0.0, %v312
      %v314 = vpop.f32.mrf.mxu0
      %v315 = vpop.f32.mrf.mxu0
      %v316 = vpop.f32.mrf.mxu0
      %317 = vdwg.mxu0
      %v318 = vmul.f32 %v313, 0.35355338
      %v319 = vsel %vm271, %v318, -inf
      %320 = vmax.xlane.f32.xlu0 %v319
      %v321 = vpop.xlane.xlu0 %320
      %v322 = vsub.f32 %v318, %v321
      %v323 = vmul.f32 %v322, 1.442695
      %v324 = vpow.pop %v323
      %v325 = vsel %vm271, %v324, 0.0
      %326 = vadd.xlane.f32.xlu0 %v325
      %v327 = vpop.xlane.xlu0 %326
      %v328 = vrcp.pop %v327
      %v329 = vmul.f32 %v324, %v328
      %v330 = vpack.c.bf16 %v329, %v329
      %v332 = vsel %vm271, %v330, 0
      %vm334 = vcmask 1043456
      %v336 = vsel %vm334, %v270, 0
      %338 = vmatprep.subr.bf16.mxu0 0
      %339 = vmatpush1.bf16.msra.mxu0 0
      %340 = vmatprep.subr.bf16.mxu0 0
      %341 = vmatpush1.bf16.msra.mxu0 0
      %342 = vmatprep.subr.bf16.mxu0 0
      %343 = vmatpush1.bf16.msra.mxu0 0
      %344 = vmatprep.subr.bf16.mxu0 0
      %345 = vmatpush1.bf16.msra.mxu0 0
      %346 = vmatprep.subr.bf16.mxu0 0
      %347 = vmatpush1.bf16.msra.mxu0 0
      %348 = vmatprep.subr.bf16.mxu0 0
      %349 = vmatpush1.bf16.msra.mxu0 0
      %350 = vmatprep.subr.bf16.mxu0 0
      %351 = vmatpush1.bf16.msra.mxu0 0
      %352 = vmatprep.subr.bf16.mxu0 0
      %353 = vmatpush1.bf16.msra.mxu0 %v336
      %354 = vmatprep.subr.bf16.mxu0 0
      %355 = vmatpush2.bf16.msra.mxu0 0
      %356 = vmatprep.subr.bf16.mxu0 0
      %357 = vmatpush2.bf16.msra.mxu0 0
      %358 = vmatprep.subr.bf16.mxu0 0
      %359 = vmatpush2.bf16.msra.mxu0 0
      %360 = vmatprep.subr.bf16.mxu0 0
      %361 = vmatpush2.bf16.msra.mxu0 0
      %362 = vmatprep.subr.bf16.mxu0 0
      %363 = vmatpush2.bf16.msra.mxu0 0
      %364 = vmatprep.subr.bf16.mxu0 0
      %365 = vmatpush2.bf16.msra.mxu0 0
      %366 = vmatprep.subr.bf16.mxu0 0
      %367 = vmatpush2.bf16.msra.mxu0 0
      %368 = vmatprep.subr.bf16.mxu0 0
      %369 = vmatpush2.bf16.msra.mxu0 0
      %370 = vmatprep.mubr.bf16.mxu0 0
      %371 = vmatmul.mubr.bf16.gmra.mxu0 %v332
      %v372 = vpop.f32.mrf.mxu0
      %v373 = vadd.f32 0.0, %v372
      %v374 = vpop.f32.mrf.mxu0
      %v375 = vpop.f32.mrf.mxu0
      %v376 = vpop.f32.mrf.mxu0
      %377 = vdwg.mxu0
      %378 = vst.msk [vmem:[%s263] sm:$0xff] %vm271, %v373
      %p379 = scmp.lt.s32.totalorder %s18, 1
      %s380 = scalar_select %p379, %s18, 1
      %p381 = scmp.lt.s32.totalorder %s19, 3
      %s382 = scalar_select %p381, %s19, 3
      %s383 = smul.addr %s380, 4
      %s384 = sadd.s32 %s382, %s383
      %s385 = smul.addr %s384, 8
      %s386 = scalar_lea.vmem %s3, %s385
      // Predicated region
      $region33: #{stage_model_forward.24} parent=31 // pred_check
        %p387 = pneg %p130
      $region34: #{stage_model_forward.24} parent=31 // pred_check_branch
        %389 = sbr.rel (%p387) target = $region36
      $region35: #{stage_model_forward.24} parent=31 // pred_region
        _
      $region36: #{stage_model_forward.24} parent=31 // pred_fallthru
        _
    $region32: #{stage_model_forward.24} parent=5 // pred_fallthru
      _
    %p390 = scmp.le.s32.totalorder 2, %s9
    // Predicated region
    $region37: #{stage_model_forward.24} parent=5 // pred_check
      %p391 = pneg %p390
    $region38: #{stage_model_forward.24} parent=5 // pred_check_branch
      %393 = sbr.rel (%p391) target = $region40
    $region39: #{stage_model_forward.24} parent=5 // pred_region
      %s394 = ssub.s32 %s9, 2
      // Predicated region
      $region41: #{stage_model_forward.24} parent=39 // pred_check
        %p395 = pneg %p136
      $region42: #{stage_model_forward.24} parent=39 // pred_check_branch
        %397 = sbr.rel (%p395) target = $region44
      $region43: #{stage_model_forward.24} parent=39 // pred_region
        %p398 = scmp.lt.s32.totalorder %s20, 1
        %s399 = scalar_select %p398, %s20, 1
        %p400 = scmp.lt.s32.totalorder %s21, 3
        %s401 = scalar_select %p400, %s21, 3
        %s402 = smul.addr %s399, 4
        %s403 = sadd.s32 %s401, %s402
        %s404 = smul.addr %s403, 8
        %s405 = scalar_lea.vmem %s3, %s404
      $region44: #{stage_model_forward.24} parent=39 // pred_fallthru
        _
    $region40: #{stage_model_forward.24} parent=5 // pred_fallthru
      _
  $region6: #{stage_model_forward.24} parent=0 // loop_footer
    %s13 = sadd.s32 1, %s9
  $region7: #{stage_model_forward.24} parent=0 // loop_footer_branch
    %8 = sbr.rel target = $region3
  $region8: #{stage_model_forward.24} parent=0 // loop_exit
    _

// kernel: stage_model_forward.25
$region0: #{stage_model_forward.25}
  #allocation0 [shape = 'u32[]', space=smem, size = 0x4, offset = 0x4, fixed_abs, tag = 'smem constant byte address 0x4 - core index']
  #allocation1 [shape = 'u32[144,128]{1,0:T(1,128)}', space=vmem, size = 0x12000, scoped, tag = 'internal scratch']
  #allocation2 [shape = 'f32[16,32]{1,0:T(8,128)}', space=vmem, size = 0x2000, scoped, tag = 'scratch operand']
  %s0 = inlined_call_operand.vmem [shape: f32[16,32], index: 0, kind: input, shape index: {}]
  %s1 = inlined_call_operand.vmem [shape: bf16[32,32], index: 1, kind: input, shape index: {}]
  %s2 = inlined_call_operand.vmem [shape: f32[1,32], index: 2, kind: input, shape index: {}]
  %s3 = inlined_call_operand.vmem [shape: f32[16,32], index: 3, kind: input, shape index: {}]
  %s4 = inlined_call_operand.vmem [shape: f32[1,32], index: 4, kind: input, shape index: {}]
  %s5 = inlined_call_operand.vmem [shape: f32[1,32], index: 5, kind: input, shape index: {}]
  %s6 = inlined_call_operand.vmem [shape: f32[16,32], index: 6, kind: output, shape index: {}]
  %s7 = sld [smem:[#allocation0]]
  $region42: #{stage_model_forward.25} parent=0
    _
  %s9 = ssub.s32 1, %s7
  %s10 = scalar_select 0, %s9, %s7
  // Predicated region
  $region2: #{stage_model_forward.25} parent=0 // pred_check
    _
  $region3: #{stage_model_forward.25} parent=0 // pred_check_branch
    %12 = sbr.rel (0) target = $region5
  $region4: #{stage_model_forward.25} parent=0 // pred_region
    _
  $region5: #{stage_model_forward.25} parent=0 // pred_fallthru
    _
  // Predicated region
  $region6: #{stage_model_forward.25} parent=0 // pred_check
    _
  $region7: #{stage_model_forward.25} parent=0 // pred_check_branch
    %14 = sbr.rel (0) target = $region9
  $region8: #{stage_model_forward.25} parent=0 // pred_region
    _
  $region9: #{stage_model_forward.25} parent=0 // pred_fallthru
    _
  // Predicated region
  $region10: #{stage_model_forward.25} parent=0 // pred_check
    _
  $region11: #{stage_model_forward.25} parent=0 // pred_check_branch
    %16 = sbr.rel (0) target = $region13
  $region12: #{stage_model_forward.25} parent=0 // pred_region
    _
  $region13: #{stage_model_forward.25} parent=0 // pred_fallthru
    _
  // Predicated region
  $region14: #{stage_model_forward.25} parent=0 // pred_check
    _
  $region15: #{stage_model_forward.25} parent=0 // pred_check_branch
    %18 = sbr.rel (0) target = $region17
  $region16: #{stage_model_forward.25} parent=0 // pred_region
    _
  $region17: #{stage_model_forward.25} parent=0 // pred_fallthru
    _
  // Predicated region
  $region18: #{stage_model_forward.25} parent=0 // pred_check
    _
  $region19: #{stage_model_forward.25} parent=0 // pred_check_branch
    %20 = sbr.rel (0) target = $region21
  $region20: #{stage_model_forward.25} parent=0 // pred_region
    _
  $region21: #{stage_model_forward.25} parent=0 // pred_fallthru
    _
  // Predicated region
  $region22: #{stage_model_forward.25} parent=0 // pred_check
    _
  $region23: #{stage_model_forward.25} parent=0 // pred_check_branch
    %22 = sbr.rel (0) target = $region25
  $region24: #{stage_model_forward.25} parent=0 // pred_region
    _
  $region25: #{stage_model_forward.25} parent=0 // pred_fallthru
    _
  %p24 = scmp.eq.s32.totalorder 0, 0
  // Predicated region
  $region26: #{stage_model_forward.25} parent=0 // pred_check
    %p25 = pneg %p24
  $region27: #{stage_model_forward.25} parent=0 // pred_check_branch
    %27 = sbr.rel (%p25) target = $region29
  $region28: #{stage_model_forward.25} parent=0 // pred_region
    %vm28 = vcmask 261120
    %29 = vst.msk [vmem:[#allocation2] sm:$0xff] %vm28, 0.0
    %30 = vst.msk [vmem:[#allocation2 + $0x8] sm:$0xff] %vm28, 0.0
  $region29: #{stage_model_forward.25} parent=0 // pred_fallthru
    _
  %v31 = vld [vmem:[#allocation2] sm:$0xff]
  %v32 = vld [vmem:[#allocation2 + $0x8] sm:$0xff]
  %v33 = vld [vmem:[%s0] sm:$0xff]
  %v34 = vld [vmem:[%s0 + $0x8] sm:$0xff]
  %v35 = vpack.c.bf16 %v34, %v33
  %v36 = vld [vmem:[%s1] sm:$0xf]
  %v37 = vld [vmem:[%s1 + $0x4] sm:$0xf]
  %v38 = vld [vmem:[%s1 + $0x8] sm:$0xf]
  %v39 = vld [vmem:[%s1 + $0xc] sm:$0xf]
  %v44 = vunpack.c.l.b16 %v36
  %v45 = vunpack.c.l.b16 %v37
  %v46 = vunpack.c.l.b16 %v38
  %v47 = vunpack.c.l.b16 %v39
  %v48 = vpack.c.b16 %v45, %v44
  %v49 = vpack.c.b16 %v47, %v46
  %vm52 = vcmask 261120
  %v54 = vsel %vm52, %v35, 0
  %56 = vmatprep.subr.bf16.mxu0 0
  %57 = vmatpush1.bf16.msra.mxu0 0
  %58 = vmatprep.subr.bf16.mxu0 0
  %59 = vmatpush1.bf16.msra.mxu0 0
  %60 = vmatprep.subr.bf16.mxu0 0
  %61 = vmatpush1.bf16.msra.mxu0 0
  %62 = vmatprep.subr.bf16.mxu0 0
  %63 = vmatpush1.bf16.msra.mxu0 0
  %64 = vmatprep.subr.bf16.mxu0 0
  %65 = vmatpush1.bf16.msra.mxu0 0
  %66 = vmatprep.subr.bf16.mxu0 0
  %67 = vmatpush1.bf16.msra.mxu0 0
  %68 = vmatprep.subr.bf16.mxu0 0
  %69 = vmatpush1.bf16.msra.mxu0 %v49
  %70 = vmatprep.subr.bf16.mxu0 0
  %71 = vmatpush1.bf16.msra.mxu0 %v48
  %72 = vmatprep.subr.bf16.mxu0 0
  %73 = vmatpush2.bf16.msra.mxu0 0
  %74 = vmatprep.subr.bf16.mxu0 0
  %75 = vmatpush2.bf16.msra.mxu0 0
  %76 = vmatprep.subr.bf16.mxu0 0
  %77 = vmatpush2.bf16.msra.mxu0 0
  %78 = vmatprep.subr.bf16.mxu0 0
  %79 = vmatpush2.bf16.msra.mxu0 0
  %80 = vmatprep.subr.bf16.mxu0 0
  %81 = vmatpush2.bf16.msra.mxu0 0
  %82 = vmatprep.subr.bf16.mxu0 0
  %83 = vmatpush2.bf16.msra.mxu0 0
  %84 = vmatprep.subr.bf16.mxu0 0
  %85 = vmatpush2.bf16.msra.mxu0 0
  %86 = vmatprep.subr.bf16.mxu0 0
  %87 = vmatpush2.bf16.msra.mxu0 0
  %88 = vmatprep.mubr.bf16.mxu0 0
  %89 = vmatmul.mubr.bf16.gmra.mxu0 %v54
  %v90 = vpop.f32.mrf.mxu0
  %v91 = vadd.f32 0.0, %v90
  %v92 = vpop.f32.mrf.mxu0
  %v93 = vpop.f32.mrf.mxu0
  %v94 = vadd.f32 0.0, %v93
  %v95 = vpop.f32.mrf.mxu0
  %96 = vdwg.mxu0
  %v97 = vadd.f32 %v31, %v91
  %v98 = vadd.f32 %v32, %v94
  %99 = vst.msk [vmem:[#allocation2] sm:$0xff] %vm52, %v97
  %100 = vst.msk [vmem:[#allocation2 + $0x8] sm:$0xff] %vm52, %v98
  // Predicated region
  $region30: #{stage_model_forward.25} parent=0 // pred_check
    %p101 = pneg %p24
  $region31: #{stage_model_forward.25} parent=0 // pred_check_branch
    %103 = sbr.rel (%p101) target = $region33
  $region32: #{stage_model_forward.25} parent=0 // pred_region
    %v104 = vld [vmem:[#allocation2] sm:$0xff]
    %v105 = vld [vmem:[#allocation2 + $0x8] sm:$0xff]
    %v106 = vld [vmem:[%s2] sm:$0x1]
    %v108 = vlaneseq
    %v109 = vshrl.u32 %v108, 7
    %v110 = vsub.s32 0, %v109
    %v111 = vrot.slane %v106, %v110
    %v113 = vadd.f32 %v104, %v111
    %v114 = vadd.f32 %v105, %v111
    %v115 = vld [vmem:[%s3] sm:$0xff]
    %v116 = vld [vmem:[%s3 + $0x8] sm:$0xff]
    %v117 = vadd.f32 %v113, %v115
    %v118 = vadd.f32 %v114, %v116
    %v119 = vsel %vm52, %v117, 0.0
    %120 = vadd.xlane.f32.xlu0 %v119
    %v121 = vpop.xlane.xlu0 %120
    %v122 = vsel %vm52, %v118, 0.0
    %123 = vadd.xlane.f32.xlu0 %v122
    %v124 = vpop.xlane.xlu0 %123
    %v125 = vrcp.pop 32.0
    %v126 = vmul.f32 %v121, %v125
    %v127 = vmul.f32 %v124, %v125
    %v128 = vsub.f32 %v117, %v126
    %v129 = vsub.f32 %v118, %v127
    %v130 = vmul.f32 %v128, %v128
    %v131 = vmul.f32 %v129, %v129
    %v132 = vsel %vm52, %v130, 0.0
    %133 = vadd.xlane.f32.xlu0 %v132
    %v134 = vpop.xlane.xlu0 %133
    %v135 = vsel %vm52, %v131, 0.0
    %136 = vadd.xlane.f32.xlu0 %v135
    %v137 = vpop.xlane.xlu0 %136
    %v138 = vmul.f32 %v134, %v125
    %v139 = vmul.f32 %v137, %v125
    %v140 = vadd.f32 %v138, 1e-12
    %v141 = vadd.f32 %v139, 1e-12
    %v142 = vrsqrt.pop %v140
    %v143 = vrsqrt.pop %v141
    %v144 = vmul.f32 %v128, %v142
    %v145 = vmul.f32 %v129, %v143
    %v146 = vld [vmem:[%s4] sm:$0x1]
    %v148 = vlaneseq
    %v149 = vshrl.u32 %v148, 7
    %v150 = vsub.s32 0, %v149
    %v151 = vrot.slane %v146, %v150
    %v153 = vmul.f32 %v144, %v151
    %v154 = vmul.f32 %v145, %v151
    %v155 = vld [vmem:[%s5] sm:$0x1]
    %v157 = vlaneseq
    %v158 = vshrl.u32 %v157, 7
    %v159 = vsub.s32 0, %v158
    %v160 = vrot.slane %v155, %v159
    %v162 = vadd.f32 %v153, %v160
    %v163 = vadd.f32 %v154, %v160
    %164 = vst.msk [vmem:[%s6] sm:$0xff] %vm52, %v162
    %165 = vst.msk [vmem:[%s6 + $0x8] sm:$0xff] %vm52, %v163
  $region33: #{stage_model_forward.25} parent=0 // pred_fallthru
    _
  // Predicated region
  $region34: #{stage_model_forward.25} parent=0 // pred_check
    _
  $region35: #{stage_model_forward.25} parent=0 // pred_check_branch
    %167 = sbr.rel (0) target = $region37
  $region36: #{stage_model_forward.25} parent=0 // pred_region
    _
  $region37: #{stage_model_forward.25} parent=0 // pred_fallthru
    _
  // Predicated region
  $region38: #{stage_model_forward.25} parent=0 // pred_check
    _
  $region39: #{stage_model_forward.25} parent=0 // pred_check_branch
    %169 = sbr.rel (0) target = $region41
  $region40: #{stage_model_forward.25} parent=0 // pred_region
    _
  $region41: #{stage_model_forward.25} parent=0 // pred_fallthru
    _

// kernel: stage_model_forward.26
$region0: #{stage_model_forward.26}
  #allocation0 [shape = 'u32[]', space=smem, size = 0x4, offset = 0x4, fixed_abs, tag = 'smem constant byte address 0x4 - core index']
  #allocation1 [shape = 'u32[144,128]{1,0:T(1,128)}', space=vmem, size = 0x12000, scoped, tag = 'internal scratch']
  #allocation2 [shape = 'f32[16,64]{1,0:T(8,128)}', space=vmem, size = 0x2000, scoped, tag = 'scratch operand']
  %s0 = inlined_call_operand.vmem [shape: f32[16,32], index: 0, kind: input, shape index: {}]
  %s1 = inlined_call_operand.vmem [shape: bf16[32,64], index: 1, kind: input, shape index: {}]
  %s2 = inlined_call_operand.vmem [shape: f32[1,64], index: 2, kind: input, shape index: {}]
  %s3 = inlined_call_operand.vmem [shape: f32[16,64], index: 3, kind: output, shape index: {}]
  %s4 = sld [smem:[#allocation0]]
  $region30: #{stage_model_forward.26} parent=0
    _
  %s6 = ssub.s32 1, %s4
  %s7 = scalar_select 0, %s6, %s4
  // Predicated region
  $region2: #{stage_model_forward.26} parent=0 // pred_check
    _
  $region3: #{stage_model_forward.26} parent=0 // pred_check_branch
    %9 = sbr.rel (0) target = $region5
  $region4: #{stage_model_forward.26} parent=0 // pred_region
    _
  $region5: #{stage_model_forward.26} parent=0 // pred_fallthru
    _
  // Predicated region
  $region6: #{stage_model_forward.26} parent=0 // pred_check
    _
  $region7: #{stage_model_forward.26} parent=0 // pred_check_branch
    %11 = sbr.rel (0) target = $region9
  $region8: #{stage_model_forward.26} parent=0 // pred_region
    _
  $region9: #{stage_model_forward.26} parent=0 // pred_fallthru
    _
  // Predicated region
  $region10: #{stage_model_forward.26} parent=0 // pred_check
    _
  $region11: #{stage_model_forward.26} parent=0 // pred_check_branch
    %13 = sbr.rel (0) target = $region13
  $region12: #{stage_model_forward.26} parent=0 // pred_region
    _
  $region13: #{stage_model_forward.26} parent=0 // pred_fallthru
    _
  %p15 = scmp.eq.s32.totalorder 0, 0
  // Predicated region
  $region14: #{stage_model_forward.26} parent=0 // pred_check
    %p16 = pneg %p15
  $region15: #{stage_model_forward.26} parent=0 // pred_check_branch
    %18 = sbr.rel (%p16) target = $region17
  $region16: #{stage_model_forward.26} parent=0 // pred_region
    %vm19 = vcmask 523264
    %20 = vst.msk [vmem:[#allocation2] sm:$0xff] %vm19, 0.0
    %21 = vst.msk [vmem:[#allocation2 + $0x8] sm:$0xff] %vm19, 0.0
  $region17: #{stage_model_forward.26} parent=0 // pred_fallthru
    _
  %v22 = vld [vmem:[#allocation2] sm:$0xff]
  %v23 = vld [vmem:[#allocation2 + $0x8] sm:$0xff]
  %v24 = vld [vmem:[%s0] sm:$0xff]
  %v25 = vld [vmem:[%s0 + $0x8] sm:$0xff]
  %v26 = vpack.c.bf16 %v25, %v24
  %v27 = vld [vmem:[%s1] sm:$0xf]
  %v28 = vld [vmem:[%s1 + $0x4] sm:$0xf]
  %v29 = vld [vmem:[%s1 + $0x8] sm:$0xf]
  %v30 = vld [vmem:[%s1 + $0xc] sm:$0xf]
  %v35 = vunpack.c.l.b16 %v27
  %v36 = vunpack.c.l.b16 %v28
  %v37 = vunpack.c.l.b16 %v29
  %v38 = vunpack.c.l.b16 %v30
  %v39 = vpack.c.b16 %v36, %v35
  %v40 = vpack.c.b16 %v38, %v37
  %vm43 = vcmask 261120
  %v45 = vsel %vm43, %v26, 0
  %47 = vmatprep.subr.bf16.mxu0 0
  %48 = vmatpush1.bf16.msra.mxu0 0
  %49 = vmatprep.subr.bf16.mxu0 0
  %50 = vmatpush1.bf16.msra.mxu0 0
  %51 = vmatprep.subr.bf16.mxu0 0
  %52 = vmatpush1.bf16.msra.mxu0 0
  %53 = vmatprep.subr.bf16.mxu0 0
  %54 = vmatpush1.bf16.msra.mxu0 0
  %55 = vmatprep.subr.bf16.mxu0 0
  %56 = vmatpush1.bf16.msra.mxu0 0
  %57 = vmatprep.subr.bf16.mxu0 0
  %58 = vmatpush1.bf16.msra.mxu0 0
  %59 = vmatprep.subr.bf16.mxu0 0
  %60 = vmatpush1.bf16.msra.mxu0 %v40
  %61 = vmatprep.subr.bf16.mxu0 0
  %62 = vmatpush1.bf16.msra.mxu0 %v39
  %63 = vmatprep.subr.bf16.mxu0 0
  %64 = vmatpush2.bf16.msra.mxu0 0
  %65 = vmatprep.subr.bf16.mxu0 0
  %66 = vmatpush2.bf16.msra.mxu0 0
  %67 = vmatprep.subr.bf16.mxu0 0
  %68 = vmatpush2.bf16.msra.mxu0 0
  %69 = vmatprep.subr.bf16.mxu0 0
  %70 = vmatpush2.bf16.msra.mxu0 0
  %71 = vmatprep.subr.bf16.mxu0 0
  %72 = vmatpush2.bf16.msra.mxu0 0
  %73 = vmatprep.subr.bf16.mxu0 0
  %74 = vmatpush2.bf16.msra.mxu0 0
  %75 = vmatprep.subr.bf16.mxu0 0
  %76 = vmatpush2.bf16.msra.mxu0 0
  %77 = vmatprep.subr.bf16.mxu0 0
  %78 = vmatpush2.bf16.msra.mxu0 0
  %79 = vmatprep.mubr.bf16.mxu0 0
  %80 = vmatmul.mubr.bf16.gmra.mxu0 %v45
  %v81 = vpop.f32.mrf.mxu0
  %v82 = vadd.f32 0.0, %v81
  %v83 = vpop.f32.mrf.mxu0
  %v84 = vpop.f32.mrf.mxu0
  %v85 = vadd.f32 0.0, %v84
  %v86 = vpop.f32.mrf.mxu0
  %87 = vdwg.mxu0
  %v88 = vadd.f32 %v22, %v82
  %v89 = vadd.f32 %v23, %v85
  %vm90 = vcmask 523264
  %91 = vst.msk [vmem:[#allocation2] sm:$0xff] %vm90, %v88
  %92 = vst.msk [vmem:[#allocation2 + $0x8] sm:$0xff] %vm90, %v89
  // Predicated region
  $region18: #{stage_model_forward.26} parent=0 // pred_check
    %p93 = pneg %p15
  $region19: #{stage_model_forward.26} parent=0 // pred_check_branch
    %95 = sbr.rel (%p93) target = $region21
  $region20: #{stage_model_forward.26} parent=0 // pred_region
    %v96 = vld [vmem:[#allocation2] sm:$0xff]
    %v97 = vld [vmem:[#allocation2 + $0x8] sm:$0xff]
    %v98 = vld [vmem:[%s2] sm:$0x1]
    %v100 = vlaneseq
    %v101 = vshrl.u32 %v100, 7
    %v102 = vsub.s32 0, %v101
    %v103 = vrot.slane %v98, %v102
    %v105 = vadd.f32 %v96, %v103
    %v106 = vadd.f32 %v97, %v103
    %v107 = vmul.f32 %v105, 0.5
    %v108 = vmul.f32 %v106, 0.5
    %v109 = vmul.f32 %v105, 0.70710677
    %v110 = vmul.f32 %v106, 0.70710677
    %v111 = verf.f32.pop %v109
    %v112 = verf.f32.pop %v110
    %v113 = vadd.f32 %v111, 1.0
    %v114 = vadd.f32 %v112, 1.0
    %v115 = vmul.f32 %v107, %v113
    %v116 = vmul.f32 %v108, %v114
    %117 = vst.msk [vmem:[%s3] sm:$0xff] %vm90, %v115
    %118 = vst.msk [vmem:[%s3 + $0x8] sm:$0xff] %vm90, %v116
  $region21: #{stage_model_forward.26} parent=0 // pred_fallthru
    _
  // Predicated region
  $region22: #{stage_model_forward.26} parent=0 // pred_check
    _
  $region23: #{stage_model_forward.26} parent=0 // pred_check_branch
    %120 = sbr.rel (0) target = $region25
  $region24: #{stage_model_forward.26} parent=0 // pred_region
    _
  $region25: #{stage_model_forward.26} parent=0 // pred_fallthru
    _
  // Predicated region
  $region26: #{stage_model_forward.26} parent=0 // pred_check
    _
  $region27: #{stage_model_forward.26} parent=0 // pred_check_branch
    %122 = sbr.rel (0) target = $region29
  $region28: #{stage_model_forward.26} parent=0 // pred_region
    _
  $region29: #{stage_model_forward.26} parent=0 // pred_fallthru
    _

// kernel: stage_model_forward.27
$region0: #{stage_model_forward.27}
  #allocation0 [shape = 'u32[]', space=smem, size = 0x4, offset = 0x4, fixed_abs, tag = 'smem constant byte address 0x4 - core index']
  #allocation1 [shape = 'u32[144,128]{1,0:T(1,128)}', space=vmem, size = 0x12000, scoped, tag = 'internal scratch']
  #allocation2 [shape = 'f32[16,32]{1,0:T(8,128)}', space=vmem, size = 0x2000, scoped, tag = 'scratch operand']
  %s0 = inlined_call_operand.vmem [shape: f32[16,64], index: 0, kind: input, shape index: {}]
  %s1 = inlined_call_operand.vmem [shape: bf16[64,32], index: 1, kind: input, shape index: {}]
  %s2 = inlined_call_operand.vmem [shape: f32[1,32], index: 2, kind: input, shape index: {}]
  %s3 = inlined_call_operand.vmem [shape: f32[16,32], index: 3, kind: input, shape index: {}]
  %s4 = inlined_call_operand.vmem [shape: f32[1,32], index: 4, kind: input, shape index: {}]
  %s5 = inlined_call_operand.vmem [shape: f32[1,32], index: 5, kind: input, shape index: {}]
  %s6 = inlined_call_operand.vmem [shape: f32[16,32], index: 6, kind: output, shape index: {}]
  %s7 = sld [smem:[#allocation0]]
  $region42: #{stage_model_forward.27} parent=0
    _
  %s9 = ssub.s32 1, %s7
  %s10 = scalar_select 0, %s9, %s7
  // Predicated region
  $region2: #{stage_model_forward.27} parent=0 // pred_check
    _
  $region3: #{stage_model_forward.27} parent=0 // pred_check_branch
    %12 = sbr.rel (0) target = $region5
  $region4: #{stage_model_forward.27} parent=0 // pred_region
    _
  $region5: #{stage_model_forward.27} parent=0 // pred_fallthru
    _
  // Predicated region
  $region6: #{stage_model_forward.27} parent=0 // pred_check
    _
  $region7: #{stage_model_forward.27} parent=0 // pred_check_branch
    %14 = sbr.rel (0) target = $region9
  $region8: #{stage_model_forward.27} parent=0 // pred_region
    _
  $region9: #{stage_model_forward.27} parent=0 // pred_fallthru
    _
  // Predicated region
  $region10: #{stage_model_forward.27} parent=0 // pred_check
    _
  $region11: #{stage_model_forward.27} parent=0 // pred_check_branch
    %16 = sbr.rel (0) target = $region13
  $region12: #{stage_model_forward.27} parent=0 // pred_region
    _
  $region13: #{stage_model_forward.27} parent=0 // pred_fallthru
    _
  // Predicated region
  $region14: #{stage_model_forward.27} parent=0 // pred_check
    _
  $region15: #{stage_model_forward.27} parent=0 // pred_check_branch
    %18 = sbr.rel (0) target = $region17
  $region16: #{stage_model_forward.27} parent=0 // pred_region
    _
  $region17: #{stage_model_forward.27} parent=0 // pred_fallthru
    _
  // Predicated region
  $region18: #{stage_model_forward.27} parent=0 // pred_check
    _
  $region19: #{stage_model_forward.27} parent=0 // pred_check_branch
    %20 = sbr.rel (0) target = $region21
  $region20: #{stage_model_forward.27} parent=0 // pred_region
    _
  $region21: #{stage_model_forward.27} parent=0 // pred_fallthru
    _
  // Predicated region
  $region22: #{stage_model_forward.27} parent=0 // pred_check
    _
  $region23: #{stage_model_forward.27} parent=0 // pred_check_branch
    %22 = sbr.rel (0) target = $region25
  $region24: #{stage_model_forward.27} parent=0 // pred_region
    _
  $region25: #{stage_model_forward.27} parent=0 // pred_fallthru
    _
  %p24 = scmp.eq.s32.totalorder 0, 0
  // Predicated region
  $region26: #{stage_model_forward.27} parent=0 // pred_check
    %p25 = pneg %p24
  $region27: #{stage_model_forward.27} parent=0 // pred_check_branch
    %27 = sbr.rel (%p25) target = $region29
  $region28: #{stage_model_forward.27} parent=0 // pred_region
    %vm28 = vcmask 261120
    %29 = vst.msk [vmem:[#allocation2] sm:$0xff] %vm28, 0.0
    %30 = vst.msk [vmem:[#allocation2 + $0x8] sm:$0xff] %vm28, 0.0
  $region29: #{stage_model_forward.27} parent=0 // pred_fallthru
    _
  %v31 = vld [vmem:[#allocation2] sm:$0xff]
  %v32 = vld [vmem:[#allocation2 + $0x8] sm:$0xff]
  %v33 = vld [vmem:[%s0] sm:$0xff]
  %v34 = vld [vmem:[%s0 + $0x8] sm:$0xff]
  %v35 = vpack.c.bf16 %v34, %v33
  %v36 = vld [vmem:[%s1] sm:$0xf]
  %v37 = vld [vmem:[%s1 + $0x4] sm:$0xf]
  %v38 = vld [vmem:[%s1 + $0x8] sm:$0xf]
  %v39 = vld [vmem:[%s1 + $0xc] sm:$0xf]
  %v40 = vld [vmem:[%s1 + $0x10] sm:$0xf]
  %v41 = vld [vmem:[%s1 + $0x14] sm:$0xf]
  %v42 = vld [vmem:[%s1 + $0x18] sm:$0xf]
  %v43 = vld [vmem:[%s1 + $0x1c] sm:$0xf]
  %v52 = vunpack.c.l.b16 %v36
  %v53 = vunpack.c.l.b16 %v37
  %v54 = vunpack.c.l.b16 %v38
  %v55 = vunpack.c.l.b16 %v39
  %v56 = vunpack.c.l.b16 %v40
  %v57 = vunpack.c.l.b16 %v41
  %v58 = vunpack.c.l.b16 %v42
  %v59 = vunpack.c.l.b16 %v43
  %v60 = vpack.c.b16 %v53, %v52
  %v61 = vpack.c.b16 %v55, %v54
  %v62 = vpack.c.b16 %v57, %v56
  %v63 = vpack.c.b16 %v59, %v58
  %vm68 = vcmask 523264
  %v70 = vsel %vm68, %v35, 0
  %72 = vmatprep.subr.bf16.mxu0 0
  %73 = vmatpush1.bf16.msra.mxu0 0
  %74 = vmatprep.subr.bf16.mxu0 0
  %75 = vmatpush1.bf16.msra.mxu0 0
  %76 = vmatprep.subr.bf16.mxu0 0
  %77 = vmatpush1.bf16.msra.mxu0 0
  %78 = vmatprep.subr.bf16.mxu0 0
  %79 = vmatpush1.bf16.msra.mxu0 0
  %80 = vmatprep.subr.bf16.mxu0 0
  %81 = vmatpush1.bf16.msra.mxu0 %v63
  %82 = vmatprep.subr.bf16.mxu0 0
  %83 = vmatpush1.bf16.msra.mxu0 %v62
  %84 = vmatprep.subr.bf16.mxu0 0
  %85 = vmatpush1.bf16.msra.mxu0 %v61
  %86 = vmatprep.subr.bf16.mxu0 0
  %87 = vmatpush1.bf16.msra.mxu0 %v60
  %88 = vmatprep.subr.bf16.mxu0 0
  %89 = vmatpush2.bf16.msra.mxu0 0
  %90 = vmatprep.subr.bf16.mxu0 0
  %91 = vmatpush2.bf16.msra.mxu0 0
  %92 = vmatprep.subr.bf16.mxu0 0
  %93 = vmatpush2.bf16.msra.mxu0 0
  %94 = vmatprep.subr.bf16.mxu0 0
  %95 = vmatpush2.bf16.msra.mxu0 0
  %96 = vmatprep.subr.bf16.mxu0 0
  %97 = vmatpush2.bf16.msra.mxu0 0
  %98 = vmatprep.subr.bf16.mxu0 0
  %99 = vmatpush2.bf16.msra.mxu0 0
  %100 = vmatprep.subr.bf16.mxu0 0
  %101 = vmatpush2.bf16.msra.mxu0 0
  %102 = vmatprep.subr.bf16.mxu0 0
  %103 = vmatpush2.bf16.msra.mxu0 0
  %104 = vmatprep.mubr.bf16.mxu0 0
  %105 = vmatmul.mubr.bf16.gmra.mxu0 %v70
  %v106 = vpop.f32.mrf.mxu0
  %v107 = vadd.f32 0.0, %v106
  %v108 = vpop.f32.mrf.mxu0
  %v109 = vpop.f32.mrf.mxu0
  %v110 = vadd.f32 0.0, %v109
  %v111 = vpop.f32.mrf.mxu0
  %112 = vdwg.mxu0
  %v113 = vadd.f32 %v31, %v107
  %v114 = vadd.f32 %v32, %v110
  %vm115 = vcmask 261120
  %116 = vst.msk [vmem:[#allocation2] sm:$0xff] %vm115, %v113
  %117 = vst.msk [vmem:[#allocation2 + $0x8] sm:$0xff] %vm115, %v114
  // Predicated region
  $region30: #{stage_model_forward.27} parent=0 // pred_check
    %p118 = pneg %p24
  $region31: #{stage_model_forward.27} parent=0 // pred_check_branch
    %120 = sbr.rel (%p118) target = $region33
  $region32: #{stage_model_forward.27} parent=0 // pred_region
    %v121 = vld [vmem:[#allocation2] sm:$0xff]
    %v122 = vld [vmem:[#allocation2 + $0x8] sm:$0xff]
    %v123 = vld [vmem:[%s2] sm:$0x1]
    %v125 = vlaneseq
    %v126 = vshrl.u32 %v125, 7
    %v127 = vsub.s32 0, %v126
    %v128 = vrot.slane %v123, %v127
    %v130 = vadd.f32 %v121, %v128
    %v131 = vadd.f32 %v122, %v128
    %v132 = vld [vmem:[%s3] sm:$0xff]
    %v133 = vld [vmem:[%s3 + $0x8] sm:$0xff]
    %v134 = vadd.f32 %v130, %v132
    %v135 = vadd.f32 %v131, %v133
    %v136 = vsel %vm115, %v134, 0.0
    %137 = vadd.xlane.f32.xlu0 %v136
    %v138 = vpop.xlane.xlu0 %137
    %v139 = vsel %vm115, %v135, 0.0
    %140 = vadd.xlane.f32.xlu0 %v139
    %v141 = vpop.xlane.xlu0 %140
    %v142 = vrcp.pop 32.0
    %v143 = vmul.f32 %v138, %v142
    %v144 = vmul.f32 %v141, %v142
    %v145 = vsub.f32 %v134, %v143
    %v146 = vsub.f32 %v135, %v144
    %v147 = vmul.f32 %v145, %v145
    %v148 = vmul.f32 %v146, %v146
    %v149 = vsel %vm115, %v147, 0.0
    %150 = vadd.xlane.f32.xlu0 %v149
    %v151 = vpop.xlane.xlu0 %150
    %v152 = vsel %vm115, %v148, 0.0
    %153 = vadd.xlane.f32.xlu0 %v152
    %v154 = vpop.xlane.xlu0 %153
    %v155 = vmul.f32 %v151, %v142
    %v156 = vmul.f32 %v154, %v142
    %v157 = vadd.f32 %v155, 1e-12
    %v158 = vadd.f32 %v156, 1e-12
    %v159 = vrsqrt.pop %v157
    %v160 = vrsqrt.pop %v158
    %v161 = vmul.f32 %v145, %v159
    %v162 = vmul.f32 %v146, %v160
    %v163 = vld [vmem:[%s4] sm:$0x1]
    %v165 = vlaneseq
    %v166 = vshrl.u32 %v165, 7
    %v167 = vsub.s32 0, %v166
    %v168 = vrot.slane %v163, %v167
    %v170 = vmul.f32 %v161, %v168
    %v171 = vmul.f32 %v162, %v168
    %v172 = vld [vmem:[%s5] sm:$0x1]
    %v174 = vlaneseq
    %v175 = vshrl.u32 %v174, 7
    %v176 = vsub.s32 0, %v175
    %v177 = vrot.slane %v172, %v176
    %v179 = vadd.f32 %v170, %v177
    %v180 = vadd.f32 %v171, %v177
    %181 = vst.msk [vmem:[%s6] sm:$0xff] %vm115, %v179
    %182 = vst.msk [vmem:[%s6 + $0x8] sm:$0xff] %vm115, %v180
  $region33: #{stage_model_forward.27} parent=0 // pred_fallthru
    _
  // Predicated region
  $region34: #{stage_model_forward.27} parent=0 // pred_check
    _
  $region35: #{stage_model_forward.27} parent=0 // pred_check_branch
    %184 = sbr.rel (0) target = $region37
  $region36: #{stage_model_forward.27} parent=0 // pred_region
    _
  $region37: #{stage_model_forward.27} parent=0 // pred_fallthru
    _
  // Predicated region
  $region38: #{stage_model_forward.27} parent=0 // pred_check
    _
  $region39: #{stage_model_forward.27} parent=0 // pred_check_branch
    %186 = sbr.rel (0) target = $region41
  $region40: #{stage_model_forward.27} parent=0 // pred_region
    _
  $region41: #{stage_model_forward.27} parent=0 // pred_fallthru
    _

// kernel: stage_model_forward.28
$region0: #{stage_model_forward.28}
  #allocation0 [shape = 'u32[]', space=smem, size = 0x4, offset = 0x4, fixed_abs, tag = 'smem constant byte address 0x4 - core index']
  #allocation1 [shape = 'u32[144,128]{1,0:T(1,128)}', space=vmem, size = 0x12000, scoped, tag = 'internal scratch']
  #allocation2 [shape = 'f32[16,16]{1,0:T(8,128)}', space=vmem, size = 0x2000, scoped, tag = 'scratch operand']
  %s0 = inlined_call_operand.vmem [shape: f32[16,32], index: 0, kind: input, shape index: {}]
  %s1 = inlined_call_operand.vmem [shape: bf16[32,16], index: 1, kind: input, shape index: {}]
  %s2 = inlined_call_operand.vmem [shape: f32[1,16], index: 2, kind: input, shape index: {}]
  %s3 = inlined_call_operand.vmem [shape: f32[16,16], index: 3, kind: input, shape index: {}]
  %s4 = inlined_call_operand.vmem [shape: f32[16,16], index: 4, kind: output, shape index: {}]
  %s5 = sld [smem:[#allocation0]]
  $region34: #{stage_model_forward.28} parent=0
    _
  %s7 = ssub.s32 1, %s5
  %s8 = scalar_select 0, %s7, %s5
  // Predicated region
  $region2: #{stage_model_forward.28} parent=0 // pred_check
    _
  $region3: #{stage_model_forward.28} parent=0 // pred_check_branch
    %10 = sbr.rel (0) target = $region5
  $region4: #{stage_model_forward.28} parent=0 // pred_region
    _
  $region5: #{stage_model_forward.28} parent=0 // pred_fallthru
    _
  // Predicated region
  $region6: #{stage_model_forward.28} parent=0 // pred_check
    _
  $region7: #{stage_model_forward.28} parent=0 // pred_check_branch
    %12 = sbr.rel (0) target = $region9
  $region8: #{stage_model_forward.28} parent=0 // pred_region
    _
  $region9: #{stage_model_forward.28} parent=0 // pred_fallthru
    _
  // Predicated region
  $region10: #{stage_model_forward.28} parent=0 // pred_check
    _
  $region11: #{stage_model_forward.28} parent=0 // pred_check_branch
    %14 = sbr.rel (0) target = $region13
  $region12: #{stage_model_forward.28} parent=0 // pred_region
    _
  $region13: #{stage_model_forward.28} parent=0 // pred_fallthru
    _
  // Predicated region
  $region14: #{stage_model_forward.28} parent=0 // pred_check
    _
  $region15: #{stage_model_forward.28} parent=0 // pred_check_branch
    %16 = sbr.rel (0) target = $region17
  $region16: #{stage_model_forward.28} parent=0 // pred_region
    _
  $region17: #{stage_model_forward.28} parent=0 // pred_fallthru
    _
  %p18 = scmp.eq.s32.totalorder 0, 0
  // Predicated region
  $region18: #{stage_model_forward.28} parent=0 // pred_check
    %p19 = pneg %p18
  $region19: #{stage_model_forward.28} parent=0 // pred_check_branch
    %21 = sbr.rel (%p19) target = $region21
  $region20: #{stage_model_forward.28} parent=0 // pred_region
    %vm22 = vcmask 130048
    %23 = vst.msk [vmem:[#allocation2] sm:$0xff] %vm22, 0.0
    %24 = vst.msk [vmem:[#allocation2 + $0x8] sm:$0xff] %vm22, 0.0
  $region21: #{stage_model_forward.28} parent=0 // pred_fallthru
    _
  %v25 = vld [vmem:[#allocation2] sm:$0xff]
  %v26 = vld [vmem:[#allocation2 + $0x8] sm:$0xff]
  %v27 = vld [vmem:[%s0] sm:$0xff]
  %v28 = vld [vmem:[%s0 + $0x8] sm:$0xff]
  %v29 = vpack.c.bf16 %v28, %v27
  %v30 = vld [vmem:[%s1] sm:$0xf]
  %v31 = vld [vmem:[%s1 + $0x4] sm:$0xf]
  %v32 = vld [vmem:[%s1 + $0x8] sm:$0xf]
  %v33 = vld [vmem:[%s1 + $0xc] sm:$0xf]
  %v38 = vunpack.c.l.b16 %v30
  %v39 = vunpack.c.l.b16 %v31
  %v40 = vunpack.c.l.b16 %v32
  %v41 = vunpack.c.l.b16 %v33
  %v42 = vpack.c.b16 %v39, %v38
  %v43 = vpack.c.b16 %v41, %v40
  %vm46 = vcmask 261120
  %v48 = vsel %vm46, %v29, 0
  %50 = vmatprep.subr.bf16.mxu0 0
  %51 = vmatpush1.bf16.msra.mxu0 0
  %52 = vmatprep.subr.bf16.mxu0 0
  %53 = vmatpush1.bf16.msra.mxu0 0
  %54 = vmatprep.subr.bf16.mxu0 0
  %55 = vmatpush1.bf16.msra.mxu0 0
  %56 = vmatprep.subr.bf16.mxu0 0
  %57 = vmatpush1.bf16.msra.mxu0 0
  %58 = vmatprep.subr.bf16.mxu0 0
  %59 = vmatpush1.bf16.msra.mxu0 0
  %60 = vmatprep.subr.bf16.mxu0 0
  %61 = vmatpush1.bf16.msra.mxu0 0
  %62 = vmatprep.subr.bf16.mxu0 0
  %63 = vmatpush1.bf16.msra.mxu0 %v43
  %64 = vmatprep.subr.bf16.mxu0 0
  %65 = vmatpush1.bf16.msra.mxu0 %v42
  %66 = vmatprep.subr.bf16.mxu0 0
  %67 = vmatpush2.bf16.msra.mxu0 0
  %68 = vmatprep.subr.bf16.mxu0 0
  %69 = vmatpush2.bf16.msra.mxu0 0
  %70 = vmatprep.subr.bf16.mxu0 0
  %71 = vmatpush2.bf16.msra.mxu0 0
  %72 = vmatprep.subr.bf16.mxu0 0
  %73 = vmatpush2.bf16.msra.mxu0 0
  %74 = vmatprep.subr.bf16.mxu0 0
  %75 = vmatpush2.bf16.msra.mxu0 0
  %76 = vmatprep.subr.bf16.mxu0 0
  %77 = vmatpush2.bf16.msra.mxu0 0
  %78 = vmatprep.subr.bf16.mxu0 0
  %79 = vmatpush2.bf16.msra.mxu0 0
  %80 = vmatprep.subr.bf16.mxu0 0
  %81 = vmatpush2.bf16.msra.mxu0 0
  %82 = vmatprep.mubr.bf16.mxu0 0
  %83 = vmatmul.mubr.bf16.gmra.mxu0 %v48
  %v84 = vpop.f32.mrf.mxu0
  %v85 = vadd.f32 0.0, %v84
  %v86 = vpop.f32.mrf.mxu0
  %v87 = vpop.f32.mrf.mxu0
  %v88 = vadd.f32 0.0, %v87
  %v89 = vpop.f32.mrf.mxu0
  %90 = vdwg.mxu0
  %v91 = vadd.f32 %v25, %v85
  %v92 = vadd.f32 %v26, %v88
  %vm93 = vcmask 130048
  %94 = vst.msk [vmem:[#allocation2] sm:$0xff] %vm93, %v91
  %95 = vst.msk [vmem:[#allocation2 + $0x8] sm:$0xff] %vm93, %v92
  // Predicated region
  $region22: #{stage_model_forward.28} parent=0 // pred_check
    %p96 = pneg %p18
  $region23: #{stage_model_forward.28} parent=0 // pred_check_branch
    %98 = sbr.rel (%p96) target = $region25
  $region24: #{stage_model_forward.28} parent=0 // pred_region
    %v99 = vld [vmem:[#allocation2] sm:$0xff]
    %v100 = vld [vmem:[#allocation2 + $0x8] sm:$0xff]
    %v101 = vld [vmem:[%s2] sm:$0x1]
    %v103 = vlaneseq
    %v104 = vshrl.u32 %v103, 7
    %v105 = vsub.s32 0, %v104
    %v106 = vrot.slane %v101, %v105
    %v108 = vadd.f32 %v99, %v106
    %v109 = vadd.f32 %v100, %v106
    %v110 = vld [vmem:[%s3] sm:$0xff]
    %v111 = vld [vmem:[%s3 + $0x8] sm:$0xff]
    %v112 = vadd.f32 %v108, %v110
    %v113 = vadd.f32 %v109, %v111
    %114 = vst.msk [vmem:[%s4] sm:$0xff] %vm93, %v112
    %115 = vst.msk [vmem:[%s4 + $0x8] sm:$0xff] %vm93, %v113
  $region25: #{stage_model_forward.28} parent=0 // pred_fallthru
    _
  // Predicated region
  $region26: #{stage_model_forward.28} parent=0 // pred_check
    _
  $region27: #{stage_model_forward.28} parent=0 // pred_check_branch
    %117 = sbr.rel (0) target = $region29
  $region28: #{stage_model_forward.28} parent=0 // pred_region
    _
  $region29: #{stage_model_forward.28} parent=0 // pred_fallthru
    _
  // Predicated region
  $region30: #{stage_model_forward.28} parent=0 // pred_check
    _
  $region31: #{stage_model_forward.28} parent=0 // pred_check_branch
    %119 = sbr.rel (0) target = $region33
  $region32: #{stage_model_forward.28} parent=0 // pred_region
    _
  $region33: #{stage_model_forward.28} parent=0 // pred_fallthru
    _

// kernel: stage_model_forward.29
$region0: #{stage_model_forward.29}
  #allocation0 [shape = 'u32[]', space=smem, size = 0x4, offset = 0x4, fixed_abs, tag = 'smem constant byte address 0x4 - core index']
  #allocation1 [shape = 'u32[144,128]{1,0:T(1,128)}', space=vmem, size = 0x12000, scoped, tag = 'internal scratch']
  #allocation2 [shape = 'f32[16,48]{1,0:T(8,128)}', space=vmem, size = 0x2000, scoped, tag = 'scratch operand']
  %s0 = inlined_call_operand.vmem [shape: f32[16,16], index: 0, kind: input, shape index: {}]
  %s1 = inlined_call_operand.vmem [shape: bf16[16,48], index: 1, kind: input, shape index: {}]
  %s2 = inlined_call_operand.vmem [shape: f32[1,48], index: 2, kind: input, shape index: {}]
  %s3 = inlined_call_operand.vmem [shape: f32[16,48], index: 3, kind: output, shape index: {}]
  %s4 = sld [smem:[#allocation0]]
  $region30: #{stage_model_forward.29} parent=0
    _
  %s6 = ssub.s32 1, %s4
  %s7 = scalar_select 0, %s6, %s4
  // Predicated region
  $region2: #{stage_model_forward.29} parent=0 // pred_check
    _
  $region3: #{stage_model_forward.29} parent=0 // pred_check_branch
    %9 = sbr.rel (0) target = $region5
  $region4: #{stage_model_forward.29} parent=0 // pred_region
    _
  $region5: #{stage_model_forward.29} parent=0 // pred_fallthru
    _
  // Predicated region
  $region6: #{stage_model_forward.29} parent=0 // pred_check
    _
  $region7: #{stage_model_forward.29} parent=0 // pred_check_branch
    %11 = sbr.rel (0) target = $region9
  $region8: #{stage_model_forward.29} parent=0 // pred_region
    _
  $region9: #{stage_model_forward.29} parent=0 // pred_fallthru
    _
  // Predicated region
  $region10: #{stage_model_forward.29} parent=0 // pred_check
    _
  $region11: #{stage_model_forward.29} parent=0 // pred_check_branch
    %13 = sbr.rel (0) target = $region13
  $region12: #{stage_model_forward.29} parent=0 // pred_region
    _
  $region13: #{stage_model_forward.29} parent=0 // pred_fallthru
    _
  %p15 = scmp.eq.s32.totalorder 0, 0
  // Predicated region
  $region14: #{stage_model_forward.29} parent=0 // pred_check
    %p16 = pneg %p15
  $region15: #{stage_model_forward.29} parent=0 // pred_check_branch
    %18 = sbr.rel (%p16) target = $region17
  $region16: #{stage_model_forward.29} parent=0 // pred_region
    %vm19 = vcmask 392192
    %20 = vst.msk [vmem:[#allocation2] sm:$0xff] %vm19, 0.0
    %21 = vst.msk [vmem:[#allocation2 + $0x8] sm:$0xff] %vm19, 0.0
  $region17: #{stage_model_forward.29} parent=0 // pred_fallthru
    _
  %v22 = vld [vmem:[#allocation2] sm:$0xff]
  %v23 = vld [vmem:[#allocation2 + $0x8] sm:$0xff]
  %v24 = vld [vmem:[%s0] sm:$0xff]
  %v25 = vld [vmem:[%s0 + $0x8] sm:$0xff]
  %v26 = vpack.c.bf16 %v25, %v24
  %v27 = vld [vmem:[%s1] sm:$0xf]
  %v28 = vld [vmem:[%s1 + $0x4] sm:$0xf]
  %v31 = vunpack.c.l.b16 %v27
  %v32 = vunpack.c.l.b16 %v28
  %v33 = vpack.c.b16 %v32, %v31
  %vm35 = vcmask 130048
  %v37 = vsel %vm35, %v26, 0
  %39 = vmatprep.subr.bf16.mxu0 0
  %40 = vmatpush1.bf16.msra.mxu0 0
  %41 = vmatprep.subr.bf16.mxu0 0
  %42 = vmatpush1.bf16.msra.mxu0 0
  %43 = vmatprep.subr.bf16.mxu0 0
  %44 = vmatpush1.bf16.msra.mxu0 0
  %45 = vmatprep.subr.bf16.mxu0 0
  %46 = vmatpush1.bf16.msra.mxu0 0
  %47 = vmatprep.subr.bf16.mxu0 0
  %48 = vmatpush1.bf16.msra.mxu0 0
  %49 = vmatprep.subr.bf16.mxu0 0
  %50 = vmatpush1.bf16.msra.mxu0 0
  %51 = vmatprep.subr.bf16.mxu0 0
  %52 = vmatpush1.bf16.msra.mxu0 0
  %53 = vmatprep.subr.bf16.mxu0 0
  %54 = vmatpush1.bf16.msra.mxu0 %v33
  %55 = vmatprep.subr.bf16.mxu0 0
  %56 = vmatpush2.bf16.msra.mxu0 0
  %57 = vmatprep.subr.bf16.mxu0 0
  %58 = vmatpush2.bf16.msra.mxu0 0
  %59 = vmatprep.subr.bf16.mxu0 0
  %60 = vmatpush2.bf16.msra.mxu0 0
  %61 = vmatprep.subr.bf16.mxu0 0
  %62 = vmatpush2.bf16.msra.mxu0 0
  %63 = vmatprep.subr.bf16.mxu0 0
  %64 = vmatpush2.bf16.msra.mxu0 0
  %65 = vmatprep.subr.bf16.mxu0 0
  %66 = vmatpush2.bf16.msra.mxu0 0
  %67 = vmatprep.subr.bf16.mxu0 0
  %68 = vmatpush2.bf16.msra.mxu0 0
  %69 = vmatprep.subr.bf16.mxu0 0
  %70 = vmatpush2.bf16.msra.mxu0 0
  %71 = vmatprep.mubr.bf16.mxu0 0
  %72 = vmatmul.mubr.bf16.gmra.mxu0 %v37
  %v73 = vpop.f32.mrf.mxu0
  %v74 = vadd.f32 0.0, %v73
  %v75 = vpop.f32.mrf.mxu0
  %v76 = vpop.f32.mrf.mxu0
  %v77 = vadd.f32 0.0, %v76
  %v78 = vpop.f32.mrf.mxu0
  %79 = vdwg.mxu0
  %v80 = vadd.f32 %v22, %v74
  %v81 = vadd.f32 %v23, %v77
  %vm82 = vcmask 392192
  %83 = vst.msk [vmem:[#allocation2] sm:$0xff] %vm82, %v80
  %84 = vst.msk [vmem:[#allocation2 + $0x8] sm:$0xff] %vm82, %v81
  // Predicated region
  $region18: #{stage_model_forward.29} parent=0 // pred_check
    %p85 = pneg %p15
  $region19: #{stage_model_forward.29} parent=0 // pred_check_branch
    %87 = sbr.rel (%p85) target = $region21
  $region20: #{stage_model_forward.29} parent=0 // pred_region
    %v88 = vld [vmem:[#allocation2] sm:$0xff]
    %v89 = vld [vmem:[#allocation2 + $0x8] sm:$0xff]
    %v90 = vld [vmem:[%s2] sm:$0x1]
    %v92 = vlaneseq
    %v93 = vshrl.u32 %v92, 7
    %v94 = vsub.s32 0, %v93
    %v95 = vrot.slane %v90, %v94
    %v97 = vadd.f32 %v88, %v95
    %v98 = vadd.f32 %v89, %v95
    %99 = vst.msk [vmem:[%s3] sm:$0xff] %vm82, %v97
    %100 = vst.msk [vmem:[%s3 + $0x8] sm:$0xff] %vm82, %v98
  $region21: #{stage_model_forward.29} parent=0 // pred_fallthru
    _
  // Predicated region
  $region22: #{stage_model_forward.29} parent=0 // pred_check
    _
  $region23: #{stage_model_forward.29} parent=0 // pred_check_branch
    %102 = sbr.rel (0) target = $region25
  $region24: #{stage_model_forward.29} parent=0 // pred_region
    _
  $region25: #{stage_model_forward.29} parent=0 // pred_fallthru
    _
  // Predicated region
  $region26: #{stage_model_forward.29} parent=0 // pred_check
    _
  $region27: #{stage_model_forward.29} parent=0 // pred_check_branch
    %104 = sbr.rel (0) target = $region29
  $region28: #{stage_model_forward.29} parent=0 // pred_region
    _
  $region29: #{stage_model_forward.29} parent=0 // pred_fallthru
    _

// kernel: stage_model_forward.32
$region0: #{stage_model_forward.32}
  #allocation0 [shape = 'u32[]', space=smem, size = 0x4, offset = 0x4, fixed_abs, tag = 'smem constant byte address 0x4 - core index']
  #allocation1 [shape = 'u32[144,128]{1,0:T(1,128)}', space=vmem, size = 0x12000, scoped, tag = 'internal scratch']
  #allocation2 [shape = 'f32[16,32]{1,0:T(8,128)}', space=vmem, size = 0x2000, scoped, tag = 'scratch operand']
  %s0 = inlined_call_operand.vmem [shape: f32[16,16], index: 0, kind: input, shape index: {}]
  %s1 = inlined_call_operand.vmem [shape: bf16[16,32], index: 1, kind: input, shape index: {}]
  %s2 = inlined_call_operand.vmem [shape: f32[1,32], index: 2, kind: input, shape index: {}]
  %s3 = inlined_call_operand.vmem [shape: f32[16,32], index: 3, kind: output, shape index: {}]
  %s4 = sld [smem:[#allocation0]]
  $region30: #{stage_model_forward.32} parent=0
    _
  %s6 = ssub.s32 1, %s4
  %s7 = scalar_select 0, %s6, %s4
  // Predicated region
  $region2: #{stage_model_forward.32} parent=0 // pred_check
    _
  $region3: #{stage_model_forward.32} parent=0 // pred_check_branch
    %9 = sbr.rel (0) target = $region5
  $region4: #{stage_model_forward.32} parent=0 // pred_region
    _
  $region5: #{stage_model_forward.32} parent=0 // pred_fallthru
    _
  // Predicated region
  $region6: #{stage_model_forward.32} parent=0 // pred_check
    _
  $region7: #{stage_model_forward.32} parent=0 // pred_check_branch
    %11 = sbr.rel (0) target = $region9
  $region8: #{stage_model_forward.32} parent=0 // pred_region
    _
  $region9: #{stage_model_forward.32} parent=0 // pred_fallthru
    _
  // Predicated region
  $region10: #{stage_model_forward.32} parent=0 // pred_check
    _
  $region11: #{stage_model_forward.32} parent=0 // pred_check_branch
    %13 = sbr.rel (0) target = $region13
  $region12: #{stage_model_forward.32} parent=0 // pred_region
    _
  $region13: #{stage_model_forward.32} parent=0 // pred_fallthru
    _
  %p15 = scmp.eq.s32.totalorder 0, 0
  // Predicated region
  $region14: #{stage_model_forward.32} parent=0 // pred_check
    %p16 = pneg %p15
  $region15: #{stage_model_forward.32} parent=0 // pred_check_branch
    %18 = sbr.rel (%p16) target = $region17
  $region16: #{stage_model_forward.32} parent=0 // pred_region
    %vm19 = vcmask 261120
    %20 = vst.msk [vmem:[#allocation2] sm:$0xff] %vm19, 0.0
    %21 = vst.msk [vmem:[#allocation2 + $0x8] sm:$0xff] %vm19, 0.0
  $region17: #{stage_model_forward.32} parent=0 // pred_fallthru
    _
  %v22 = vld [vmem:[#allocation2] sm:$0xff]
  %v23 = vld [vmem:[#allocation2 + $0x8] sm:$0xff]
  %v24 = vld [vmem:[%s0] sm:$0xff]
  %v25 = vld [vmem:[%s0 + $0x8] sm:$0xff]
  %v26 = vpack.c.bf16 %v25, %v24
  %v27 = vld [vmem:[%s1] sm:$0xf]
  %v28 = vld [vmem:[%s1 + $0x4] sm:$0xf]
  %v31 = vunpack.c.l.b16 %v27
  %v32 = vunpack.c.l.b16 %v28
  %v33 = vpack.c.b16 %v32, %v31
  %vm35 = vcmask 130048
  %v37 = vsel %vm35, %v26, 0
  %39 = vmatprep.subr.bf16.mxu0 0
  %40 = vmatpush1.bf16.msra.mxu0 0
  %41 = vmatprep.subr.bf16.mxu0 0
  %42 = vmatpush1.bf16.msra.mxu0 0
  %43 = vmatprep.subr.bf16.mxu0 0
  %44 = vmatpush1.bf16.msra.mxu0 0
  %45 = vmatprep.subr.bf16.mxu0 0
  %46 = vmatpush1.bf16.msra.mxu0 0
  %47 = vmatprep.subr.bf16.mxu0 0
  %48 = vmatpush1.bf16.msra.mxu0 0
  %49 = vmatprep.subr.bf16.mxu0 0
  %50 = vmatpush1.bf16.msra.mxu0 0
  %51 = vmatprep.subr.bf16.mxu0 0
  %52 = vmatpush1.bf16.msra.mxu0 0
  %53 = vmatprep.subr.bf16.mxu0 0
  %54 = vmatpush1.bf16.msra.mxu0 %v33
  %55 = vmatprep.subr.bf16.mxu0 0
  %56 = vmatpush2.bf16.msra.mxu0 0
  %57 = vmatprep.subr.bf16.mxu0 0
  %58 = vmatpush2.bf16.msra.mxu0 0
  %59 = vmatprep.subr.bf16.mxu0 0
  %60 = vmatpush2.bf16.msra.mxu0 0
  %61 = vmatprep.subr.bf16.mxu0 0
  %62 = vmatpush2.bf16.msra.mxu0 0
  %63 = vmatprep.subr.bf16.mxu0 0
  %64 = vmatpush2.bf16.msra.mxu0 0
  %65 = vmatprep.subr.bf16.mxu0 0
  %66 = vmatpush2.bf16.msra.mxu0 0
  %67 = vmatprep.subr.bf16.mxu0 0
  %68 = vmatpush2.bf16.msra.mxu0 0
  %69 = vmatprep.subr.bf16.mxu0 0
  %70 = vmatpush2.bf16.msra.mxu0 0
  %71 = vmatprep.mubr.bf16.mxu0 0
  %72 = vmatmul.mubr.bf16.gmra.mxu0 %v37
  %v73 = vpop.f32.mrf.mxu0
  %v74 = vadd.f32 0.0, %v73
  %v75 = vpop.f32.mrf.mxu0
  %v76 = vpop.f32.mrf.mxu0
  %v77 = vadd.f32 0.0, %v76
  %v78 = vpop.f32.mrf.mxu0
  %79 = vdwg.mxu0
  %v80 = vadd.f32 %v22, %v74
  %v81 = vadd.f32 %v23, %v77
  %vm82 = vcmask 261120
  %83 = vst.msk [vmem:[#allocation2] sm:$0xff] %vm82, %v80
  %84 = vst.msk [vmem:[#allocation2 + $0x8] sm:$0xff] %vm82, %v81
  // Predicated region
  $region18: #{stage_model_forward.32} parent=0 // pred_check
    %p85 = pneg %p15
  $region19: #{stage_model_forward.32} parent=0 // pred_check_branch
    %87 = sbr.rel (%p85) target = $region21
  $region20: #{stage_model_forward.32} parent=0 // pred_region
    %v88 = vld [vmem:[#allocation2] sm:$0xff]
    %v89 = vld [vmem:[#allocation2 + $0x8] sm:$0xff]
    %v90 = vld [vmem:[%s2] sm:$0x1]
    %v92 = vlaneseq
    %v93 = vshrl.u32 %v92, 7
    %v94 = vsub.s32 0, %v93
    %v95 = vrot.slane %v90, %v94
    %v97 = vadd.f32 %v88, %v95
    %v98 = vadd.f32 %v89, %v95
    %v99 = vmul.f32 %v97, 0.5
    %v100 = vmul.f32 %v98, 0.5
    %v101 = vmul.f32 %v97, 0.70710677
    %v102 = vmul.f32 %v98, 0.70710677
    %v103 = verf.f32.pop %v101
    %v104 = verf.f32.pop %v102
    %v105 = vadd.f32 %v103, 1.0
    %v106 = vadd.f32 %v104, 1.0
    %v107 = vmul.f32 %v99, %v105
    %v108 = vmul.f32 %v100, %v106
    %109 = vst.msk [vmem:[%s3] sm:$0xff] %vm82, %v107
    %110 = vst.msk [vmem:[%s3 + $0x8] sm:$0xff] %vm82, %v108
  $region21: #{stage_model_forward.32} parent=0 // pred_fallthru
    _
  // Predicated region
  $region22: #{stage_model_forward.32} parent=0 // pred_check
    _
  $region23: #{stage_model_forward.32} parent=0 // pred_check_branch
    %112 = sbr.rel (0) target = $region25
  $region24: #{stage_model_forward.32} parent=0 // pred_region
    _
  $region25: #{stage_model_forward.32} parent=0 // pred_fallthru
    _
  // Predicated region
  $region26: #{stage_model_forward.32} parent=0 // pred_check
    _
  $region27: #{stage_model_forward.32} parent=0 // pred_check_branch
    %114 = sbr.rel (0) target = $region29
  $region28: #{stage_model_forward.32} parent=0 // pred_region
    _
  $region29: #{stage_model_forward.32} parent=0 // pred_fallthru
    _

// kernel: stage_model_forward.30
$region0: #{stage_model_forward.30}
  #allocation0 [shape = 'u32[]', space=smem, size = 0x4, offset = 0x4, fixed_abs, tag = 'smem constant byte address 0x4 - core index']
  #allocation1 [shape = 'u32[144,128]{1,0:T(1,128)}', space=vmem, size = 0x12000, scoped, tag = 'internal scratch']
  %s0 = inlined_call_operand.vmem [shape: f32[2,4,8,4], index: 0, kind: input, shape index: {}]
  %s1 = inlined_call_operand.vmem [shape: f32[2,4,8,4], index: 1, kind: input, shape index: {}]
  %s2 = inlined_call_operand.vmem [shape: f32[2,4,8,4], index: 2, kind: input, shape index: {}]
  %s3 = inlined_call_operand.vmem [shape: f32[2,4,8,4], index: 3, kind: output, shape index: {}]
  %s4 = sld [smem:[#allocation0]]
  $region45: #{stage_model_forward.30} parent=0
    _
  %s6 = ssub.s32 1, %s4
  %s7 = scalar_select 0, %s6, %s4
  loop: start=0, step=1, limit=10
  $region2: #{stage_model_forward.30} parent=0 // loop_pre_header
    _
  $region3: #{stage_model_forward.30} parent=0 // loop_header
    %s9 = sphi 0, %s13
    %p10 = scmp.ge.s32.totalorder %s9, 10
    %s16 = sphi 0, %s28
    %s17 = sphi 0, %s24
    %s18 = sphi 0, %s16
    %s19 = sphi 0, %s17
    %s20 = sphi 0, %s18
    %s21 = sphi 0, %s19
    %s33 = sphi 0, %s35
    %s36 = sphi 0, %s33
    %s37 = sphi 0, %s36
    %s53 = sphi 0, %s37
    %s61 = sphi 0, %s63
    %s64 = sphi 0, %s61
    %s65 = sphi 0, %s64
    %s81 = sphi 0, %s65
    %s89 = sphi 0, %s91
    %s92 = sphi 0, %s89
    %s93 = sphi 0, %s92
    %s109 = sphi 0, %s93
    %s117 = sphi 0, %s119
    %s120 = sphi 0, %s117
    %s121 = sphi 0, %s120
    %s137 = sphi 0, %s121
  $region4: #{stage_model_forward.30} parent=0 // loop_header_branch
    %12 = sbr.rel (%p10) target = $region8
  $region5: #{stage_model_forward.30} parent=0 // loop_body
    %s14 = ssub.s32 %s9, 1
    %s15 = ssub.s32 %s9, 2
    %s22 = sadd.s32 1, %s17
    %p23 = scmp.ge.s32.totalorder %s22, 4
    %s24 = scalar_select %p23, 0, %s22
    %s25 = sadd.s32 1, %s16
    %s26 = scalar_select %p23, %s25, %s16
    %p27 = scmp.ge.s32.totalorder %s26, 2
    %s28 = scalar_select %p27, 0, %s26
    %s29 = ssub.s32 %s16, %s28
    %s30 = ssub.s32 %s17, %s24
    %s31 = sor.u32 %s29, %s30
    %p32 = scmp.eq.s32.totalorder %s31, 0
    %s34 = sadd.s32 %s33, 1
    %s35 = scalar_select %p32, %s33, %s34
    %p38 = pneg %p32
    %p39 = scmp.eq.s32.totalorder %s9, 7
    %p40 = por %p38, %p39
    %p41 = scmp.ne.s32.totalorder %s33, %s36
    %p42 = scmp.eq.s32.totalorder %s9, 0
    %p43 = por %p41, %p42
    %p44 = scmp.ne.s32.totalorder %s33, %s36
    %p45 = scmp.eq.s32.totalorder %s14, 7
    %p46 = por %p44, %p45
    %p47 = scmp.ne.s32.totalorder %s36, %s37
    %p48 = scmp.eq.s32.totalorder %s14, 0
    %p49 = por %p47, %p48
    %p50 = scmp.ne.s32.totalorder %s36, %s37
    %p51 = scmp.eq.s32.totalorder %s15, 7
    %p52 = por %p50, %p51
    %p54 = scmp.ne.s32.totalorder %s37, %s53
    %p55 = scmp.eq.s32.totalorder %s15, 0
    %p56 = por %p54, %p55
    %s57 = ssub.s32 %s16, %s28
    %s58 = ssub.s32 %s17, %s24
    %s59 = sor.u32 %s57, %s58
    %p60 = scmp.eq.s32.totalorder %s59, 0
    %s62 = sadd.s32 %s61, 1
    %s63 = scalar_select %p60, %s61, %s62
    %p66 = pneg %p60
    %p67 = scmp.eq.s32.totalorder %s9, 7
    %p68 = por %p66, %p67
    %p69 = scmp.ne.s32.totalorder %s61, %s64
    %p70 = scmp.eq.s32.totalorder %s9, 0
    %p71 = por %p69, %p70
    %p72 = scmp.ne.s32.totalorder %s61, %s64
    %p73 = scmp.eq.s32.totalorder %s14, 7
    %p74 = por %p72, %p73
    %p75 = scmp.ne.s32.totalorder %s64, %s65
    %p76 = scmp.eq.s32.totalorder %s14, 0
    %p77 = por %p75, %p76
    %p78 = scmp.ne.s32.totalorder %s64, %s65
    %p79 = scmp.eq.s32.totalorder %s15, 7
    %p80 = por %p78, %p79
    %p82 = scmp.ne.s32.totalorder %s65, %s81
    %p83 = scmp.eq.s32.totalorder %s15, 0
    %p84 = por %p82, %p83
    %s85 = ssub.s32 %s16, %s28
    %s86 = ssub.s32 %s17, %s24
    %s87 = sor.u32 %s85, %s86
    %p88 = scmp.eq.s32.totalorder %s87, 0
    %s90 = sadd.s32 %s89, 1
    %s91 = scalar_select %p88, %s89, %s90
    %p94 = pneg %p88
    %p95 = scmp.eq.s32.totalorder %s9, 7
    %p96 = por %p94, %p95
    %p97 = scmp.ne.s32.totalorder %s89, %s92
    %p98 = scmp.eq.s32.totalorder %s9, 0
    %p99 = por %p97, %p98
    %p100 = scmp.ne.s32.totalorder %s89, %s92
    %p101 = scmp.eq.s32.totalorder %s14, 7
    %p102 = por %p100, %p101
    %p103 = scmp.ne.s32.totalorder %s92, %s93
    %p104 = scmp.eq.s32.totalorder %s14, 0
    %p105 = por %p103, %p104
    %p106 = scmp.ne.s32.totalorder %s92, %s93
    %p107 = scmp.eq.s32.totalorder %s15, 7
    %p108 = por %p106, %p107
    %p110 = scmp.ne.s32.totalorder %s93, %s109
    %p111 = scmp.eq.s32.totalorder %s15, 0
    %p112 = por %p110, %p111
    %s113 = ssub.s32 %s16, %s28
    %s114 = ssub.s32 %s17, %s24
    %s115 = sor.u32 %s113, %s114
    %p116 = scmp.eq.s32.totalorder %s115, 0
    %s118 = sadd.s32 %s117, 1
    %s119 = scalar_select %p116, %s117, %s118
    %p122 = pneg %p116
    %p123 = scmp.eq.s32.totalorder %s9, 7
    %p124 = por %p122, %p123
    %p125 = scmp.ne.s32.totalorder %s117, %s120
    %p126 = scmp.eq.s32.totalorder %s9, 0
    %p127 = por %p125, %p126
    %p128 = scmp.ne.s32.totalorder %s117, %s120
    %p129 = scmp.eq.s32.totalorder %s14, 7
    %p130 = por %p128, %p129
    %p131 = scmp.ne.s32.totalorder %s120, %s121
    %p132 = scmp.eq.s32.totalorder %s14, 0
    %p133 = por %p131, %p132
    %p134 = scmp.ne.s32.totalorder %s120, %s121
    %p135 = scmp.eq.s32.totalorder %s15, 7
    %p136 = por %p134, %p135
    %p138 = scmp.ne.s32.totalorder %s121, %s137
    %p139 = scmp.eq.s32.totalorder %s15, 0
    %p140 = por %p138, %p139
    %p141 = scmp.le.s32.totalorder 1, %s9
    %p142 = scmp.lt.s32.totalorder %s9, 9
    %p143 = pnand %p141, %p142
    %p144 = pneg %p143
    // Predicated region
    $region9: #{stage_model_forward.30} parent=5 // pred_check
      _
    $region10: #{stage_model_forward.30} parent=5 // pred_check_branch
      %146 = sbr.rel (%p143) target = $region12
    $region11: #{stage_model_forward.30} parent=5 // pred_region
      %s147 = ssub.s32 %s9, 1
    $region12: #{stage_model_forward.30} parent=5 // pred_fallthru
      _
    %p148 = scmp.lt.s32.totalorder %s9, 8
    // Predicated region
    $region13: #{stage_model_forward.30} parent=5 // pred_check
      %p149 = pneg %p148
    $region14: #{stage_model_forward.30} parent=5 // pred_check_branch
      %151 = sbr.rel (%p149) target = $region16
    $region15: #{stage_model_forward.30} parent=5 // pred_region
      // Predicated region
      $region17: #{stage_model_forward.30} parent=15 // pred_check
        %p152 = pneg %p43
      $region18: #{stage_model_forward.30} parent=15 // pred_check_branch
        %154 = sbr.rel (%p152) target = $region20
      $region19: #{stage_model_forward.30} parent=15 // pred_region
        %p155 = scmp.lt.s32.totalorder %s16, 1
        %s156 = scalar_select %p155, %s16, 1
        %p157 = scmp.lt.s32.totalorder %s17, 3
        %s158 = scalar_select %p157, %s17, 3
        %s159 = smul.addr %s156, 4
        %s160 = sadd.s32 %s158, %s159
        %s161 = smul.addr %s160, 8
        %s162 = scalar_lea.vmem %s0, %s161
      $region20: #{stage_model_forward.30} parent=15 // pred_fallthru
        _
      // Predicated region
      $region21: #{stage_model_forward.30} parent=15 // pred_check
        %p163 = pneg %p71
      $region22: #{stage_model_forward.30} parent=15 // pred_check_branch
        %165 = sbr.rel (%p163) target = $region24
      $region23: #{stage_model_forward.30} parent=15 // pred_region
        %p166 = scmp.lt.s32.totalorder %s16, 1
        %s167 = scalar_select %p166, %s16, 1
        %p168 = scmp.lt.s32.totalorder %s17, 3
        %s169 = scalar_select %p168, %s17, 3
        %s170 = smul.addr %s167, 4
        %s171 = sadd.s32 %s169, %s170
        %s172 = smul.addr %s171, 8
        %s173 = scalar_lea.vmem %s1, %s172
      $region24: #{stage_model_forward.30} parent=15 // pred_fallthru
        _
      // Predicated region
      $region25: #{stage_model_forward.30} parent=15 // pred_check
        %p174 = pneg %p99
      $region26: #{stage_model_forward.30} parent=15 // pred_check_branch
        %176 = sbr.rel (%p174) target = $region28
      $region27: #{stage_model_forward.30} parent=15 // pred_region
        %p177 = scmp.lt.s32.totalorder %s16, 1
        %s178 = scalar_select %p177, %s16, 1
        %p179 = scmp.lt.s32.totalorder %s17, 3
        %s180 = scalar_select %p179, %s17, 3
        %s181 = smul.addr %s178, 4
        %s182 = sadd.s32 %s180, %s181
        %s183 = smul.addr %s182, 8
        %s184 = scalar_lea.vmem %s2, %s183
      $region28: #{stage_model_forward.30} parent=15 // pred_fallthru
        _
    $region16: #{stage_model_forward.30} parent=5 // pred_fallthru
      _
    %p185 = scmp.le.s32.totalorder 1, %s9
    %p186 = scmp.lt.s32.totalorder %s9, 9
    %p187 = pnand %p185, %p186
    %p188 = pneg %p187
    // Predicated region
    $region29: #{stage_model_forward.30} parent=5 // pred_check
      _
    $region30: #{stage_model_forward.30} parent=5 // pred_check_branch
      %190 = sbr.rel (%p187) target = $region32
    $region31: #{stage_model_forward.30} parent=5 // pred_region
      %s191 = ssub.s32 %s9, 1
      %p192 = scmp.lt.s32.totalorder %s18, 1
      %s193 = scalar_select %p192, %s18, 1
      %p194 = scmp.lt.s32.totalorder %s19, 3
      %s195 = scalar_select %p194, %s19, 3
      %s196 = smul.addr %s193, 4
      %s197 = sadd.s32 %s195, %s196
      %s198 = smul.addr %s197, 8
      %s199 = scalar_lea.vmem %s0, %s198
      %p200 = pneg %p49
      %p201 = pneg %p46
      %p202 = scmp.lt.s32.totalorder %s18, 1
      %s203 = scalar_select %p202, %s18, 1
      %p204 = scmp.lt.s32.totalorder %s19, 3
      %s205 = scalar_select %p204, %s19, 3
      %s206 = smul.addr %s203, 4
      %s207 = sadd.s32 %s205, %s206
      %s208 = smul.addr %s207, 8
      %s209 = scalar_lea.vmem %s1, %s208
      %p210 = pneg %p77
      %p211 = pneg %p74
      %p212 = scmp.lt.s32.totalorder %s18, 1
      %s213 = scalar_select %p212, %s18, 1
      %p214 = scmp.lt.s32.totalorder %s19, 3
      %s215 = scalar_select %p214, %s19, 3
      %s216 = smul.addr %s213, 4
      %s217 = sadd.s32 %s215, %s216
      %s218 = smul.addr %s217, 8
      %s219 = scalar_lea.vmem %s2, %s218
      %p220 = pneg %p105
      %p221 = pneg %p102
      %p222 = pneg %p133
      %p223 = pneg %p130
      %p224 = scmp.lt.s32.totalorder %s18, 1
      %s225 = scalar_select %p224, %s18, 1
      %p226 = scmp.lt.s32.totalorder %s19, 3
      %s227 = scalar_select %p226, %s19, 3
      %s228 = smul.addr %s225, 4
      %s229 = sadd.s32 %s227, %s228
      %s230 = smul.addr %s229, 8
      %s231 = scalar_lea.vmem %s3, %s230
      %p232 = scmp.lt.s32.totalorder %s18, 1
      %s233 = scalar_select %p232, %s18, 1
      %p234 = scmp.lt.s32.totalorder %s19, 3
      %s235 = scalar_select %p234, %s19, 3
      %s236 = smul.addr %s233, 4
      %s237 = sadd.s32 %s235, %s236
      %s238 = smul.addr %s237, 8
      %s239 = scalar_lea.vmem %s0, %s238
      %p240 = scmp.lt.s32.totalorder %s18, 1
      %s241 = scalar_select %p240, %s18, 1
      %p242 = scmp.lt.s32.totalorder %s19, 3
      %s243 = scalar_select %p242, %s19, 3
      %s244 = smul.addr %s241, 4
      %s245 = sadd.s32 %s243, %s244
      %s246 = smul.addr %s245, 8
      %s247 = scalar_lea.vmem %s1, %s246
      %p248 = scmp.lt.s32.totalorder %s18, 1
      %s249 = scalar_select %p248, %s18, 1
      %p250 = scmp.lt.s32.totalorder %s19, 3
      %s251 = scalar_select %p250, %s19, 3
      %s252 = smul.addr %s249, 4
      %s253 = sadd.s32 %s251, %s252
      %s254 = smul.addr %s253, 8
      %s255 = scalar_lea.vmem %s2, %s254
      %p256 = scmp.lt.s32.totalorder %s18, 1
      %s257 = scalar_select %p256, %s18, 1
      %p258 = scmp.lt.s32.totalorder %s19, 3
      %s259 = scalar_select %p258, %s19, 3
      %s260 = smul.addr %s257, 4
      %s261 = sadd.s32 %s259, %s260
      %s262 = smul.addr %s261, 8
      %s263 = scalar_lea.vmem %s3, %s262
      %v265 = vld [vmem:[%s239] sm:$0xff]
      %v266 = vpack.c.bf16 %v265, %v265
      %v267 = vld [vmem:[%s247] sm:$0xff]
      %v268 = vpack.c.bf16 %v267, %v267
      %v269 = vld [vmem:[%s255] sm:$0xff]
      %v270 = vpack.c.bf16 %v269, %v269
      %vm271 = vcmask 31744
      %v273 = vsel %vm271, %v266, 0
      %v276 = vsel %vm271, %v268, 0
      %278 = vmatprep.subr.bf16.mxu0 0
      %279 = vmatpush1.bf16.xpose.msra.mxu0 0
      %280 = vmatprep.subr.bf16.mxu0 0
      %281 = vmatpush1.bf16.xpose.msra.mxu0 0
      %282 = vmatprep.subr.bf16.mxu0 0
      %283 = vmatpush1.bf16.xpose.msra.mxu0 0
      %284 = vmatprep.subr.bf16.mxu0 0
      %285 = vmatpush1.bf16.xpose.msra.mxu0 0
      %286 = vmatprep.subr.bf16.mxu0 0
      %287 = vmatpush1.bf16.xpose.msra.mxu0 0
      %288 = vmatprep.subr.bf16.mxu0 0
      %289 = vmatpush1.bf16.xpose.msra.mxu0 0
      %290 = vmatprep.subr.bf16.mxu0 0
      %291 = vmatpush1.bf16.xpose.msra.mxu0 0
      %292 = vmatprep.subr.bf16.mxu0 0
      %293 = vmatpush1.bf16.xpose.msra.mxu0 %v276
      %294 = vmatprep.subr.bf16.mxu0 0
      %295 = vmatpush2.bf16.xpose.msra.mxu0 0
      %296 = vmatprep.subr.bf16.mxu0 0
      %297 = vmatpush2.bf16.xpose.msra.mxu0 0
      %298 = vmatprep.subr.bf16.mxu0 0
      %299 = vmatpush2.bf16.xpose.msra.mxu0 0
      %300 = vmatprep.subr.bf16.mxu0 0
      %301 = vmatpush2.bf16.xpose.msra.mxu0 0
      %302 = vmatprep.subr.bf16.mxu0 0
      %303 = vmatpush2.bf16.xpose.msra.mxu0 0
      %304 = vmatprep.subr.bf16.mxu0 0
      %305 = vmatpush2.bf16.xpose.msra.mxu0 0
      %306 = vmatprep.subr.bf16.mxu0 0
      %307 = vmatpush2.bf16.xpose.msra.mxu0 0
      %308 = vmatprep.subr.bf16.mxu0 0
      %309 = vmatpush2.bf16.xpose.msra.mxu0 0
      %310 = vmatprep.mubr.bf16.mxu0 0
      %311 = vmatmul.mubr.bf16.gmra.mxu0 %v273
      %v312 = vpop.f32.mrf.mxu0
      %v313 = vadd.f32 0.0, %v312
      %v314 = vpop.f32.mrf.mxu0
      %v315 = vpop.f32.mrf.mxu0
      %v316 = vpop.f32.mrf.mxu0
      %317 = vdwg.mxu0
      %v318 = vmul.f32 %v313, 0.5
      %vm319 = vcmask 64512
      %v320 = vsel %vm319, %v318, -inf
      %321 = vmax.xlane.f32.xlu0 %v320
      %v322 = vpop.xlane.xlu0 %321
      %v323 = vsub.f32 %v318, %v322
      %v324 = vmul.f32 %v323, 1.442695
      %v325 = vpow.pop %v324
      %v326 = vsel %vm319, %v325, 0.0
      %327 = vadd.xlane.f32.xlu0 %v326
      %v328 = vpop.xlane.xlu0 %327
      %v329 = vrcp.pop %v328
      %v330 = vmul.f32 %v325, %v329
      %v331 = vpack.c.bf16 %v330, %v330
      %v333 = vsel %vm319, %v331, 0
      %vm335 = vcmask 1043456
      %v337 = vsel %vm335, %v270, 0
      %339 = vmatprep.subr.bf16.mxu0 0
      %340 = vmatpush1.bf16.msra.mxu0 0
      %341 = vmatprep.subr.bf16.mxu0 0
      %342 = vmatpush1.bf16.msra.mxu0 0
      %343 = vmatprep.subr.bf16.mxu0 0
      %344 = vmatpush1.bf16.msra.mxu0 0
      %345 = vmatprep.subr.bf16.mxu0 0
      %346 = vmatpush1.bf16.msra.mxu0 0
      %347 = vmatprep.subr.bf16.mxu0 0
      %348 = vmatpush1.bf16.msra.mxu0 0
      %349 = vmatprep.subr.bf16.mxu0 0
      %350 = vmatpush1.bf16.msra.mxu0 0
      %351 = vmatprep.subr.bf16.mxu0 0
      %352 = vmatpush1.bf16.msra.mxu0 0
      %353 = vmatprep.subr.bf16.mxu0 0
      %354 = vmatpush1.bf16.msra.mxu0 %v337
      %355 = vmatprep.subr.bf16.mxu0 0
      %356 = vmatpush2.bf16.msra.mxu0 0
      %357 = vmatprep.subr.bf16.mxu0 0
      %358 = vmatpush2.bf16.msra.mxu0 0
      %359 = vmatprep.subr.bf16.mxu0 0
      %360 = vmatpush2.bf16.msra.mxu0 0
      %361 = vmatprep.subr.bf16.mxu0 0
      %362 = vmatpush2.bf16.msra.mxu0 0
      %363 = vmatprep.subr.bf16.mxu0 0
      %364 = vmatpush2.bf16.msra.mxu0 0
      %365 = vmatprep.subr.bf16.mxu0 0
      %366 = vmatpush2.bf16.msra.mxu0 0
      %367 = vmatprep.subr.bf16.mxu0 0
      %368 = vmatpush2.bf16.msra.mxu0 0
      %369 = vmatprep.subr.bf16.mxu0 0
      %370 = vmatpush2.bf16.msra.mxu0 0
      %371 = vmatprep.mubr.bf16.mxu0 0
      %372 = vmatmul.mubr.bf16.gmra.mxu0 %v333
      %v373 = vpop.f32.mrf.mxu0
      %v374 = vadd.f32 0.0, %v373
      %v375 = vpop.f32.mrf.mxu0
      %v376 = vpop.f32.mrf.mxu0
      %v377 = vpop.f32.mrf.mxu0
      %378 = vdwg.mxu0
      %379 = vst.msk [vmem:[%s263] sm:$0xff] %vm271, %v374
      %p380 = scmp.lt.s32.totalorder %s18, 1
      %s381 = scalar_select %p380, %s18, 1
      %p382 = scmp.lt.s32.totalorder %s19, 3
      %s383 = scalar_select %p382, %s19, 3
      %s384 = smul.addr %s381, 4
      %s385 = sadd.s32 %s383, %s384
      %s386 = smul.addr %s385, 8
      %s387 = scalar_lea.vmem %s3, %s386
      // Predicated region
      $region33: #{stage_model_forward.30} parent=31 // pred_check
        %p388 = pneg %p130
      $region34: #{stage_model_forward.30} parent=31 // pred_check_branch
        %390 = sbr.rel (%p388) target = $region36
      $region35: #{stage_model_forward.30} parent=31 // pred_region
        _
      $region36: #{stage_model_forward.30} parent=31 // pred_fallthru
        _
    $region32: #{stage_model_forward.30} parent=5 // pred_fallthru
      _
    %p391 = scmp.le.s32.totalorder 2, %s9
    // Predicated region
    $region37: #{stage_model_forward.30} parent=5 // pred_check
      %p392 = pneg %p391
    $region38: #{stage_model_forward.30} parent=5 // pred_check_branch
      %394 = sbr.rel (%p392) target = $region40
    $region39: #{stage_model_forward.30} parent=5 // pred_region
      %s395 = ssub.s32 %s9, 2
      // Predicated region
      $region41: #{stage_model_forward.30} parent=39 // pred_check
        %p396 = pneg %p136
      $region42: #{stage_model_forward.30} parent=39 // pred_check_branch
        %398 = sbr.rel (%p396) target = $region44
      $region43: #{stage_model_forward.30} parent=39 // pred_region
        %p399 = scmp.lt.s32.totalorder %s20, 1
        %s400 = scalar_select %p399, %s20, 1
        %p401 = scmp.lt.s32.totalorder %s21, 3
        %s402 = scalar_select %p401, %s21, 3
        %s403 = smul.addr %s400, 4
        %s404 = sadd.s32 %s402, %s403
        %s405 = smul.addr %s404, 8
        %s406 = scalar_lea.vmem %s3, %s405
      $region44: #{stage_model_forward.30} parent=39 // pred_fallthru
        _
    $region40: #{stage_model_forward.30} parent=5 // pred_fallthru
      _
  $region6: #{stage_model_forward.30} parent=0 // loop_footer
    %s13 = sadd.s32 1, %s9
  $region7: #{stage_model_forward.30} parent=0 // loop_footer_branch
    %8 = sbr.rel target = $region3
  $region8: #{stage_model_forward.30} parent=0 // loop_exit
    _

// kernel: stage_model_forward.31
$region0: #{stage_model_forward.31}
  #allocation0 [shape = 'u32[]', space=smem, size = 0x4, offset = 0x4, fixed_abs, tag = 'smem constant byte address 0x4 - core index']
  #allocation1 [shape = 'u32[144,128]{1,0:T(1,128)}', space=vmem, size = 0x12000, scoped, tag = 'internal scratch']
  #allocation2 [shape = 'f32[16,16]{1,0:T(8,128)}', space=vmem, size = 0x2000, scoped, tag = 'scratch operand']
  %s0 = inlined_call_operand.vmem [shape: f32[16,16], index: 0, kind: input, shape index: {}]
  %s1 = inlined_call_operand.vmem [shape: bf16[16,16], index: 1, kind: input, shape index: {}]
  %s2 = inlined_call_operand.vmem [shape: f32[1,16], index: 2, kind: input, shape index: {}]
  %s3 = inlined_call_operand.vmem [shape: f32[16,16], index: 3, kind: input, shape index: {}]
  %s4 = inlined_call_operand.vmem [shape: f32[1,16], index: 4, kind: input, shape index: {}]
  %s5 = inlined_call_operand.vmem [shape: f32[1,16], index: 5, kind: input, shape index: {}]
  %s6 = inlined_call_operand.vmem [shape: f32[16,16], index: 6, kind: output, shape index: {}]
  %s7 = sld [smem:[#allocation0]]
  $region42: #{stage_model_forward.31} parent=0
    _
  %s9 = ssub.s32 1, %s7
  %s10 = scalar_select 0, %s9, %s7
  // Predicated region
  $region2: #{stage_model_forward.31} parent=0 // pred_check
    _
  $region3: #{stage_model_forward.31} parent=0 // pred_check_branch
    %12 = sbr.rel (0) target = $region5
  $region4: #{stage_model_forward.31} parent=0 // pred_region
    _
  $region5: #{stage_model_forward.31} parent=0 // pred_fallthru
    _
  // Predicated region
  $region6: #{stage_model_forward.31} parent=0 // pred_check
    _
  $region7: #{stage_model_forward.31} parent=0 // pred_check_branch
    %14 = sbr.rel (0) target = $region9
  $region8: #{stage_model_forward.31} parent=0 // pred_region
    _
  $region9: #{stage_model_forward.31} parent=0 // pred_fallthru
    _
  // Predicated region
  $region10: #{stage_model_forward.31} parent=0 // pred_check
    _
  $region11: #{stage_model_forward.31} parent=0 // pred_check_branch
    %16 = sbr.rel (0) target = $region13
  $region12: #{stage_model_forward.31} parent=0 // pred_region
    _
  $region13: #{stage_model_forward.31} parent=0 // pred_fallthru
    _
  // Predicated region
  $region14: #{stage_model_forward.31} parent=0 // pred_check
    _
  $region15: #{stage_model_forward.31} parent=0 // pred_check_branch
    %18 = sbr.rel (0) target = $region17
  $region16: #{stage_model_forward.31} parent=0 // pred_region
    _
  $region17: #{stage_model_forward.31} parent=0 // pred_fallthru
    _
  // Predicated region
  $region18: #{stage_model_forward.31} parent=0 // pred_check
    _
  $region19: #{stage_model_forward.31} parent=0 // pred_check_branch
    %20 = sbr.rel (0) target = $region21
  $region20: #{stage_model_forward.31} parent=0 // pred_region
    _
  $region21: #{stage_model_forward.31} parent=0 // pred_fallthru
    _
  // Predicated region
  $region22: #{stage_model_forward.31} parent=0 // pred_check
    _
  $region23: #{stage_model_forward.31} parent=0 // pred_check_branch
    %22 = sbr.rel (0) target = $region25
  $region24: #{stage_model_forward.31} parent=0 // pred_region
    _
  $region25: #{stage_model_forward.31} parent=0 // pred_fallthru
    _
  %p24 = scmp.eq.s32.totalorder 0, 0
  // Predicated region
  $region26: #{stage_model_forward.31} parent=0 // pred_check
    %p25 = pneg %p24
  $region27: #{stage_model_forward.31} parent=0 // pred_check_branch
    %27 = sbr.rel (%p25) target = $region29
  $region28: #{stage_model_forward.31} parent=0 // pred_region
    %vm28 = vcmask 130048
    %29 = vst.msk [vmem:[#allocation2] sm:$0xff] %vm28, 0.0
    %30 = vst.msk [vmem:[#allocation2 + $0x8] sm:$0xff] %vm28, 0.0
  $region29: #{stage_model_forward.31} parent=0 // pred_fallthru
    _
  %v31 = vld [vmem:[#allocation2] sm:$0xff]
  %v32 = vld [vmem:[#allocation2 + $0x8] sm:$0xff]
  %v33 = vld [vmem:[%s0] sm:$0xff]
  %v34 = vld [vmem:[%s0 + $0x8] sm:$0xff]
  %v35 = vpack.c.bf16 %v34, %v33
  %v36 = vld [vmem:[%s1] sm:$0xf]
  %v37 = vld [vmem:[%s1 + $0x4] sm:$0xf]
  %v40 = vunpack.c.l.b16 %v36
  %v41 = vunpack.c.l.b16 %v37
  %v42 = vpack.c.b16 %v41, %v40
  %vm44 = vcmask 130048
  %v46 = vsel %vm44, %v35, 0
  %48 = vmatprep.subr.bf16.mxu0 0
  %49 = vmatpush1.bf16.msra.mxu0 0
  %50 = vmatprep.subr.bf16.mxu0 0
  %51 = vmatpush1.bf16.msra.mxu0 0
  %52 = vmatprep.subr.bf16.mxu0 0
  %53 = vmatpush1.bf16.msra.mxu0 0
  %54 = vmatprep.subr.bf16.mxu0 0
  %55 = vmatpush1.bf16.msra.mxu0 0
  %56 = vmatprep.subr.bf16.mxu0 0
  %57 = vmatpush1.bf16.msra.mxu0 0
  %58 = vmatprep.subr.bf16.mxu0 0
  %59 = vmatpush1.bf16.msra.mxu0 0
  %60 = vmatprep.subr.bf16.mxu0 0
  %61 = vmatpush1.bf16.msra.mxu0 0
  %62 = vmatprep.subr.bf16.mxu0 0
  %63 = vmatpush1.bf16.msra.mxu0 %v42
  %64 = vmatprep.subr.bf16.mxu0 0
  %65 = vmatpush2.bf16.msra.mxu0 0
  %66 = vmatprep.subr.bf16.mxu0 0
  %67 = vmatpush2.bf16.msra.mxu0 0
  %68 = vmatprep.subr.bf16.mxu0 0
  %69 = vmatpush2.bf16.msra.mxu0 0
  %70 = vmatprep.subr.bf16.mxu0 0
  %71 = vmatpush2.bf16.msra.mxu0 0
  %72 = vmatprep.subr.bf16.mxu0 0
  %73 = vmatpush2.bf16.msra.mxu0 0
  %74 = vmatprep.subr.bf16.mxu0 0
  %75 = vmatpush2.bf16.msra.mxu0 0
  %76 = vmatprep.subr.bf16.mxu0 0
  %77 = vmatpush2.bf16.msra.mxu0 0
  %78 = vmatprep.subr.bf16.mxu0 0
  %79 = vmatpush2.bf16.msra.mxu0 0
  %80 = vmatprep.mubr.bf16.mxu0 0
  %81 = vmatmul.mubr.bf16.gmra.mxu0 %v46
  %v82 = vpop.f32.mrf.mxu0
  %v83 = vadd.f32 0.0, %v82
  %v84 = vpop.f32.mrf.mxu0
  %v85 = vpop.f32.mrf.mxu0
  %v86 = vadd.f32 0.0, %v85
  %v87 = vpop.f32.mrf.mxu0
  %88 = vdwg.mxu0
  %v89 = vadd.f32 %v31, %v83
  %v90 = vadd.f32 %v32, %v86
  %91 = vst.msk [vmem:[#allocation2] sm:$0xff] %vm44, %v89
  %92 = vst.msk [vmem:[#allocation2 + $0x8] sm:$0xff] %vm44, %v90
  // Predicated region
  $region30: #{stage_model_forward.31} parent=0 // pred_check
    %p93 = pneg %p24
  $region31: #{stage_model_forward.31} parent=0 // pred_check_branch
    %95 = sbr.rel (%p93) target = $region33
  $region32: #{stage_model_forward.31} parent=0 // pred_region
    %v96 = vld [vmem:[#allocation2] sm:$0xff]
    %v97 = vld [vmem:[#allocation2 + $0x8] sm:$0xff]
    %v98 = vld [vmem:[%s2] sm:$0x1]
    %v100 = vlaneseq
    %v101 = vshrl.u32 %v100, 7
    %v102 = vsub.s32 0, %v101
    %v103 = vrot.slane %v98, %v102
    %v105 = vadd.f32 %v96, %v103
    %v106 = vadd.f32 %v97, %v103
    %v107 = vld [vmem:[%s3] sm:$0xff]
    %v108 = vld [vmem:[%s3 + $0x8] sm:$0xff]
    %v109 = vadd.f32 %v105, %v107
    %v110 = vadd.f32 %v106, %v108
    %v111 = vsel %vm44, %v109, 0.0
    %112 = vadd.xlane.f32.xlu0 %v111
    %v113 = vpop.xlane.xlu0 %112
    %v114 = vsel %vm44, %v110, 0.0
    %115 = vadd.xlane.f32.xlu0 %v114
    %v116 = vpop.xlane.xlu0 %115
    %v117 = vrcp.pop 16.0
    %v118 = vmul.f32 %v113, %v117
    %v119 = vmul.f32 %v116, %v117
    %v120 = vsub.f32 %v109, %v118
    %v121 = vsub.f32 %v110, %v119
    %v122 = vmul.f32 %v120, %v120
    %v123 = vmul.f32 %v121, %v121
    %v124 = vsel %vm44, %v122, 0.0
    %125 = vadd.xlane.f32.xlu0 %v124
    %v126 = vpop.xlane.xlu0 %125
    %v127 = vsel %vm44, %v123, 0.0
    %128 = vadd.xlane.f32.xlu0 %v127
    %v129 = vpop.xlane.xlu0 %128
    %v130 = vmul.f32 %v126, %v117
    %v131 = vmul.f32 %v129, %v117
    %v132 = vadd.f32 %v130, 1e-12
    %v133 = vadd.f32 %v131, 1e-12
    %v134 = vrsqrt.pop %v132
    %v135 = vrsqrt.pop %v133
    %v136 = vmul.f32 %v120, %v134
    %v137 = vmul.f32 %v121, %v135
    %v138 = vld [vmem:[%s4] sm:$0x1]
    %v140 = vlaneseq
    %v141 = vshrl.u32 %v140, 7
    %v142 = vsub.s32 0, %v141
    %v143 = vrot.slane %v138, %v142
    %v145 = vmul.f32 %v136, %v143
    %v146 = vmul.f32 %v137, %v143
    %v147 = vld [vmem:[%s5] sm:$0x1]
    %v149 = vlaneseq
    %v150 = vshrl.u32 %v149, 7
    %v151 = vsub.s32 0, %v150
    %v152 = vrot.slane %v147, %v151
    %v154 = vadd.f32 %v145, %v152
    %v155 = vadd.f32 %v146, %v152
    %156 = vst.msk [vmem:[%s6] sm:$0xff] %vm44, %v154
    %157 = vst.msk [vmem:[%s6 + $0x8] sm:$0xff] %vm44, %v155
  $region33: #{stage_model_forward.31} parent=0 // pred_fallthru
    _
  // Predicated region
  $region34: #{stage_model_forward.31} parent=0 // pred_check
    _
  $region35: #{stage_model_forward.31} parent=0 // pred_check_branch
    %159 = sbr.rel (0) target = $region37
  $region36: #{stage_model_forward.31} parent=0 // pred_region
    _
  $region37: #{stage_model_forward.31} parent=0 // pred_fallthru
    _
  // Predicated region
  $region38: #{stage_model_forward.31} parent=0 // pred_check
    _
  $region39: #{stage_model_forward.31} parent=0 // pred_check_branch
    %161 = sbr.rel (0) target = $region41
  $region40: #{stage_model_forward.31} parent=0 // pred_region
    _
  $region41: #{stage_model_forward.31} parent=0 // pred_fallthru
    _

// kernel: stage_model_forward.33
$region0: #{stage_model_forward.33}
  #allocation0 [shape = 'u32[]', space=smem, size = 0x4, offset = 0x4, fixed_abs, tag = 'smem constant byte address 0x4 - core index']
  #allocation1 [shape = 'u32[144,128]{1,0:T(1,128)}', space=vmem, size = 0x12000, scoped, tag = 'internal scratch']
  #allocation2 [shape = 'f32[16,16]{1,0:T(8,128)}', space=vmem, size = 0x2000, scoped, tag = 'scratch operand']
  %s0 = inlined_call_operand.vmem [shape: f32[16,32], index: 0, kind: input, shape index: {}]
  %s1 = inlined_call_operand.vmem [shape: bf16[32,16], index: 1, kind: input, shape index: {}]
  %s2 = inlined_call_operand.vmem [shape: f32[1,16], index: 2, kind: input, shape index: {}]
  %s3 = inlined_call_operand.vmem [shape: f32[16,16], index: 3, kind: input, shape index: {}]
  %s4 = inlined_call_operand.vmem [shape: f32[1,16], index: 4, kind: input, shape index: {}]
  %s5 = inlined_call_operand.vmem [shape: f32[1,16], index: 5, kind: input, shape index: {}]
  %s6 = inlined_call_operand.vmem [shape: f32[16,16], index: 6, kind: output, shape index: {}]
  %s7 = sld [smem:[#allocation0]]
  $region42: #{stage_model_forward.33} parent=0
    _
  %s9 = ssub.s32 1, %s7
  %s10 = scalar_select 0, %s9, %s7
  // Predicated region
  $region2: #{stage_model_forward.33} parent=0 // pred_check
    _
  $region3: #{stage_model_forward.33} parent=0 // pred_check_branch
    %12 = sbr.rel (0) target = $region5
  $region4: #{stage_model_forward.33} parent=0 // pred_region
    _
  $region5: #{stage_model_forward.33} parent=0 // pred_fallthru
    _
  // Predicated region
  $region6: #{stage_model_forward.33} parent=0 // pred_check
    _
  $region7: #{stage_model_forward.33} parent=0 // pred_check_branch
    %14 = sbr.rel (0) target = $region9
  $region8: #{stage_model_forward.33} parent=0 // pred_region
    _
  $region9: #{stage_model_forward.33} parent=0 // pred_fallthru
    _
  // Predicated region
  $region10: #{stage_model_forward.33} parent=0 // pred_check
    _
  $region11: #{stage_model_forward.33} parent=0 // pred_check_branch
    %16 = sbr.rel (0) target = $region13
  $region12: #{stage_model_forward.33} parent=0 // pred_region
    _
  $region13: #{stage_model_forward.33} parent=0 // pred_fallthru
    _
  // Predicated region
  $region14: #{stage_model_forward.33} parent=0 // pred_check
    _
  $region15: #{stage_model_forward.33} parent=0 // pred_check_branch
    %18 = sbr.rel (0) target = $region17
  $region16: #{stage_model_forward.33} parent=0 // pred_region
    _
  $region17: #{stage_model_forward.33} parent=0 // pred_fallthru
    _
  // Predicated region
  $region18: #{stage_model_forward.33} parent=0 // pred_check
    _
  $region19: #{stage_model_forward.33} parent=0 // pred_check_branch
    %20 = sbr.rel (0) target = $region21
  $region20: #{stage_model_forward.33} parent=0 // pred_region
    _
  $region21: #{stage_model_forward.33} parent=0 // pred_fallthru
    _
  // Predicated region
  $region22: #{stage_model_forward.33} parent=0 // pred_check
    _
  $region23: #{stage_model_forward.33} parent=0 // pred_check_branch
    %22 = sbr.rel (0) target = $region25
  $region24: #{stage_model_forward.33} parent=0 // pred_region
    _
  $region25: #{stage_model_forward.33} parent=0 // pred_fallthru
    _
  %p24 = scmp.eq.s32.totalorder 0, 0
  // Predicated region
  $region26: #{stage_model_forward.33} parent=0 // pred_check
    %p25 = pneg %p24
  $region27: #{stage_model_forward.33} parent=0 // pred_check_branch
    %27 = sbr.rel (%p25) target = $region29
  $region28: #{stage_model_forward.33} parent=0 // pred_region
    %vm28 = vcmask 130048
    %29 = vst.msk [vmem:[#allocation2] sm:$0xff] %vm28, 0.0
    %30 = vst.msk [vmem:[#allocation2 + $0x8] sm:$0xff] %vm28, 0.0
  $region29: #{stage_model_forward.33} parent=0 // pred_fallthru
    _
  %v31 = vld [vmem:[#allocation2] sm:$0xff]
  %v32 = vld [vmem:[#allocation2 + $0x8] sm:$0xff]
  %v33 = vld [vmem:[%s0] sm:$0xff]
  %v34 = vld [vmem:[%s0 + $0x8] sm:$0xff]
  %v35 = vpack.c.bf16 %v34, %v33
  %v36 = vld [vmem:[%s1] sm:$0xf]
  %v37 = vld [vmem:[%s1 + $0x4] sm:$0xf]
  %v38 = vld [vmem:[%s1 + $0x8] sm:$0xf]
  %v39 = vld [vmem:[%s1 + $0xc] sm:$0xf]
  %v44 = vunpack.c.l.b16 %v36
  %v45 = vunpack.c.l.b16 %v37
  %v46 = vunpack.c.l.b16 %v38
  %v47 = vunpack.c.l.b16 %v39
  %v48 = vpack.c.b16 %v45, %v44
  %v49 = vpack.c.b16 %v47, %v46
  %vm52 = vcmask 261120
  %v54 = vsel %vm52, %v35, 0
  %56 = vmatprep.subr.bf16.mxu0 0
  %57 = vmatpush1.bf16.msra.mxu0 0
  %58 = vmatprep.subr.bf16.mxu0 0
  %59 = vmatpush1.bf16.msra.mxu0 0
  %60 = vmatprep.subr.bf16.mxu0 0
  %61 = vmatpush1.bf16.msra.mxu0 0
  %62 = vmatprep.subr.bf16.mxu0 0
  %63 = vmatpush1.bf16.msra.mxu0 0
  %64 = vmatprep.subr.bf16.mxu0 0
  %65 = vmatpush1.bf16.msra.mxu0 0
  %66 = vmatprep.subr.bf16.mxu0 0
  %67 = vmatpush1.bf16.msra.mxu0 0
  %68 = vmatprep.subr.bf16.mxu0 0
  %69 = vmatpush1.bf16.msra.mxu0 %v49
  %70 = vmatprep.subr.bf16.mxu0 0
  %71 = vmatpush1.bf16.msra.mxu0 %v48
  %72 = vmatprep.subr.bf16.mxu0 0
  %73 = vmatpush2.bf16.msra.mxu0 0
  %74 = vmatprep.subr.bf16.mxu0 0
  %75 = vmatpush2.bf16.msra.mxu0 0
  %76 = vmatprep.subr.bf16.mxu0 0
  %77 = vmatpush2.bf16.msra.mxu0 0
  %78 = vmatprep.subr.bf16.mxu0 0
  %79 = vmatpush2.bf16.msra.mxu0 0
  %80 = vmatprep.subr.bf16.mxu0 0
  %81 = vmatpush2.bf16.msra.mxu0 0
  %82 = vmatprep.subr.bf16.mxu0 0
  %83 = vmatpush2.bf16.msra.mxu0 0
  %84 = vmatprep.subr.bf16.mxu0 0
  %85 = vmatpush2.bf16.msra.mxu0 0
  %86 = vmatprep.subr.bf16.mxu0 0
  %87 = vmatpush2.bf16.msra.mxu0 0
  %88 = vmatprep.mubr.bf16.mxu0 0
  %89 = vmatmul.mubr.bf16.gmra.mxu0 %v54
  %v90 = vpop.f32.mrf.mxu0
  %v91 = vadd.f32 0.0, %v90
  %v92 = vpop.f32.mrf.mxu0
  %v93 = vpop.f32.mrf.mxu0
  %v94 = vadd.f32 0.0, %v93
  %v95 = vpop.f32.mrf.mxu0
  %96 = vdwg.mxu0
  %v97 = vadd.f32 %v31, %v91
  %v98 = vadd.f32 %v32, %v94
  %vm99 = vcmask 130048
  %100 = vst.msk [vmem:[#allocation2] sm:$0xff] %vm99, %v97
  %101 = vst.msk [vmem:[#allocation2 + $0x8] sm:$0xff] %vm99, %v98
  // Predicated region
  $region30: #{stage_model_forward.33} parent=0 // pred_check
    %p102 = pneg %p24
  $region31: #{stage_model_forward.33} parent=0 // pred_check_branch
    %104 = sbr.rel (%p102) target = $region33
  $region32: #{stage_model_forward.33} parent=0 // pred_region
    %v105 = vld [vmem:[#allocation2] sm:$0xff]
    %v106 = vld [vmem:[#allocation2 + $0x8] sm:$0xff]
    %v107 = vld [vmem:[%s2] sm:$0x1]
    %v109 = vlaneseq
    %v110 = vshrl.u32 %v109, 7
    %v111 = vsub.s32 0, %v110
    %v112 = vrot.slane %v107, %v111
    %v114 = vadd.f32 %v105, %v112
    %v115 = vadd.f32 %v106, %v112
    %v116 = vld [vmem:[%s3] sm:$0xff]
    %v117 = vld [vmem:[%s3 + $0x8] sm:$0xff]
    %v118 = vadd.f32 %v114, %v116
    %v119 = vadd.f32 %v115, %v117
    %v120 = vsel %vm99, %v118, 0.0
    %121 = vadd.xlane.f32.xlu0 %v120
    %v122 = vpop.xlane.xlu0 %121
    %v123 = vsel %vm99, %v119, 0.0
    %124 = vadd.xlane.f32.xlu0 %v123
    %v125 = vpop.xlane.xlu0 %124
    %v126 = vrcp.pop 16.0
    %v127 = vmul.f32 %v122, %v126
    %v128 = vmul.f32 %v125, %v126
    %v129 = vsub.f32 %v118, %v127
    %v130 = vsub.f32 %v119, %v128
    %v131 = vmul.f32 %v129, %v129
    %v132 = vmul.f32 %v130, %v130
    %v133 = vsel %vm99, %v131, 0.0
    %134 = vadd.xlane.f32.xlu0 %v133
    %v135 = vpop.xlane.xlu0 %134
    %v136 = vsel %vm99, %v132, 0.0
    %137 = vadd.xlane.f32.xlu0 %v136
    %v138 = vpop.xlane.xlu0 %137
    %v139 = vmul.f32 %v135, %v126
    %v140 = vmul.f32 %v138, %v126
    %v141 = vadd.f32 %v139, 1e-12
    %v142 = vadd.f32 %v140, 1e-12
    %v143 = vrsqrt.pop %v141
    %v144 = vrsqrt.pop %v142
    %v145 = vmul.f32 %v129, %v143
    %v146 = vmul.f32 %v130, %v144
    %v147 = vld [vmem:[%s4] sm:$0x1]
    %v149 = vlaneseq
    %v150 = vshrl.u32 %v149, 7
    %v151 = vsub.s32 0, %v150
    %v152 = vrot.slane %v147, %v151
    %v154 = vmul.f32 %v145, %v152
    %v155 = vmul.f32 %v146, %v152
    %v156 = vld [vmem:[%s5] sm:$0x1]
    %v158 = vlaneseq
    %v159 = vshrl.u32 %v158, 7
    %v160 = vsub.s32 0, %v159
    %v161 = vrot.slane %v156, %v160
    %v163 = vadd.f32 %v154, %v161
    %v164 = vadd.f32 %v155, %v161
    %165 = vst.msk [vmem:[%s6] sm:$0xff] %vm99, %v163
    %166 = vst.msk [vmem:[%s6 + $0x8] sm:$0xff] %vm99, %v164
  $region33: #{stage_model_forward.33} parent=0 // pred_fallthru
    _
  // Predicated region
  $region34: #{stage_model_forward.33} parent=0 // pred_check
    _
  $region35: #{stage_model_forward.33} parent=0 // pred_check_branch
    %168 = sbr.rel (0) target = $region37
  $region36: #{stage_model_forward.33} parent=0 // pred_region
    _
  $region37: #{stage_model_forward.33} parent=0 // pred_fallthru
    _
  // Predicated region
  $region38: #{stage_model_forward.33} parent=0 // pred_check
    _
  $region39: #{stage_model_forward.33} parent=0 // pred_check_branch
    %170 = sbr.rel (0) target = $region41
  $region40: #{stage_model_forward.33} parent=0 // pred_region
    _
  $region41: #{stage_model_forward.33} parent=0 // pred_fallthru
    _

// kernel: stage_model_forward.45
$region0: #{stage_model_forward.45}
  #allocation0 [shape = 'u32[]', space=smem, size = 0x4, offset = 0x4, fixed_abs, tag = 'smem constant byte address 0x4 - core index']
  #allocation1 [shape = 'u32[144,128]{1,0:T(1,128)}', space=vmem, size = 0x12000, scoped, tag = 'internal scratch']
  #allocation2 [shape = 'f32[16,32]{1,0:T(8,128)}', space=vmem, size = 0x2000, scoped, tag = 'scratch operand']
  %s0 = inlined_call_operand.vmem [shape: f32[16,16], index: 0, kind: input, shape index: {}]
  %s1 = inlined_call_operand.vmem [shape: bf16[16,32], index: 1, kind: input, shape index: {}]
  %s2 = inlined_call_operand.vmem [shape: f32[1,32], index: 2, kind: input, shape index: {}]
  %s3 = inlined_call_operand.vmem [shape: f32[16,32], index: 3, kind: input, shape index: {}]
  %s4 = inlined_call_operand.vmem [shape: f32[16,32], index: 4, kind: output, shape index: {}]
  %s5 = sld [smem:[#allocation0]]
  $region34: #{stage_model_forward.45} parent=0
    _
  %s7 = ssub.s32 1, %s5
  %s8 = scalar_select 0, %s7, %s5
  // Predicated region
  $region2: #{stage_model_forward.45} parent=0 // pred_check
    _
  $region3: #{stage_model_forward.45} parent=0 // pred_check_branch
    %10 = sbr.rel (0) target = $region5
  $region4: #{stage_model_forward.45} parent=0 // pred_region
    _
  $region5: #{stage_model_forward.45} parent=0 // pred_fallthru
    _
  // Predicated region
  $region6: #{stage_model_forward.45} parent=0 // pred_check
    _
  $region7: #{stage_model_forward.45} parent=0 // pred_check_branch
    %12 = sbr.rel (0) target = $region9
  $region8: #{stage_model_forward.45} parent=0 // pred_region
    _
  $region9: #{stage_model_forward.45} parent=0 // pred_fallthru
    _
  // Predicated region
  $region10: #{stage_model_forward.45} parent=0 // pred_check
    _
  $region11: #{stage_model_forward.45} parent=0 // pred_check_branch
    %14 = sbr.rel (0) target = $region13
  $region12: #{stage_model_forward.45} parent=0 // pred_region
    _
  $region13: #{stage_model_forward.45} parent=0 // pred_fallthru
    _
  // Predicated region
  $region14: #{stage_model_forward.45} parent=0 // pred_check
    _
  $region15: #{stage_model_forward.45} parent=0 // pred_check_branch
    %16 = sbr.rel (0) target = $region17
  $region16: #{stage_model_forward.45} parent=0 // pred_region
    _
  $region17: #{stage_model_forward.45} parent=0 // pred_fallthru
    _
  %p18 = scmp.eq.s32.totalorder 0, 0
  // Predicated region
  $region18: #{stage_model_forward.45} parent=0 // pred_check
    %p19 = pneg %p18
  $region19: #{stage_model_forward.45} parent=0 // pred_check_branch
    %21 = sbr.rel (%p19) target = $region21
  $region20: #{stage_model_forward.45} parent=0 // pred_region
    %vm22 = vcmask 261120
    %23 = vst.msk [vmem:[#allocation2] sm:$0xff] %vm22, 0.0
    %24 = vst.msk [vmem:[#allocation2 + $0x8] sm:$0xff] %vm22, 0.0
  $region21: #{stage_model_forward.45} parent=0 // pred_fallthru
    _
  %v25 = vld [vmem:[#allocation2] sm:$0xff]
  %v26 = vld [vmem:[#allocation2 + $0x8] sm:$0xff]
  %v27 = vld [vmem:[%s0] sm:$0xff]
  %v28 = vld [vmem:[%s0 + $0x8] sm:$0xff]
  %v29 = vpack.c.bf16 %v28, %v27
  %v30 = vld [vmem:[%s1] sm:$0xf]
  %v31 = vld [vmem:[%s1 + $0x4] sm:$0xf]
  %v34 = vunpack.c.l.b16 %v30
  %v35 = vunpack.c.l.b16 %v31
  %v36 = vpack.c.b16 %v35, %v34
  %vm38 = vcmask 130048
  %v40 = vsel %vm38, %v29, 0
  %42 = vmatprep.subr.bf16.mxu0 0
  %43 = vmatpush1.bf16.msra.mxu0 0
  %44 = vmatprep.subr.bf16.mxu0 0
  %45 = vmatpush1.bf16.msra.mxu0 0
  %46 = vmatprep.subr.bf16.mxu0 0
  %47 = vmatpush1.bf16.msra.mxu0 0
  %48 = vmatprep.subr.bf16.mxu0 0
  %49 = vmatpush1.bf16.msra.mxu0 0
  %50 = vmatprep.subr.bf16.mxu0 0
  %51 = vmatpush1.bf16.msra.mxu0 0
  %52 = vmatprep.subr.bf16.mxu0 0
  %53 = vmatpush1.bf16.msra.mxu0 0
  %54 = vmatprep.subr.bf16.mxu0 0
  %55 = vmatpush1.bf16.msra.mxu0 0
  %56 = vmatprep.subr.bf16.mxu0 0
  %57 = vmatpush1.bf16.msra.mxu0 %v36
  %58 = vmatprep.subr.bf16.mxu0 0
  %59 = vmatpush2.bf16.msra.mxu0 0
  %60 = vmatprep.subr.bf16.mxu0 0
  %61 = vmatpush2.bf16.msra.mxu0 0
  %62 = vmatprep.subr.bf16.mxu0 0
  %63 = vmatpush2.bf16.msra.mxu0 0
  %64 = vmatprep.subr.bf16.mxu0 0
  %65 = vmatpush2.bf16.msra.mxu0 0
  %66 = vmatprep.subr.bf16.mxu0 0
  %67 = vmatpush2.bf16.msra.mxu0 0
  %68 = vmatprep.subr.bf16.mxu0 0
  %69 = vmatpush2.bf16.msra.mxu0 0
  %70 = vmatprep.subr.bf16.mxu0 0
  %71 = vmatpush2.bf16.msra.mxu0 0
  %72 = vmatprep.subr.bf16.mxu0 0
  %73 = vmatpush2.bf16.msra.mxu0 0
  %74 = vmatprep.mubr.bf16.mxu0 0
  %75 = vmatmul.mubr.bf16.gmra.mxu0 %v40
  %v76 = vpop.f32.mrf.mxu0
  %v77 = vadd.f32 0.0, %v76
  %v78 = vpop.f32.mrf.mxu0
  %v79 = vpop.f32.mrf.mxu0
  %v80 = vadd.f32 0.0, %v79
  %v81 = vpop.f32.mrf.mxu0
  %82 = vdwg.mxu0
  %v83 = vadd.f32 %v25, %v77
  %v84 = vadd.f32 %v26, %v80
  %vm85 = vcmask 261120
  %86 = vst.msk [vmem:[#allocation2] sm:$0xff] %vm85, %v83
  %87 = vst.msk [vmem:[#allocation2 + $0x8] sm:$0xff] %vm85, %v84
  // Predicated region
  $region22: #{stage_model_forward.45} parent=0 // pred_check
    %p88 = pneg %p18
  $region23: #{stage_model_forward.45} parent=0 // pred_check_branch
    %90 = sbr.rel (%p88) target = $region25
  $region24: #{stage_model_forward.45} parent=0 // pred_region
    %v91 = vld [vmem:[#allocation2] sm:$0xff]
    %v92 = vld [vmem:[#allocation2 + $0x8] sm:$0xff]
    %v93 = vld [vmem:[%s2] sm:$0x1]
    %v95 = vlaneseq
    %v96 = vshrl.u32 %v95, 7
    %v97 = vsub.s32 0, %v96
    %v98 = vrot.slane %v93, %v97
    %v100 = vadd.f32 %v91, %v98
    %v101 = vadd.f32 %v92, %v98
    %v102 = vld [vmem:[%s3] sm:$0xff]
    %v103 = vld [vmem:[%s3 + $0x8] sm:$0xff]
    %v104 = vadd.f32 %v100, %v102
    %v105 = vadd.f32 %v101, %v103
    %106 = vst.msk [vmem:[%s4] sm:$0xff] %vm85, %v104
    %107 = vst.msk [vmem:[%s4 + $0x8] sm:$0xff] %vm85, %v105
  $region25: #{stage_model_forward.45} parent=0 // pred_fallthru
    _
  // Predicated region
  $region26: #{stage_model_forward.45} parent=0 // pred_check
    _
  $region27: #{stage_model_forward.45} parent=0 // pred_check_branch
    %109 = sbr.rel (0) target = $region29
  $region28: #{stage_model_forward.45} parent=0 // pred_region
    _
  $region29: #{stage_model_forward.45} parent=0 // pred_fallthru
    _
  // Predicated region
  $region30: #{stage_model_forward.45} parent=0 // pred_check
    _
  $region31: #{stage_model_forward.45} parent=0 // pred_check_branch
    %111 = sbr.rel (0) target = $region33
  $region32: #{stage_model_forward.45} parent=0 // pred_region
    _
  $region33: #{stage_model_forward.45} parent=0 // pred_fallthru
    _

</llo_original>
